<compile_context>
chip_gen: v7x
topology: tpu7x:2x2x1
jax: 0.10.0
libtpu: 0.0.40
codegen_flags: <defaults>
</compile_context>

<pallas_src>
import functools

import jax
import jax.numpy as jnp
import numpy as np
from jax.experimental import pallas as pl
from jax.experimental.pallas import tpu as pltpu


def _pick_tile(n, preferred):
    """Largest tile <= preferred that divides n (avoids a silent full-N tile)."""
    for t in (preferred, 512, 256, 128, 64, 32, 16, 8):
        if t <= n and n % t == 0:
            return t
    return n


# ---------------------------------------------------------------------------
# Kernel 1: pairwise negative squared distances (for k-NN)
# ---------------------------------------------------------------------------

def _neg_pdist_kernel(x_ref, sqc_ref, sqr_ref, o_ref, *, tn):
    j = pl.multiple_of(pl.program_id(1) * tn, 128)
    xa = x_ref[0]                                   # (C, N)  all points, resident per batch
    xq = x_ref[0, :, pl.ds(j, tn)]                  # (C, TN) query tile, sliced in VMEM
    # (TN, N) = xq^T @ xa, contracting C (transposed-lhs MXU matmul).
    inner = jax.lax.dot_general(
        xq, xa, (((0,), (0,)), ((), ())), preferred_element_type=jnp.float32)
    # -||x_q - x_k||^2 ; squared norms precomputed in the wrapper (hoisted).
    o_ref[0] = 2.0 * inner - sqc_ref[0] - sqr_ref[0]


def pallas_neg_pdist(x, *, tile_n=256):
    """x: (B, C, N) -> (B, N, N) negative squared pairwise distances (f32)."""
    B, C, N = x.shape
    tn = _pick_tile(N, tile_n)
    xf = x.astype(jnp.float32)
    sq = jnp.sum(xf * xf, axis=1)                   # (B, N) hoisted per-point norms
    sqc = sq[:, :, None]                            # (B, N, 1) query norms (column)
    sqr = sq[:, None, :]                            # (B, 1, N) key norms (row)

    est = 2 * 4 * (8 * N + tn * N + tn + 8 * N) + (4 << 20)
    cp = pltpu.CompilerParams(
        dimension_semantics=("parallel", "parallel"),
        vmem_limit_bytes=int(min(max(est, 32 << 20), 64 << 20)))
    kernel = functools.partial(_neg_pdist_kernel, tn=tn)
    return pl.pallas_call(
        kernel,
        out_shape=jax.ShapeDtypeStruct((B, N, N), jnp.float32),
        grid=(B, N // tn),
        in_specs=[
            pl.BlockSpec((1, C, N), lambda b, nt: (b, 0, 0)),     # x resident per batch
            pl.BlockSpec((1, tn, 1), lambda b, nt: (b, nt, 0)),   # ||x_q||^2 column tile
            pl.BlockSpec((1, 1, N), lambda b, nt: (b, 0, 0)),     # ||x_k||^2 row, resident
        ],
        out_specs=pl.BlockSpec((1, tn, N), lambda b, nt: (b, nt, 0)),
        compiler_params=cp,
    )(xf, sqc, sqr)


# ---------------------------------------------------------------------------
# Neighbor gather (data-dependent -> XLA), emitted directly in the lane-flat
# layout the fused kernel consumes: (B, N//tn, C, K*tn) with
#   nb[b, t, c, k*tn + j] = x[b, c, idx[b, t*tn + j, k]]
# No broadcast copy of x, no big-tensor transpose.
# ---------------------------------------------------------------------------

def gather_neighbors_flat(x, idx, tn):
    B, C, N = x.shape
    K = idx.shape[-1]
    nt = N // tn
    fidx = jnp.transpose(idx.reshape(B, nt, tn, K), (0, 1, 3, 2)).reshape(B, nt, K * tn)
    take = lambda xb, ib: jnp.take(xb, ib, axis=1)                # (C, K*tn)
    return jax.vmap(jax.vmap(take, in_axes=(None, 0)), in_axes=(0, 0))(x, fidx)


# ---------------------------------------------------------------------------
# Kernel 2: fused center_diff grouping + conv1/BN1/LReLU + conv2/BN2/LReLU + pool
# ---------------------------------------------------------------------------

def _edge_conv_kernel(x_ref, nb_ref, a1_ref, b1_ref, t1_ref, w2_ref, t2_ref, o_ref,
                      *, num_k, tn, pooling):
    xc = x_ref[0]                                    # (C, TN)   bf16 center tile
    nb = nb_ref[0, 0]                                # (C, K*TN) bf16 neighbors (lane-flat)

    # conv1 + folded BN1: per-point part once, per-neighbor part as ONE big matmul.
    base = jnp.dot(a1_ref[...], xc, preferred_element_type=jnp.float32) + t1_ref[...]
    h1 = jnp.dot(b1_ref[...], nb, preferred_element_type=jnp.float32)   # (C1, K*TN)
    h1 = h1 + jnp.concatenate([base] * num_k, axis=1)                   # lane-aligned tile
    h1 = jnp.where(h1 >= 0, h1, 0.2 * h1)            # LeakyReLU(0.2)

    # conv2 + folded BN2: single (C2, C1) @ (C1, K*TN) matmul, one bf16 cast.
    h2 = jnp.dot(w2_ref[...], h1.astype(jnp.bfloat16),
                 preferred_element_type=jnp.float32) + t2_ref[...]
    h2 = jnp.where(h2 >= 0, h2, 0.2 * h2)            # (C2, K*TN)

    # Pool over K: lane-aligned static slices (k*TN is a multiple of 128) + VPU max/add.
    acc = h2[:, 0:tn]
    for k in range(1, num_k):
        blk = h2[:, k * tn:(k + 1) * tn]
        acc = jnp.maximum(acc, blk) if pooling == "max" else acc + blk
    if pooling == "average":
        acc = acc * (1.0 / num_k)
    o_ref[0] = acc                                   # (C2, TN) f32, lane-dense store


def fused_group_conv(x, nb_flat, params, *, tn, pooling="max", eps=1e-5):
    """x: (B, C, N), nb_flat: (B, N//tn, C, K*tn) -> (B, C2, N)."""
    B, C, N = x.shape
    K = nb_flat.shape[-1] // tn
    w1 = params["w1"]                                # (C1, 2C), bias-free 1x1 conv
    w2 = params["w2"]                                # (C2, C1)
    C1, C2 = w1.shape[0], w2.shape[0]

    # Fold eval-mode BatchNorm (per-channel affine) into the conv weights.
    s1 = params["bn1_g"] * jax.lax.rsqrt(params["bn1_v"] + eps)
    t1 = params["bn1_b"] - s1 * params["bn1_m"]
    s2 = params["bn2_g"] * jax.lax.rsqrt(params["bn2_v"] + eps)
    t2 = params["bn2_b"] - s2 * params["bn2_m"]
    w1c, w1d = w1[:, :C], w1[:, C:]
    a1 = (s1[:, None] * (w1c - w1d)).astype(jnp.bfloat16)   # multiplies the center point
    b1 = (s1[:, None] * w1d).astype(jnp.bfloat16)           # multiplies each neighbor
    w2f = (s2[:, None] * w2).astype(jnp.bfloat16)
    t1 = t1[:, None].astype(jnp.float32)
    t2 = t2[:, None].astype(jnp.float32)

    kt = K * tn
    est = (2 * (C * tn * 2 + C * kt * 2 + C2 * tn * 4)       # double-buffered i/o tiles
           + 5 * C1 * kt * 4                                  # in-kernel f32 temporaries
           + (4 << 20))
    cp = pltpu.CompilerParams(
        dimension_semantics=("parallel", "parallel"),
        vmem_limit_bytes=int(min(max(est, 32 << 20), 64 << 20)))

    kernel = functools.partial(_edge_conv_kernel, num_k=K, tn=tn, pooling=pooling)
    return pl.pallas_call(
        kernel,
        out_shape=jax.ShapeDtypeStruct((B, C2, N), jnp.float32),
        grid=(B, N // tn),
        in_specs=[
            pl.BlockSpec((1, C, tn), lambda b, nt: (b, 0, nt)),      # center tile
            pl.BlockSpec((1, 1, C, kt), lambda b, nt: (b, nt, 0, 0)),  # lane-flat neighbors
            pl.BlockSpec((C1, C), lambda b, nt: (0, 0)),             # resident weights
            pl.BlockSpec((C1, C), lambda b, nt: (0, 0)),
            pl.BlockSpec((C1, 1), lambda b, nt: (0, 0)),
            pl.BlockSpec((C2, C1), lambda b, nt: (0, 0)),
            pl.BlockSpec((C2, 1), lambda b, nt: (0, 0)),
        ],
        out_specs=pl.BlockSpec((1, C2, tn), lambda b, nt: (b, 0, nt)),
        compiler_params=cp,
    )(x.astype(jnp.bfloat16), nb_flat.astype(jnp.bfloat16), a1, b1, t1, w2f, t2)


# ---------------------------------------------------------------------------
# EdgeConv forward
# ---------------------------------------------------------------------------

def edge_conv_forward(x, coordinate, params, *, K, neighbor_selection_method="feature",
                      group_type="center_diff", pooling="max", tile_n=256):
    if pooling not in ("max", "average"):
        raise ValueError("pooling should be max or average")
    assert group_type == "center_diff", "only group_type='center_diff' is implemented"
    basis = x if neighbor_selection_method == "feature" else coordinate
    neg_adj = pallas_neg_pdist(basis, tile_n=tile_n)                # (B, N, N), Pallas
    # TODO(synk): top-k neighbor selection (sorting) stays in XLA; a streaming in-kernel
    # top-K (avoiding the B*N*N HBM round trip) is the next optimization step.
    _, idx = jax.lax.top_k(neg_adj, K)                              # (B, N, K), includes self
    N = x.shape[-1]
    tn = _pick_tile(N, tile_n)
    x_b16 = x.astype(jnp.bfloat16)
    nb_flat = gather_neighbors_flat(x_b16, idx, tn)                 # (B, N//tn, C, K*tn), XLA gather
    return fused_group_conv(x_b16, nb_flat, params, tn=tn, pooling=pooling)


# ---------------------------------------------------------------------------
# Pure-JAX f32 reference (mirrors the PyTorch forward) for validation
# ---------------------------------------------------------------------------

def _neg_pdist_ref(x):
    diff = x[:, :, :, None] - x[:, :, None, :]                      # (B, C, N, N)
    return -jnp.sum(diff * diff, axis=1)


def _edge_conv_ref(x, idx, params, pooling="max", eps=1e-5):
    B, C, N = x.shape
    K = idx.shape[-1]
    arr = jnp.broadcast_to(x[:, :, None, :], (B, C, N, N))
    ind = jnp.broadcast_to(idx[:, None, :, :], (B, C, N, K))
    nb = jnp.take_along_axis(arr, ind, axis=3)                      # (B, C, N, K)
    center = jnp.broadcast_to(x[:, :, :, None], (B, C, N, K))
    grouped = jnp.concatenate([center, nb - center], axis=1)        # (B, 2C, N, K)

    def bn(h, g, b, m, v):
        inv = jax.lax.rsqrt(v + eps)
        return (h - m[None, :, None, None]) * inv[None, :, None, None] \
            * g[None, :, None, None] + b[None, :, None, None]

    hp = jax.lax.Precision.HIGHEST
    h = jnp.einsum("oc,bcnk->bonk", params["w1"], grouped, precision=hp)
    h = bn(h, params["bn1_g"], params["bn1_b"], params["bn1_m"], params["bn1_v"])
    h = jnp.where(h >= 0, h, 0.2 * h)
    h = jnp.einsum("oc,bcnk->bonk", params["w2"], h, precision=hp)
    h = bn(h, params["bn2_g"], params["bn2_b"], params["bn2_m"], params["bn2_v"])
    h = jnp.where(h >= 0, h, 0.2 * h)
    return h.max(axis=-1) if pooling == "max" else h.mean(axis=-1)


# ---------------------------------------------------------------------------

if __name__ == "__main__":
    key = jax.random.PRNGKey(0)
    B, C, N, K = 2, 3, 256, 8            # conv1_channel_in = 2*C = 6
    C1, C2 = 64, 64

    ks = jax.random.split(key, 11)
    x = jax.random.normal(ks[0], (B, C, N), dtype=jnp.float32)      # points / coordinates

    params = {
        "w1": 0.3 * jax.random.normal(ks[1], (C1, 2 * C), dtype=jnp.float32),
        "bn1_g": 1.0 + 0.1 * jax.random.normal(ks[2], (C1,), dtype=jnp.float32),
        "bn1_b": 0.1 * jax.random.normal(ks[3], (C1,), dtype=jnp.float32),
        "bn1_m": 0.1 * jax.random.normal(ks[4], (C1,), dtype=jnp.float32),
        "bn1_v": 1.0 + 0.5 * jax.random.uniform(ks[5], (C1,), dtype=jnp.float32),
        "w2": 0.15 * jax.random.normal(ks[6], (C2, C1), dtype=jnp.float32),
        "bn2_g": 1.0 + 0.1 * jax.random.normal(ks[7], (C2,), dtype=jnp.float32),
        "bn2_b": 0.1 * jax.random.normal(ks[8], (C2,), dtype=jnp.float32),
        "bn2_m": 0.1 * jax.random.normal(ks[9], (C2,), dtype=jnp.float32),
        "bn2_v": 1.0 + 0.5 * jax.random.uniform(ks[10], (C2,), dtype=jnp.float32),
    }

    fwd = jax.jit(functools.partial(edge_conv_forward, K=K, pooling="max"))
    out = jax.block_until_ready(fwd(x, x, params))
    assert out.shape == (B, C2, N)

    # Validate the distance kernel against an exact elementwise reference.
    neg_adj = jax.block_until_ready(pallas_neg_pdist(x))
    np.testing.assert_allclose(np.asarray(neg_adj), np.asarray(_neg_pdist_ref(x)),
                               rtol=1e-2, atol=5e-2)

    # Validate the fused grouping/conv/pool path (same neighbor indices, f32 reference;
    # tolerance relaxed for the bf16 MXU inputs with f32 accumulation).
    _, idx = jax.lax.top_k(neg_adj, K)
    out_ref = _edge_conv_ref(x, idx, params, pooling="max")
    np.testing.assert_allclose(np.asarray(out), np.asarray(out_ref), rtol=3e-2, atol=3e-2)

    print("KERNEL_OK")
</pallas_src>

<mosaic_0001>
module attributes {stable_mosaic.version = 11 : i64} {
  func.func @_neg_pdist_kernel(%arg0: i32, %arg1: i32, %arg2: memref<1x3x256xf32, #tpu.memory_space<vmem>>, %arg3: memref<1x256x1xf32, #tpu.memory_space<vmem>>, %arg4: memref<1x1x256xf32, #tpu.memory_space<vmem>>, %arg5: memref<1x256x256xf32, #tpu.memory_space<vmem>>) attributes {dimension_semantics = [#tpu.dimension_semantics<parallel>, #tpu.dimension_semantics<parallel>], iteration_bounds = array<i64: 2, 1>, scalar_prefetch = 0 : i64, scratch_operands = 0 : i64, tpu.core_type = #tpu.core_type<tc>, window_params = [{transform_indices = @transform_0, window_bounds = array<i64: 1, 3, 256>}, {transform_indices = @transform_1, window_bounds = array<i64: 1, 256, 1>}, {transform_indices = @transform_2, window_bounds = array<i64: 1, 1, 256>}, {transform_indices = @transform_3, window_bounds = array<i64: 1, 256, 256>}]} {
    %c256_i32 = arith.constant 256 : i32
    %0 = arith.muli %arg1, %c256_i32 : i32
    %1 = tpu.assume_multiple %0, 128 : i32
    %c0 = arith.constant 0 : index
    %c0_0 = arith.constant 0 : index
    %c0_1 = arith.constant 0 : index
    %2 = vector.load %arg2[%c0, %c0_0, %c0_1] : memref<1x3x256xf32, #tpu.memory_space<vmem>>, vector<1x3x256xf32>
    %3 = vector.shape_cast %2 : vector<1x3x256xf32> to vector<3x256xf32>
    %c0_2 = arith.constant 0 : index
    %c0_3 = arith.constant 0 : index
    %4 = arith.index_cast %1 : i32 to index
    %5 = vector.load %arg2[%c0_2, %c0_3, %4] : memref<1x3x256xf32, #tpu.memory_space<vmem>>, vector<1x3x256xf32>
    %6 = vector.shape_cast %5 : vector<1x3x256xf32> to vector<3x256xf32>
    %cst = arith.constant dense<0.000000e+00> : vector<256x256xf32>
    %7 = tpu.matmul %6, %3, %cst {dimension_numbers = #tpu.dot_dimension_numbers<[0], [0], [1], [1], [0, 1, 1, 1], [], []>} : vector<3x256xf32>, vector<3x256xf32>, vector<256x256xf32> -> vector<256x256xf32>
    %cst_4 = arith.constant 2.000000e+00 : f32
    %8 = vector.broadcast %cst_4 : f32 to vector<256x256xf32>
    %9 = arith.mulf %8, %7 : vector<256x256xf32>
    %c0_5 = arith.constant 0 : index
    %c0_6 = arith.constant 0 : index
    %c0_7 = arith.constant 0 : index
    %10 = vector.load %arg3[%c0_5, %c0_6, %c0_7] : memref<1x256x1xf32, #tpu.memory_space<vmem>>, vector<1x256x1xf32>
    %11 = vector.shape_cast %10 : vector<1x256x1xf32> to vector<256x1xf32>
    %12 = vector.broadcast %11 : vector<256x1xf32> to vector<256x256xf32>
    %13 = arith.subf %9, %12 : vector<256x256xf32>
    %c0_8 = arith.constant 0 : index
    %c0_9 = arith.constant 0 : index
    %c0_10 = arith.constant 0 : index
    %14 = vector.load %arg4[%c0_8, %c0_9, %c0_10] : memref<1x1x256xf32, #tpu.memory_space<vmem>>, vector<1x1x256xf32>
    %15 = vector.shape_cast %14 : vector<1x1x256xf32> to vector<1x256xf32>
    %16 = vector.broadcast %15 : vector<1x256xf32> to vector<256x256xf32>
    %17 = arith.subf %13, %16 : vector<256x256xf32>
    %c0_11 = arith.constant 0 : index
    %c0_12 = arith.constant 0 : index
    %c0_13 = arith.constant 0 : index
    %18 = vector.load %arg5[%c0_11, %c0_12, %c0_13] : memref<1x256x256xf32, #tpu.memory_space<vmem>>, vector<1x256x256xf32>
    %19 = vector.shape_cast %18 : vector<1x256x256xf32> to vector<256x256xf32>
    %20 = vector.shape_cast %17 : vector<256x256xf32> to vector<1x256x256xf32>
    tpu.vector_store %arg5[%c0_11, %c0_12, %c0_13], %20 {strides = array<i32>} : memref<1x256x256xf32, #tpu.memory_space<vmem>>, vector<1x256x256xf32>,
    return
  }
  func.func @transform_0(%arg0: i32, %arg1: i32) -> (i32, i32, i32) {
    %c0_i32 = arith.constant 0 : i32
    %c0_i32_0 = arith.constant 0 : i32
    %c0_i32_1 = arith.constant 0 : i32
    return %arg0, %c0_i32, %c0_i32_0 : i32, i32, i32
  }
  func.func @transform_1(%arg0: i32, %arg1: i32) -> (i32, i32, i32) {
    %c0_i32 = arith.constant 0 : i32
    %c0_i32_0 = arith.constant 0 : i32
    return %arg0, %arg1, %c0_i32 : i32, i32, i32
  }
  func.func @transform_2(%arg0: i32, %arg1: i32) -> (i32, i32, i32) {
    %c0_i32 = arith.constant 0 : i32
    %c0_i32_0 = arith.constant 0 : i32
    %c0_i32_1 = arith.constant 0 : i32
    return %arg0, %c0_i32, %c0_i32_0 : i32, i32, i32
  }
  func.func @transform_3(%arg0: i32, %arg1: i32) -> (i32, i32, i32) {
    %c0_i32 = arith.constant 0 : i32
    %c0_i32_0 = arith.constant 0 : i32
    return %arg0, %arg1, %c0_i32 : i32, i32, i32
  }
}

module attributes {stable_mosaic.version = 11 : i64} {
  func.func @_edge_conv_kernel(%arg0: i32, %arg1: i32, %arg2: memref<1x3x256xbf16, #tpu.memory_space<vmem>>, %arg3: memref<1x1x3x2048xbf16, #tpu.memory_space<vmem>>, %arg4: memref<64x3xbf16, #tpu.memory_space<vmem>>, %arg5: memref<64x3xbf16, #tpu.memory_space<vmem>>, %arg6: memref<64x1xf32, #tpu.memory_space<vmem>>, %arg7: memref<64x64xbf16, #tpu.memory_space<vmem>>, %arg8: memref<64x1xf32, #tpu.memory_space<vmem>>, %arg9: memref<1x64x256xf32, #tpu.memory_space<vmem>>) attributes {dimension_semantics = [#tpu.dimension_semantics<parallel>, #tpu.dimension_semantics<parallel>], iteration_bounds = array<i64: 2, 1>, scalar_prefetch = 0 : i64, scratch_operands = 0 : i64, tpu.core_type = #tpu.core_type<tc>, window_params = [{transform_indices = @transform_0, window_bounds = array<i64: 1, 3, 256>}, {transform_indices = @transform_1, window_bounds = array<i64: 1, 1, 3, 2048>}, {pipeline_mode = #tpu.pipeline_mode<synchronous>, transform_indices = @transform_2, window_bounds = array<i64: 64, 3>}, {pipeline_mode = #tpu.pipeline_mode<synchronous>, transform_indices = @transform_3, window_bounds = array<i64: 64, 3>}, {pipeline_mode = #tpu.pipeline_mode<synchronous>, transform_indices = @transform_4, window_bounds = array<i64: 64, 1>}, {pipeline_mode = #tpu.pipeline_mode<synchronous>, transform_indices = @transform_5, window_bounds = array<i64: 64, 64>}, {pipeline_mode = #tpu.pipeline_mode<synchronous>, transform_indices = @transform_6, window_bounds = array<i64: 64, 1>}, {transform_indices = @transform_7, window_bounds = array<i64: 1, 64, 256>}]} {
    %c0 = arith.constant 0 : index
    %c0_0 = arith.constant 0 : index
    %c0_1 = arith.constant 0 : index
    %0 = vector.load %arg2[%c0, %c0_0, %c0_1] : memref<1x3x256xbf16, #tpu.memory_space<vmem>>, vector<1x3x256xbf16>
    %1 = vector.shape_cast %0 : vector<1x3x256xbf16> to vector<3x256xbf16>
    %c0_2 = arith.constant 0 : index
    %c0_3 = arith.constant 0 : index
    %c0_4 = arith.constant 0 : index
    %c0_5 = arith.constant 0 : index
    %2 = vector.load %arg3[%c0_2, %c0_3, %c0_4, %c0_5] : memref<1x1x3x2048xbf16, #tpu.memory_space<vmem>>, vector<1x1x3x2048xbf16>
    %3 = vector.shape_cast %2 : vector<1x1x3x2048xbf16> to vector<3x2048xbf16>
    %c0_6 = arith.constant 0 : index
    %c0_7 = arith.constant 0 : index
    %4 = vector.load %arg4[%c0_6, %c0_7] : memref<64x3xbf16, #tpu.memory_space<vmem>>, vector<64x3xbf16>
    %cst = arith.constant dense<0.000000e+00> : vector<64x256xf32>
    %5 = tpu.matmul %4, %1, %cst {dimension_numbers = #tpu.dot_dimension_numbers<[1], [0], [0], [1], [0, 0, 1, 1], [], []>} : vector<64x3xbf16>, vector<3x256xbf16>, vector<64x256xf32> -> vector<64x256xf32>
    %c0_8 = arith.constant 0 : index
    %c0_9 = arith.constant 0 : index
    %6 = vector.load %arg6[%c0_8, %c0_9] : memref<64x1xf32, #tpu.memory_space<vmem>>, vector<64x1xf32>
    %7 = vector.broadcast %6 : vector<64x1xf32> to vector<64x256xf32>
    %8 = arith.addf %5, %7 : vector<64x256xf32>
    %c0_10 = arith.constant 0 : index
    %c0_11 = arith.constant 0 : index
    %9 = vector.load %arg5[%c0_10, %c0_11] : memref<64x3xbf16, #tpu.memory_space<vmem>>, vector<64x3xbf16>
    %cst_12 = arith.constant dense<0.000000e+00> : vector<64x2048xf32>
    %10 = tpu.matmul %9, %3, %cst_12 {dimension_numbers = #tpu.dot_dimension_numbers<[1], [0], [0], [1], [0, 0, 1, 1], [], []>} : vector<64x3xbf16>, vector<3x2048xbf16>, vector<64x2048xf32> -> vector<64x2048xf32>
    %11 = tpu.concatenate %8, %8, %8, %8, %8, %8, %8, %8 in 1 : vector<64x256xf32>, vector<64x256xf32>, vector<64x256xf32>, vector<64x256xf32>, vector<64x256xf32>, vector<64x256xf32>, vector<64x256xf32>, vector<64x256xf32> -> vector<64x2048xf32>
    %12 = arith.addf %10, %11 : vector<64x2048xf32>
    %cst_13 = arith.constant 0.000000e+00 : f32
    %13 = vector.broadcast %cst_13 : f32 to vector<64x2048xf32>
    %14 = arith.cmpf oge, %12, %13 : vector<64x2048xf32>
    %cst_14 = arith.constant 2.000000e-01 : f32
    %15 = vector.broadcast %cst_14 : f32 to vector<64x2048xf32>
    %16 = arith.mulf %15, %12 : vector<64x2048xf32>
    %17 = arith.select %14, %12, %16 : vector<64x2048xi1>, vector<64x2048xf32>
    %c0_15 = arith.constant 0 : index
    %c0_16 = arith.constant 0 : index
    %18 = vector.load %arg7[%c0_15, %c0_16] : memref<64x64xbf16, #tpu.memory_space<vmem>>, vector<64x64xbf16>
    %19 = arith.truncf %17 : vector<64x2048xf32> to vector<64x2048xbf16>
    %cst_17 = arith.constant dense<0.000000e+00> : vector<64x2048xf32>
    %20 = tpu.matmul %18, %19, %cst_17 {dimension_numbers = #tpu.dot_dimension_numbers<[1], [0], [0], [1], [0, 0, 1, 1], [], []>} : vector<64x64xbf16>, vector<64x2048xbf16>, vector<64x2048xf32> -> vector<64x2048xf32>
    %c0_18 = arith.constant 0 : index
    %c0_19 = arith.constant 0 : index
    %21 = vector.load %arg8[%c0_18, %c0_19] : memref<64x1xf32, #tpu.memory_space<vmem>>, vector<64x1xf32>
    %22 = vector.broadcast %21 : vector<64x1xf32> to vector<64x2048xf32>
    %23 = arith.addf %20, %22 : vector<64x2048xf32>
    %cst_20 = arith.constant 0.000000e+00 : f32
    %24 = vector.broadcast %cst_20 : f32 to vector<64x2048xf32>
    %25 = arith.cmpf oge, %23, %24 : vector<64x2048xf32>
    %cst_21 = arith.constant 2.000000e-01 : f32
    %26 = vector.broadcast %cst_21 : f32 to vector<64x2048xf32>
    %27 = arith.mulf %26, %23 : vector<64x2048xf32>
    %28 = arith.select %25, %23, %27 : vector<64x2048xi1>, vector<64x2048xf32>
    %29 = vector.extract_strided_slice %28 {offsets = [0, 0], sizes = [64, 256], strides = [1, 1]} : vector<64x2048xf32> to vector<64x256xf32>
    %30 = vector.extract_strided_slice %28 {offsets = [0, 256], sizes = [64, 256], strides = [1, 1]} : vector<64x2048xf32> to vector<64x256xf32>
    %31 = arith.maximumf %29, %30 : vector<64x256xf32>
    %32 = vector.extract_strided_slice %28 {offsets = [0, 512], sizes = [64, 256], strides = [1, 1]} : vector<64x2048xf32> to vector<64x256xf32>
    %33 = arith.maximumf %31, %32 : vector<64x256xf32>
    %34 = vector.extract_strided_slice %28 {offsets = [0, 768], sizes = [64, 256], strides = [1, 1]} : vector<64x2048xf32> to vector<64x256xf32>
    %35 = arith.maximumf %33, %34 : vector<64x256xf32>
    %36 = vector.extract_strided_slice %28 {offsets = [0, 1024], sizes = [64, 256], strides = [1, 1]} : vector<64x2048xf32> to vector<64x256xf32>
    %37 = arith.maximumf %35, %36 : vector<64x256xf32>
    %38 = vector.extract_strided_slice %28 {offsets = [0, 1280], sizes = [64, 256], strides = [1, 1]} : vector<64x2048xf32> to vector<64x256xf32>
    %39 = arith.maximumf %37, %38 : vector<64x256xf32>
    %40 = vector.extract_strided_slice %28 {offsets = [0, 1536], sizes = [64, 256], strides = [1, 1]} : vector<64x2048xf32> to vector<64x256xf32>
    %41 = arith.maximumf %39, %40 : vector<64x256xf32>
    %42 = vector.extract_strided_slice %28 {offsets = [0, 1792], sizes = [64, 256], strides = [1, 1]} : vector<64x2048xf32> to vector<64x256xf32>
    %43 = arith.maximumf %41, %42 : vector<64x256xf32>
    %c0_22 = arith.constant 0 : index
    %c0_23 = arith.constant 0 : index
    %c0_24 = arith.constant 0 : index
    %44 = vector.load %arg9[%c0_22, %c0_23, %c0_24] : memref<1x64x256xf32, #tpu.memory_space<vmem>>, vector<1x64x256xf32>
    %45 = vector.shape_cast %44 : vector<1x64x256xf32> to vector<64x256xf32>
    %46 = vector.shape_cast %43 : vector<64x256xf32> to vector<1x64x256xf32>
    tpu.vector_store %arg9[%c0_22, %c0_23, %c0_24], %46 {strides = array<i32>} : memref<1x64x256xf32, #tpu.memory_space<vmem>>, vector<1x64x256xf32>,
    return
  }
  func.func @transform_0(%arg0: i32, %arg1: i32) -> (i32, i32, i32) {
    %c0_i32 = arith.constant 0 : i32
    %c0_i32_0 = arith.constant 0 : i32
    return %arg0, %c0_i32, %arg1 : i32, i32, i32
  }
  func.func @transform_1(%arg0: i32, %arg1: i32) -> (i32, i32, i32, i32) {
    %c0_i32 = arith.constant 0 : i32
    %c0_i32_0 = arith.constant 0 : i32
    %c0_i32_1 = arith.constant 0 : i32
    return %arg0, %arg1, %c0_i32, %c0_i32_0 : i32, i32, i32, i32
  }
  func.func @transform_2(%arg0: i32, %arg1: i32) -> (i32, i32) {
    %c0_i32 = arith.constant 0 : i32
    %c0_i32_0 = arith.constant 0 : i32
    %c0_i32_1 = arith.constant 0 : i32
    return %c0_i32, %c0_i32_0 : i32, i32
  }
  func.func @transform_3(%arg0: i32, %arg1: i32) -> (i32, i32) {
    %c0_i32 = arith.constant 0 : i32
    %c0_i32_0 = arith.constant 0 : i32
    %c0_i32_1 = arith.constant 0 : i32
    return %c0_i32, %c0_i32_0 : i32, i32
  }
  func.func @transform_4(%arg0: i32, %arg1: i32) -> (i32, i32) {
    %c0_i32 = arith.constant 0 : i32
    %c0_i32_0 = arith.constant 0 : i32
    %c0_i32_1 = arith.constant 0 : i32
    return %c0_i32, %c0_i32_0 : i32, i32
  }
  func.func @transform_5(%arg0: i32, %arg1: i32) -> (i32, i32) {
    %c0_i32 = arith.constant 0 : i32
    %c0_i32_0 = arith.constant 0 : i32
    %c0_i32_1 = arith.constant 0 : i32
    return %c0_i32, %c0_i32_0 : i32, i32
  }
  func.func @transform_6(%arg0: i32, %arg1: i32) -> (i32, i32) {
    %c0_i32 = arith.constant 0 : i32
    %c0_i32_0 = arith.constant 0 : i32
    %c0_i32_1 = arith.constant 0 : i32
    return %c0_i32, %c0_i32_0 : i32, i32
  }
  func.func @transform_7(%arg0: i32, %arg1: i32) -> (i32, i32, i32) {
    %c0_i32 = arith.constant 0 : i32
    %c0_i32_0 = arith.constant 0 : i32
    return %arg0, %c0_i32, %arg1 : i32, i32, i32
  }
}

</mosaic_0001>

<llo_original>
// kernel: edge_conv_forward.2
$region0: #{edge_conv_forward.2}
  #allocation0 [shape = 'u32[]', space=smem, size = 0x4, offset = 0x4, fixed_abs, tag = 'smem constant byte address 0x4 - core index']
  #allocation1 [shape = 'u32[144,128]{1,0:T(1,128)}', space=vmem, size = 0x12000, scoped, tag = 'internal scratch']
  %s0 = inlined_call_operand.vmem [shape: f32[2,3,256], index: 0, kind: input, shape index: {}]
  %s1 = inlined_call_operand.vmem [shape: f32[2,256,1], index: 1, kind: input, shape index: {}]
  %s2 = inlined_call_operand.vmem [shape: f32[2,1,256], index: 2, kind: input, shape index: {}]
  %s3 = inlined_call_operand.vmem [shape: f32[2,256,256], index: 3, kind: output, shape index: {}]
  %s4 = sld [smem:[#allocation0]]
  $region45: #{edge_conv_forward.2} parent=0
    _
  %s6 = ssub.s32 1, %s4
  %s7 = scalar_select 0, %s6, %s4
  loop: start=0, step=1, limit=4
  $region2: #{edge_conv_forward.2} parent=0 // loop_pre_header
    _
  $region3: #{edge_conv_forward.2} parent=0 // loop_header
    %s9 = sphi 0, %s13
    %p10 = scmp.ge.s32.totalorder %s9, 4
    %s16 = sphi 0, %s28
    %s17 = sphi 0, %s24
    %s18 = sphi 0, %s16
    %s19 = sphi 0, %s17
    %s20 = sphi 0, %s18
    %s21 = sphi 0, %s19
    %s31 = sphi 0, %s33
    %s34 = sphi 0, %s31
    %s35 = sphi 0, %s34
    %s51 = sphi 0, %s35
    %s59 = sphi 0, %s61
    %s62 = sphi 0, %s59
    %s63 = sphi 0, %s62
    %s79 = sphi 0, %s63
    %s85 = sphi 0, %s87
    %s88 = sphi 0, %s85
    %s89 = sphi 0, %s88
    %s105 = sphi 0, %s89
    %s113 = sphi 0, %s115
    %s116 = sphi 0, %s113
    %s117 = sphi 0, %s116
    %s133 = sphi 0, %s117
  $region4: #{edge_conv_forward.2} parent=0 // loop_header_branch
    %12 = sbr.rel (%p10) target = $region8
  $region5: #{edge_conv_forward.2} parent=0 // loop_body
    %s14 = ssub.s32 %s9, 1
    %s15 = ssub.s32 %s9, 2
    %s22 = sadd.s32 1, %s17
    %p23 = scmp.ge.s32.totalorder %s22, 1
    %s24 = scalar_select %p23, 0, %s22
    %s25 = sadd.s32 1, %s16
    %s26 = scalar_select %p23, %s25, %s16
    %p27 = scmp.ge.s32.totalorder %s26, 2
    %s28 = scalar_select %p27, 0, %s26
    %s29 = ssub.s32 %s16, %s28
    %p30 = scmp.eq.s32.totalorder %s29, 0
    %s32 = sadd.s32 %s31, 1
    %s33 = scalar_select %p30, %s31, %s32
    %p36 = pneg %p30
    %p37 = scmp.eq.s32.totalorder %s9, 1
    %p38 = por %p36, %p37
    %p39 = scmp.ne.s32.totalorder %s31, %s34
    %p40 = scmp.eq.s32.totalorder %s9, 0
    %p41 = por %p39, %p40
    %p42 = scmp.ne.s32.totalorder %s31, %s34
    %p43 = scmp.eq.s32.totalorder %s14, 1
    %p44 = por %p42, %p43
    %p45 = scmp.ne.s32.totalorder %s34, %s35
    %p46 = scmp.eq.s32.totalorder %s14, 0
    %p47 = por %p45, %p46
    %p48 = scmp.ne.s32.totalorder %s34, %s35
    %p49 = scmp.eq.s32.totalorder %s15, 1
    %p50 = por %p48, %p49
    %p52 = scmp.ne.s32.totalorder %s35, %s51
    %p53 = scmp.eq.s32.totalorder %s15, 0
    %p54 = por %p52, %p53
    %s55 = ssub.s32 %s16, %s28
    %s56 = ssub.s32 %s17, %s24
    %s57 = sor.u32 %s55, %s56
    %p58 = scmp.eq.s32.totalorder %s57, 0
    %s60 = sadd.s32 %s59, 1
    %s61 = scalar_select %p58, %s59, %s60
    %p64 = pneg %p58
    %p65 = scmp.eq.s32.totalorder %s9, 1
    %p66 = por %p64, %p65
    %p67 = scmp.ne.s32.totalorder %s59, %s62
    %p68 = scmp.eq.s32.totalorder %s9, 0
    %p69 = por %p67, %p68
    %p70 = scmp.ne.s32.totalorder %s59, %s62
    %p71 = scmp.eq.s32.totalorder %s14, 1
    %p72 = por %p70, %p71
    %p73 = scmp.ne.s32.totalorder %s62, %s63
    %p74 = scmp.eq.s32.totalorder %s14, 0
    %p75 = por %p73, %p74
    %p76 = scmp.ne.s32.totalorder %s62, %s63
    %p77 = scmp.eq.s32.totalorder %s15, 1
    %p78 = por %p76, %p77
    %p80 = scmp.ne.s32.totalorder %s63, %s79
    %p81 = scmp.eq.s32.totalorder %s15, 0
    %p82 = por %p80, %p81
    %s83 = ssub.s32 %s16, %s28
    %p84 = scmp.eq.s32.totalorder %s83, 0
    %s86 = sadd.s32 %s85, 1
    %s87 = scalar_select %p84, %s85, %s86
    %p90 = pneg %p84
    %p91 = scmp.eq.s32.totalorder %s9, 1
    %p92 = por %p90, %p91
    %p93 = scmp.ne.s32.totalorder %s85, %s88
    %p94 = scmp.eq.s32.totalorder %s9, 0
    %p95 = por %p93, %p94
    %p96 = scmp.ne.s32.totalorder %s85, %s88
    %p97 = scmp.eq.s32.totalorder %s14, 1
    %p98 = por %p96, %p97
    %p99 = scmp.ne.s32.totalorder %s88, %s89
    %p100 = scmp.eq.s32.totalorder %s14, 0
    %p101 = por %p99, %p100
    %p102 = scmp.ne.s32.totalorder %s88, %s89
    %p103 = scmp.eq.s32.totalorder %s15, 1
    %p104 = por %p102, %p103
    %p106 = scmp.ne.s32.totalorder %s89, %s105
    %p107 = scmp.eq.s32.totalorder %s15, 0
    %p108 = por %p106, %p107
    %s109 = ssub.s32 %s16, %s28
    %s110 = ssub.s32 %s17, %s24
    %s111 = sor.u32 %s109, %s110
    %p112 = scmp.eq.s32.totalorder %s111, 0
    %s114 = sadd.s32 %s113, 1
    %s115 = scalar_select %p112, %s113, %s114
    %p118 = pneg %p112
    %p119 = scmp.eq.s32.totalorder %s9, 1
    %p120 = por %p118, %p119
    %p121 = scmp.ne.s32.totalorder %s113, %s116
    %p122 = scmp.eq.s32.totalorder %s9, 0
    %p123 = por %p121, %p122
    %p124 = scmp.ne.s32.totalorder %s113, %s116
    %p125 = scmp.eq.s32.totalorder %s14, 1
    %p126 = por %p124, %p125
    %p127 = scmp.ne.s32.totalorder %s116, %s117
    %p128 = scmp.eq.s32.totalorder %s14, 0
    %p129 = por %p127, %p128
    %p130 = scmp.ne.s32.totalorder %s116, %s117
    %p131 = scmp.eq.s32.totalorder %s15, 1
    %p132 = por %p130, %p131
    %p134 = scmp.ne.s32.totalorder %s117, %s133
    %p135 = scmp.eq.s32.totalorder %s15, 0
    %p136 = por %p134, %p135
    %p137 = scmp.le.s32.totalorder 1, %s9
    %p138 = scmp.lt.s32.totalorder %s9, 3
    %p139 = pnand %p137, %p138
    %p140 = pneg %p139
    // Predicated region
    $region9: #{edge_conv_forward.2} parent=5 // pred_check
      _
    $region10: #{edge_conv_forward.2} parent=5 // pred_check_branch
      %142 = sbr.rel (%p139) target = $region12
    $region11: #{edge_conv_forward.2} parent=5 // pred_region
      %s143 = ssub.s32 %s9, 1
    $region12: #{edge_conv_forward.2} parent=5 // pred_fallthru
      _
    %p144 = scmp.lt.s32.totalorder %s9, 2
    // Predicated region
    $region13: #{edge_conv_forward.2} parent=5 // pred_check
      %p145 = pneg %p144
    $region14: #{edge_conv_forward.2} parent=5 // pred_check_branch
      %147 = sbr.rel (%p145) target = $region16
    $region15: #{edge_conv_forward.2} parent=5 // pred_region
      // Predicated region
      $region17: #{edge_conv_forward.2} parent=15 // pred_check
        %p148 = pneg %p41
      $region18: #{edge_conv_forward.2} parent=15 // pred_check_branch
        %150 = sbr.rel (%p148) target = $region20
      $region19: #{edge_conv_forward.2} parent=15 // pred_region
        %p151 = scmp.lt.s32.totalorder %s16, 1
        %s152 = scalar_select %p151, %s16, 1
        %s153 = smul.addr %s152, 2
        %s154 = smul.addr %s153, 4
        %s155 = scalar_lea.vmem %s0, %s154
      $region20: #{edge_conv_forward.2} parent=15 // pred_fallthru
        _
      // Predicated region
      $region21: #{edge_conv_forward.2} parent=15 // pred_check
        %p156 = pneg %p69
      $region22: #{edge_conv_forward.2} parent=15 // pred_check_branch
        %158 = sbr.rel (%p156) target = $region24
      $region23: #{edge_conv_forward.2} parent=15 // pred_region
        %s159 = smul.u32 32, %s17
        %p160 = scmp.lt.s32.totalorder %s16, 1
        %s161 = scalar_select %p160, %s16, 1
        %p162 = scmp.lt.s32.totalorder %s159, 31
        %s163 = scalar_select %p162, %s159, 31
        %s164 = smul.addr %s161, 32
        %s165 = sadd.s32 %s163, %s164
        %s166 = smul.addr %s165, 8
        %s167 = scalar_lea.vmem %s1, %s166
        %s168 = smul.u32 32, %s17
      $region24: #{edge_conv_forward.2} parent=15 // pred_fallthru
        _
      // Predicated region
      $region25: #{edge_conv_forward.2} parent=15 // pred_check
        %p169 = pneg %p95
      $region26: #{edge_conv_forward.2} parent=15 // pred_check_branch
        %171 = sbr.rel (%p169) target = $region28
      $region27: #{edge_conv_forward.2} parent=15 // pred_region
        %p172 = scmp.lt.s32.totalorder %s16, 1
        %s173 = scalar_select %p172, %s16, 1
        %s174 = smul.addr %s173, 2
        %s175 = scalar_lea.vmem %s2, %s174
      $region28: #{edge_conv_forward.2} parent=15 // pred_fallthru
        _
    $region16: #{edge_conv_forward.2} parent=5 // pred_fallthru
      _
    %p176 = scmp.le.s32.totalorder 1, %s9
    %p177 = scmp.lt.s32.totalorder %s9, 3
    %p178 = pnand %p176, %p177
    %p179 = pneg %p178
    // Predicated region
    $region29: #{edge_conv_forward.2} parent=5 // pred_check
      _
    $region30: #{edge_conv_forward.2} parent=5 // pred_check_branch
      %181 = sbr.rel (%p178) target = $region32
    $region31: #{edge_conv_forward.2} parent=5 // pred_region
      %s182 = ssub.s32 %s9, 1
      %p183 = scmp.lt.s32.totalorder %s18, 1
      %s184 = scalar_select %p183, %s18, 1
      %s185 = smul.addr %s184, 2
      %s186 = smul.addr %s185, 4
      %s187 = scalar_lea.vmem %s0, %s186
      %p188 = pneg %p47
      %p189 = pneg %p44
      %s190 = smul.u32 32, %s19
      %p191 = scmp.lt.s32.totalorder %s18, 1
      %s192 = scalar_select %p191, %s18, 1
      %p193 = scmp.lt.s32.totalorder %s190, 31
      %s194 = scalar_select %p193, %s190, 31
      %s195 = smul.addr %s192, 32
      %s196 = sadd.s32 %s194, %s195
      %s197 = smul.addr %s196, 8
      %s198 = scalar_lea.vmem %s1, %s197
      %p199 = pneg %p75
      %p200 = pneg %p72
      %p201 = scmp.lt.s32.totalorder %s18, 1
      %s202 = scalar_select %p201, %s18, 1
      %s203 = smul.addr %s202, 2
      %s204 = scalar_lea.vmem %s2, %s203
      %p205 = pneg %p101
      %p206 = pneg %p98
      %p207 = pneg %p129
      %p208 = pneg %p126
      %s209 = smul.u32 32, %s19
      %p210 = scmp.lt.s32.totalorder %s18, 1
      %s211 = scalar_select %p210, %s18, 1
      %p212 = scmp.lt.s32.totalorder %s209, 31
      %s213 = scalar_select %p212, %s209, 31
      %s214 = smul.addr %s213, 2
      %s215 = smul.addr %s211, 64
      %s216 = sadd.s32 %s214, %s215
      %s217 = smul.addr %s216, 8
      %s218 = scalar_lea.vmem %s3, %s217
      %p219 = scmp.lt.s32.totalorder %s18, 1
      %s220 = scalar_select %p219, %s18, 1
      %s221 = smul.addr %s220, 2
      %s222 = smul.addr %s221, 4
      %s223 = scalar_lea.vmem %s0, %s222
      %s224 = smul.u32 32, %s19
      %p225 = scmp.lt.s32.totalorder %s18, 1
      %s226 = scalar_select %p225, %s18, 1
      %p227 = scmp.lt.s32.totalorder %s224, 31
      %s228 = scalar_select %p227, %s224, 31
      %s229 = smul.addr %s226, 32
      %s230 = sadd.s32 %s228, %s229
      %s231 = smul.addr %s230, 8
      %s232 = scalar_lea.vmem %s1, %s231
      %s233 = smul.u32 32, %s19
      %p234 = scmp.lt.s32.totalorder %s18, 1
      %s235 = scalar_select %p234, %s18, 1
      %s236 = smul.addr %s235, 2
      %s237 = scalar_lea.vmem %s2, %s236
      %s238 = smul.u32 32, %s19
      %p239 = scmp.lt.s32.totalorder %s18, 1
      %s240 = scalar_select %p239, %s18, 1
      %p241 = scmp.lt.s32.totalorder %s238, 31
      %s242 = scalar_select %p241, %s238, 31
      %s243 = smul.addr %s242, 2
      %s244 = smul.addr %s240, 64
      %s245 = sadd.s32 %s243, %s244
      %s246 = smul.addr %s245, 8
      %s247 = scalar_lea.vmem %s3, %s246
      %s248 = smul.u32 32, %s19
      %s249 = smul.u32 %s19, 256
      %v250 = vld [vmem:[%s223] sm:$0x77]
      %s251 = sshra.s32 %s249, 7
      %s252 = sand.u32 %s249, 127
      %s253 = smul.addr %s251, 4
      %s254 = scalar_lea.vmem %s223, %s253
      %v255 = vld [vmem:[%s254] sm:$0x77]
      %v257 = vcombine.high %v255, %v255
      %259 = vxpose.xlu0.b32.start [1/16] %v255, 128
      %260 = vxpose.xlu0.b32.cont [2/16] 0.0, 128
      %261 = vxpose.xlu0.b32.cont [3/16] 0.0, 128
      %262 = vxpose.xlu0.b32.cont [4/16] 0.0, 128
      %263 = vxpose.xlu0.b32.cont [5/16] 0.0, 128
      %264 = vxpose.xlu0.b32.cont [6/16] 0.0, 128
      %265 = vxpose.xlu0.b32.cont [7/16] 0.0, 128
      %266 = vxpose.xlu0.b32.cont [8/16] 0.0, 128
      %267 = vxpose.xlu0.b32.cont [9/16] 0.0, 128
      %268 = vxpose.xlu0.b32.cont [10/16] 0.0, 128
      %269 = vxpose.xlu0.b32.cont [11/16] 0.0, 128
      %270 = vxpose.xlu0.b32.cont [12/16] 0.0, 128
      %271 = vxpose.xlu0.b32.cont [13/16] 0.0, 128
      %272 = vxpose.xlu0.b32.cont [14/16] 0.0, 128
      %273 = vxpose.xlu0.b32.cont [15/16] 0.0, 128
      %274 = vxpose.xlu0.b32.end [16/16] 0.0, 128
      %v275 = vpop.trf.xlu0
      %v276 = vpop.trf.xlu0
      %v277 = vpop.trf.xlu0
      %v278 = vpop.trf.xlu0
      %v279 = vpop.trf.xlu0
      %v280 = vpop.trf.xlu0
      %v281 = vpop.trf.xlu0
      %v282 = vpop.trf.xlu0
      %v283 = vpop.trf.xlu0
      %v284 = vpop.trf.xlu0
      %v285 = vpop.trf.xlu0
      %v286 = vpop.trf.xlu0
      %v287 = vpop.trf.xlu0
      %v288 = vpop.trf.xlu0
      %v289 = vpop.trf.xlu0
      %v290 = vpop.trf.xlu0
      %291 = vxpose.xlu0.b32.start [1/16] %v257, 128
      %292 = vxpose.xlu0.b32.cont [2/16] 0.0, 128
      %293 = vxpose.xlu0.b32.cont [3/16] 0.0, 128
      %294 = vxpose.xlu0.b32.cont [4/16] 0.0, 128
      %295 = vxpose.xlu0.b32.cont [5/16] 0.0, 128
      %296 = vxpose.xlu0.b32.cont [6/16] 0.0, 128
      %297 = vxpose.xlu0.b32.cont [7/16] 0.0, 128
      %298 = vxpose.xlu0.b32.cont [8/16] 0.0, 128
      %299 = vxpose.xlu0.b32.cont [9/16] 0.0, 128
      %300 = vxpose.xlu0.b32.cont [10/16] 0.0, 128
      %301 = vxpose.xlu0.b32.cont [11/16] 0.0, 128
      %302 = vxpose.xlu0.b32.cont [12/16] 0.0, 128
      %303 = vxpose.xlu0.b32.cont [13/16] 0.0, 128
      %304 = vxpose.xlu0.b32.cont [14/16] 0.0, 128
      %305 = vxpose.xlu0.b32.cont [15/16] 0.0, 128
      %306 = vxpose.xlu0.b32.end [16/16] 0.0, 128
      %v307 = vpop.trf.xlu0
      %v308 = vpop.trf.xlu0
      %v309 = vpop.trf.xlu0
      %v310 = vpop.trf.xlu0
      %v311 = vpop.trf.xlu0
      %v312 = vpop.trf.xlu0
      %v313 = vpop.trf.xlu0
      %v314 = vpop.trf.xlu0
      %v315 = vpop.trf.xlu0
      %v316 = vpop.trf.xlu0
      %v317 = vpop.trf.xlu0
      %v318 = vpop.trf.xlu0
      %v319 = vpop.trf.xlu0
      %v320 = vpop.trf.xlu0
      %v321 = vpop.trf.xlu0
      %v322 = vpop.trf.xlu0
      %v324 = vcombine.high %v250, %v250
      %vm325 = vcmask 23552
      %v327 = vsel %vm325, %v275, 0
      %v330 = vsel %vm325, %v276, 0
      %v333 = vsel %vm325, %v277, 0
      %v336 = vsel %vm325, %v278, 0
      %v339 = vsel %vm325, %v279, 0
      %v342 = vsel %vm325, %v280, 0
      %v345 = vsel %vm325, %v281, 0
      %v348 = vsel %vm325, %v282, 0
      %v351 = vsel %vm325, %v283, 0
      %v354 = vsel %vm325, %v284, 0
      %v357 = vsel %vm325, %v285, 0
      %v360 = vsel %vm325, %v286, 0
      %v363 = vsel %vm325, %v287, 0
      %v366 = vsel %vm325, %v288, 0
      %v369 = vsel %vm325, %v289, 0
      %v372 = vsel %vm325, %v290, 0
      %v375 = vsel %vm325, %v307, 0
      %v378 = vsel %vm325, %v308, 0
      %v381 = vsel %vm325, %v309, 0
      %v384 = vsel %vm325, %v310, 0
      %v387 = vsel %vm325, %v311, 0
      %v390 = vsel %vm325, %v312, 0
      %v393 = vsel %vm325, %v313, 0
      %v396 = vsel %vm325, %v314, 0
      %v399 = vsel %vm325, %v315, 0
      %v402 = vsel %vm325, %v316, 0
      %v405 = vsel %vm325, %v317, 0
      %v408 = vsel %vm325, %v318, 0
      %v411 = vsel %vm325, %v319, 0
      %v414 = vsel %vm325, %v320, 0
      %v417 = vsel %vm325, %v321, 0
      %v420 = vsel %vm325, %v322, 0
      %vm422 = vcmask 1042432
      %v423 = vsel %vm422, %v250, 0
      %v425 = vsel %vm422, %v324, 0
      %427 = vmatprep.subr.mxu0 %v425
      %428 = vmatpush1.msra.mxu0 %v423
      %429 = vmatprep.subr.mxu0 0.0
      %430 = vmatpush1.msra.mxu0 0.0
      %431 = vmatprep.subr.mxu0 0.0
      %432 = vmatpush1.msra.mxu0 0.0
      %433 = vmatprep.subr.mxu0 0.0
      %434 = vmatpush1.msra.mxu0 0.0
      %435 = vmatprep.subr.mxu0 0.0
      %436 = vmatpush1.msra.mxu0 0.0
      %437 = vmatprep.subr.mxu0 0.0
      %438 = vmatpush1.msra.mxu0 0.0
      %439 = vmatprep.subr.mxu0 0.0
      %440 = vmatpush1.msra.mxu0 0.0
      %441 = vmatprep.subr.mxu0 0.0
      %442 = vmatpush1.msra.mxu0 0.0
      %443 = vmatprep.subr.mxu0 0.0
      %444 = vmatpush1.msra.mxu0 0.0
      %445 = vmatprep.subr.mxu0 0.0
      %446 = vmatpush1.msra.mxu0 0.0
      %447 = vmatprep.subr.mxu0 0.0
      %448 = vmatpush1.msra.mxu0 0.0
      %449 = vmatprep.subr.mxu0 0.0
      %450 = vmatpush1.msra.mxu0 0.0
      %451 = vmatprep.subr.mxu0 0.0
      %452 = vmatpush1.msra.mxu0 0.0
      %453 = vmatprep.subr.mxu0 0.0
      %454 = vmatpush1.msra.mxu0 0.0
      %455 = vmatprep.subr.mxu0 0.0
      %456 = vmatpush1.msra.mxu0 0.0
      %457 = vmatprep.subr.mxu0 0.0
      %458 = vmatpush1.msra.mxu0 0.0
      %459 = vmatprep.subr.mxu0 0.0
      %460 = vmatpush1.msra.mxu0 0.0
      %461 = vmatprep.subr.mxu0 0.0
      %462 = vmatpush1.msra.mxu0 0.0
      %463 = vmatprep.subr.mxu0 0.0
      %464 = vmatpush1.msra.mxu0 0.0
      %465 = vmatprep.subr.mxu0 0.0
      %466 = vmatpush1.msra.mxu0 0.0
      %467 = vmatprep.subr.mxu0 0.0
      %468 = vmatpush1.msra.mxu0 0.0
      %469 = vmatprep.subr.mxu0 0.0
      %470 = vmatpush1.msra.mxu0 0.0
      %471 = vmatprep.subr.mxu0 0.0
      %472 = vmatpush1.msra.mxu0 0.0
      %473 = vmatprep.subr.mxu0 0.0
      %474 = vmatpush1.msra.mxu0 0.0
      %475 = vmatprep.subr.mxu0 0.0
      %476 = vmatpush1.msra.mxu0 0.0
      %477 = vmatprep.subr.mxu0 0.0
      %478 = vmatpush1.msra.mxu0 0.0
      %479 = vmatprep.subr.mxu0 0.0
      %480 = vmatpush1.msra.mxu0 0.0
      %481 = vmatprep.subr.mxu0 0.0
      %482 = vmatpush1.msra.mxu0 0.0
      %483 = vmatprep.subr.mxu0 0.0
      %484 = vmatpush1.msra.mxu0 0.0
      %485 = vmatprep.subr.mxu0 0.0
      %486 = vmatpush1.msra.mxu0 0.0
      %487 = vmatprep.subr.mxu0 0.0
      %488 = vmatpush1.msra.mxu0 0.0
      %489 = vmatprep.subr.mxu0 0.0
      %490 = vmatpush1.msra.mxu0 0.0
      %491 = vmatprep.mubr.f32.mxu0 0.0
      %492 = vmatmul.mubr.f32.gmra.mrb[0].mxu0 %v327
      %v493 = vpop.f32.mrb[0].mxu0
      %v494 = vadd.f32 0.0, %v493
      %v495 = vpop.f32.mrb[0].mxu0
      %v496 = vadd.f32 0.0, %v495
      %497 = vmatprep.mubr.f32.mxu0 0.0
      %498 = vmatmul.mubr.f32.gmra.mrb[0].mxu0 %v330
      %v499 = vpop.f32.mrb[0].mxu0
      %v500 = vadd.f32 0.0, %v499
      %v501 = vpop.f32.mrb[0].mxu0
      %v502 = vadd.f32 0.0, %v501
      %503 = vmatprep.mubr.f32.mxu0 0.0
      %504 = vmatmul.mubr.f32.gmra.mrb[0].mxu0 %v333
      %v505 = vpop.f32.mrb[0].mxu0
      %v506 = vadd.f32 0.0, %v505
      %v507 = vpop.f32.mrb[0].mxu0
      %v508 = vadd.f32 0.0, %v507
      %509 = vmatprep.mubr.f32.mxu0 0.0
      %510 = vmatmul.mubr.f32.gmra.mrb[0].mxu0 %v336
      %v511 = vpop.f32.mrb[0].mxu0
      %v512 = vadd.f32 0.0, %v511
      %v513 = vpop.f32.mrb[0].mxu0
      %v514 = vadd.f32 0.0, %v513
      %515 = vmatprep.mubr.f32.mxu0 0.0
      %516 = vmatmul.mubr.f32.gmra.mrb[0].mxu0 %v339
      %v517 = vpop.f32.mrb[0].mxu0
      %v518 = vadd.f32 0.0, %v517
      %v519 = vpop.f32.mrb[0].mxu0
      %v520 = vadd.f32 0.0, %v519
      %521 = vmatprep.mubr.f32.mxu0 0.0
      %522 = vmatmul.mubr.f32.gmra.mrb[0].mxu0 %v342
      %v523 = vpop.f32.mrb[0].mxu0
      %v524 = vadd.f32 0.0, %v523
      %v525 = vpop.f32.mrb[0].mxu0
      %v526 = vadd.f32 0.0, %v525
      %527 = vmatprep.mubr.f32.mxu0 0.0
      %528 = vmatmul.mubr.f32.gmra.mrb[0].mxu0 %v345
      %v529 = vpop.f32.mrb[0].mxu0
      %v530 = vadd.f32 0.0, %v529
      %v531 = vpop.f32.mrb[0].mxu0
      %v532 = vadd.f32 0.0, %v531
      %533 = vmatprep.mubr.f32.mxu0 0.0
      %534 = vmatmul.mubr.f32.gmra.mrb[0].mxu0 %v348
      %v535 = vpop.f32.mrb[0].mxu0
      %v536 = vadd.f32 0.0, %v535
      %v537 = vpop.f32.mrb[0].mxu0
      %v538 = vadd.f32 0.0, %v537
      %539 = vmatprep.mubr.f32.mxu0 0.0
      %540 = vmatmul.mubr.f32.gmra.mrb[0].mxu0 %v351
      %v541 = vpop.f32.mrb[0].mxu0
      %v542 = vadd.f32 0.0, %v541
      %v543 = vpop.f32.mrb[0].mxu0
      %v544 = vadd.f32 0.0, %v543
      %545 = vmatprep.mubr.f32.mxu0 0.0
      %546 = vmatmul.mubr.f32.gmra.mrb[0].mxu0 %v354
      %v547 = vpop.f32.mrb[0].mxu0
      %v548 = vadd.f32 0.0, %v547
      %v549 = vpop.f32.mrb[0].mxu0
      %v550 = vadd.f32 0.0, %v549
      %551 = vmatprep.mubr.f32.mxu0 0.0
      %552 = vmatmul.mubr.f32.gmra.mrb[0].mxu0 %v357
      %v553 = vpop.f32.mrb[0].mxu0
      %v554 = vadd.f32 0.0, %v553
      %v555 = vpop.f32.mrb[0].mxu0
      %v556 = vadd.f32 0.0, %v555
      %557 = vmatprep.mubr.f32.mxu0 0.0
      %558 = vmatmul.mubr.f32.gmra.mrb[0].mxu0 %v360
      %v559 = vpop.f32.mrb[0].mxu0
      %v560 = vadd.f32 0.0, %v559
      %v561 = vpop.f32.mrb[0].mxu0
      %v562 = vadd.f32 0.0, %v561
      %563 = vmatprep.mubr.f32.mxu0 0.0
      %564 = vmatmul.mubr.f32.gmra.mrb[0].mxu0 %v363
      %v565 = vpop.f32.mrb[0].mxu0
      %v566 = vadd.f32 0.0, %v565
      %v567 = vpop.f32.mrb[0].mxu0
      %v568 = vadd.f32 0.0, %v567
      %569 = vmatprep.mubr.f32.mxu0 0.0
      %570 = vmatmul.mubr.f32.gmra.mrb[0].mxu0 %v366
      %v571 = vpop.f32.mrb[0].mxu0
      %v572 = vadd.f32 0.0, %v571
      %v573 = vpop.f32.mrb[0].mxu0
      %v574 = vadd.f32 0.0, %v573
      %575 = vmatprep.mubr.f32.mxu0 0.0
      %576 = vmatmul.mubr.f32.gmra.mrb[0].mxu0 %v369
      %v577 = vpop.f32.mrb[0].mxu0
      %v578 = vadd.f32 0.0, %v577
      %v579 = vpop.f32.mrb[0].mxu0
      %v580 = vadd.f32 0.0, %v579
      %581 = vmatprep.mubr.f32.mxu0 0.0
      %582 = vmatmul.mubr.f32.gmra.mrb[0].mxu0 %v372
      %v583 = vpop.f32.mrb[0].mxu0
      %v584 = vadd.f32 0.0, %v583
      %v585 = vpop.f32.mrb[0].mxu0
      %v586 = vadd.f32 0.0, %v585
      %587 = vmatprep.mubr.f32.mxu0 0.0
      %588 = vmatmul.mubr.f32.gmra.mrb[0].mxu0 %v375
      %v589 = vpop.f32.mrb[0].mxu0
      %v590 = vadd.f32 0.0, %v589
      %v591 = vpop.f32.mrb[0].mxu0
      %v592 = vadd.f32 0.0, %v591
      %593 = vmatprep.mubr.f32.mxu0 0.0
      %594 = vmatmul.mubr.f32.gmra.mrb[0].mxu0 %v378
      %v595 = vpop.f32.mrb[0].mxu0
      %v596 = vadd.f32 0.0, %v595
      %v597 = vpop.f32.mrb[0].mxu0
      %v598 = vadd.f32 0.0, %v597
      %599 = vmatprep.mubr.f32.mxu0 0.0
      %600 = vmatmul.mubr.f32.gmra.mrb[0].mxu0 %v381
      %v601 = vpop.f32.mrb[0].mxu0
      %v602 = vadd.f32 0.0, %v601
      %v603 = vpop.f32.mrb[0].mxu0
      %v604 = vadd.f32 0.0, %v603
      %605 = vmatprep.mubr.f32.mxu0 0.0
      %606 = vmatmul.mubr.f32.gmra.mrb[0].mxu0 %v384
      %v607 = vpop.f32.mrb[0].mxu0
      %v608 = vadd.f32 0.0, %v607
      %v609 = vpop.f32.mrb[0].mxu0
      %v610 = vadd.f32 0.0, %v609
      %611 = vmatprep.mubr.f32.mxu0 0.0
      %612 = vmatmul.mubr.f32.gmra.mrb[0].mxu0 %v387
      %v613 = vpop.f32.mrb[0].mxu0
      %v614 = vadd.f32 0.0, %v613
      %v615 = vpop.f32.mrb[0].mxu0
      %v616 = vadd.f32 0.0, %v615
      %617 = vmatprep.mubr.f32.mxu0 0.0
      %618 = vmatmul.mubr.f32.gmra.mrb[0].mxu0 %v390
      %v619 = vpop.f32.mrb[0].mxu0
      %v620 = vadd.f32 0.0, %v619
      %v621 = vpop.f32.mrb[0].mxu0
      %v622 = vadd.f32 0.0, %v621
      %623 = vmatprep.mubr.f32.mxu0 0.0
      %624 = vmatmul.mubr.f32.gmra.mrb[0].mxu0 %v393
      %v625 = vpop.f32.mrb[0].mxu0
      %v626 = vadd.f32 0.0, %v625
      %v627 = vpop.f32.mrb[0].mxu0
      %v628 = vadd.f32 0.0, %v627
      %629 = vmatprep.mubr.f32.mxu0 0.0
      %630 = vmatmul.mubr.f32.gmra.mrb[0].mxu0 %v396
      %v631 = vpop.f32.mrb[0].mxu0
      %v632 = vadd.f32 0.0, %v631
      %v633 = vpop.f32.mrb[0].mxu0
      %v634 = vadd.f32 0.0, %v633
      %635 = vmatprep.mubr.f32.mxu0 0.0
      %636 = vmatmul.mubr.f32.gmra.mrb[0].mxu0 %v399
      %v637 = vpop.f32.mrb[0].mxu0
      %v638 = vadd.f32 0.0, %v637
      %v639 = vpop.f32.mrb[0].mxu0
      %v640 = vadd.f32 0.0, %v639
      %641 = vmatprep.mubr.f32.mxu0 0.0
      %642 = vmatmul.mubr.f32.gmra.mrb[0].mxu0 %v402
      %v643 = vpop.f32.mrb[0].mxu0
      %v644 = vadd.f32 0.0, %v643
      %v645 = vpop.f32.mrb[0].mxu0
      %v646 = vadd.f32 0.0, %v645
      %647 = vmatprep.mubr.f32.mxu0 0.0
      %648 = vmatmul.mubr.f32.gmra.mrb[0].mxu0 %v405
      %v649 = vpop.f32.mrb[0].mxu0
      %v650 = vadd.f32 0.0, %v649
      %v651 = vpop.f32.mrb[0].mxu0
      %v652 = vadd.f32 0.0, %v651
      %653 = vmatprep.mubr.f32.mxu0 0.0
      %654 = vmatmul.mubr.f32.gmra.mrb[0].mxu0 %v408
      %v655 = vpop.f32.mrb[0].mxu0
      %v656 = vadd.f32 0.0, %v655
      %v657 = vpop.f32.mrb[0].mxu0
      %v658 = vadd.f32 0.0, %v657
      %659 = vmatprep.mubr.f32.mxu0 0.0
      %660 = vmatmul.mubr.f32.gmra.mrb[0].mxu0 %v411
      %v661 = vpop.f32.mrb[0].mxu0
      %v662 = vadd.f32 0.0, %v661
      %v663 = vpop.f32.mrb[0].mxu0
      %v664 = vadd.f32 0.0, %v663
      %665 = vmatprep.mubr.f32.mxu0 0.0
      %666 = vmatmul.mubr.f32.gmra.mrb[0].mxu0 %v414
      %v667 = vpop.f32.mrb[0].mxu0
      %v668 = vadd.f32 0.0, %v667
      %v669 = vpop.f32.mrb[0].mxu0
      %v670 = vadd.f32 0.0, %v669
      %671 = vmatprep.mubr.f32.mxu0 0.0
      %672 = vmatmul.mubr.f32.gmra.mrb[0].mxu0 %v417
      %v673 = vpop.f32.mrb[0].mxu0
      %v674 = vadd.f32 0.0, %v673
      %v675 = vpop.f32.mrb[0].mxu0
      %v676 = vadd.f32 0.0, %v675
      %677 = vmatprep.mubr.f32.mxu0 0.0
      %678 = vmatmul.mubr.f32.gmra.mrb[0].mxu0 %v420
      %v679 = vpop.f32.mrb[0].mxu0
      %v680 = vadd.f32 0.0, %v679
      %v681 = vpop.f32.mrb[0].mxu0
      %v682 = vadd.f32 0.0, %v681
      %683 = vdwg.mxu0
      %v684 = vmul.f32 %v494, 2.0
      %v685 = vmul.f32 %v496, 2.0
      %v686 = vmul.f32 %v500, 2.0
      %v687 = vmul.f32 %v502, 2.0
      %v688 = vmul.f32 %v506, 2.0
      %v689 = vmul.f32 %v508, 2.0
      %v690 = vmul.f32 %v512, 2.0
      %v691 = vmul.f32 %v514, 2.0
      %v692 = vmul.f32 %v518, 2.0
      %v693 = vmul.f32 %v520, 2.0
      %v694 = vmul.f32 %v524, 2.0
      %v695 = vmul.f32 %v526, 2.0
      %v696 = vmul.f32 %v530, 2.0
      %v697 = vmul.f32 %v532, 2.0
      %v698 = vmul.f32 %v536, 2.0
      %v699 = vmul.f32 %v538, 2.0
      %v700 = vmul.f32 %v542, 2.0
      %v701 = vmul.f32 %v544, 2.0
      %v702 = vmul.f32 %v548, 2.0
      %v703 = vmul.f32 %v550, 2.0
      %v704 = vmul.f32 %v554, 2.0
      %v705 = vmul.f32 %v556, 2.0
      %v706 = vmul.f32 %v560, 2.0
      %v707 = vmul.f32 %v562, 2.0
      %v708 = vmul.f32 %v566, 2.0
      %v709 = vmul.f32 %v568, 2.0
      %v710 = vmul.f32 %v572, 2.0
      %v711 = vmul.f32 %v574, 2.0
      %v712 = vmul.f32 %v578, 2.0
      %v713 = vmul.f32 %v580, 2.0
      %v714 = vmul.f32 %v584, 2.0
      %v715 = vmul.f32 %v586, 2.0
      %v716 = vmul.f32 %v590, 2.0
      %v717 = vmul.f32 %v592, 2.0
      %v718 = vmul.f32 %v596, 2.0
      %v719 = vmul.f32 %v598, 2.0
      %v720 = vmul.f32 %v602, 2.0
      %v721 = vmul.f32 %v604, 2.0
      %v722 = vmul.f32 %v608, 2.0
      %v723 = vmul.f32 %v610, 2.0
      %v724 = vmul.f32 %v614, 2.0
      %v725 = vmul.f32 %v616, 2.0
      %v726 = vmul.f32 %v620, 2.0
      %v727 = vmul.f32 %v622, 2.0
      %v728 = vmul.f32 %v626, 2.0
      %v729 = vmul.f32 %v628, 2.0
      %v730 = vmul.f32 %v632, 2.0
      %v731 = vmul.f32 %v634, 2.0
      %v732 = vmul.f32 %v638, 2.0
      %v733 = vmul.f32 %v640, 2.0
      %v734 = vmul.f32 %v644, 2.0
      %v735 = vmul.f32 %v646, 2.0
      %v736 = vmul.f32 %v650, 2.0
      %v737 = vmul.f32 %v652, 2.0
      %v738 = vmul.f32 %v656, 2.0
      %v739 = vmul.f32 %v658, 2.0
      %v740 = vmul.f32 %v662, 2.0
      %v741 = vmul.f32 %v664, 2.0
      %v742 = vmul.f32 %v668, 2.0
      %v743 = vmul.f32 %v670, 2.0
      %v744 = vmul.f32 %v674, 2.0
      %v745 = vmul.f32 %v676, 2.0
      %v746 = vmul.f32 %v680, 2.0
      %v747 = vmul.f32 %v682, 2.0
      %v748 = vld [vmem:[%s232] sm:$0xff]
      %v749 = vld [vmem:[%s232 + $0x8] sm:$0xff]
      %v750 = vld [vmem:[%s232 + $0x10] sm:$0xff]
      %v751 = vld [vmem:[%s232 + $0x18] sm:$0xff]
      %v752 = vld [vmem:[%s232 + $0x20] sm:$0xff]
      %v753 = vld [vmem:[%s232 + $0x28] sm:$0xff]
      %v754 = vld [vmem:[%s232 + $0x30] sm:$0xff]
      %v755 = vld [vmem:[%s232 + $0x38] sm:$0xff]
      %v756 = vld [vmem:[%s232 + $0x40] sm:$0xff]
      %v757 = vld [vmem:[%s232 + $0x48] sm:$0xff]
      %v758 = vld [vmem:[%s232 + $0x50] sm:$0xff]
      %v759 = vld [vmem:[%s232 + $0x58] sm:$0xff]
      %v760 = vld [vmem:[%s232 + $0x60] sm:$0xff]
      %v761 = vld [vmem:[%s232 + $0x68] sm:$0xff]
      %v762 = vld [vmem:[%s232 + $0x70] sm:$0xff]
      %v763 = vld [vmem:[%s232 + $0x78] sm:$0xff]
      %v764 = vld [vmem:[%s232 + $0x80] sm:$0xff]
      %v765 = vld [vmem:[%s232 + $0x88] sm:$0xff]
      %v766 = vld [vmem:[%s232 + $0x90] sm:$0xff]
      %v767 = vld [vmem:[%s232 + $0x98] sm:$0xff]
      %v768 = vld [vmem:[%s232 + $0xa0] sm:$0xff]
      %v769 = vld [vmem:[%s232 + $0xa8] sm:$0xff]
      %v770 = vld [vmem:[%s232 + $0xb0] sm:$0xff]
      %v771 = vld [vmem:[%s232 + $0xb8] sm:$0xff]
      %v772 = vld [vmem:[%s232 + $0xc0] sm:$0xff]
      %v773 = vld [vmem:[%s232 + $0xc8] sm:$0xff]
      %v774 = vld [vmem:[%s232 + $0xd0] sm:$0xff]
      %v775 = vld [vmem:[%s232 + $0xd8] sm:$0xff]
      %v776 = vld [vmem:[%s232 + $0xe0] sm:$0xff]
      %v777 = vld [vmem:[%s232 + $0xe8] sm:$0xff]
      %v778 = vld [vmem:[%s232 + $0xf0] sm:$0xff]
      %v779 = vld [vmem:[%s232 + $0xf8] sm:$0xff]
      %781 = vset.pattern.permute.xlu0 0
      %782 = vperm.xlu0 %781, %v748
      %v783 = vpop.permute.xlu0 %782
      %786 = vset.pattern.permute.xlu0 0
      %787 = vperm.xlu0 %786, %v749
      %v788 = vpop.permute.xlu0 %787
      %791 = vset.pattern.permute.xlu0 0
      %792 = vperm.xlu0 %791, %v750
      %v793 = vpop.permute.xlu0 %792
      %796 = vset.pattern.permute.xlu0 0
      %797 = vperm.xlu0 %796, %v751
      %v798 = vpop.permute.xlu0 %797
      %801 = vset.pattern.permute.xlu0 0
      %802 = vperm.xlu0 %801, %v752
      %v803 = vpop.permute.xlu0 %802
      %806 = vset.pattern.permute.xlu0 0
      %807 = vperm.xlu0 %806, %v753
      %v808 = vpop.permute.xlu0 %807
      %811 = vset.pattern.permute.xlu0 0
      %812 = vperm.xlu0 %811, %v754
      %v813 = vpop.permute.xlu0 %812
      %816 = vset.pattern.permute.xlu0 0
      %817 = vperm.xlu0 %816, %v755
      %v818 = vpop.permute.xlu0 %817
      %821 = vset.pattern.permute.xlu0 0
      %822 = vperm.xlu0 %821, %v756
      %v823 = vpop.permute.xlu0 %822
      %826 = vset.pattern.permute.xlu0 0
      %827 = vperm.xlu0 %826, %v757
      %v828 = vpop.permute.xlu0 %827
      %831 = vset.pattern.permute.xlu0 0
      %832 = vperm.xlu0 %831, %v758
      %v833 = vpop.permute.xlu0 %832
      %836 = vset.pattern.permute.xlu0 0
      %837 = vperm.xlu0 %836, %v759
      %v838 = vpop.permute.xlu0 %837
      %841 = vset.pattern.permute.xlu0 0
      %842 = vperm.xlu0 %841, %v760
      %v843 = vpop.permute.xlu0 %842
      %846 = vset.pattern.permute.xlu0 0
      %847 = vperm.xlu0 %846, %v761
      %v848 = vpop.permute.xlu0 %847
      %851 = vset.pattern.permute.xlu0 0
      %852 = vperm.xlu0 %851, %v762
      %v853 = vpop.permute.xlu0 %852
      %856 = vset.pattern.permute.xlu0 0
      %857 = vperm.xlu0 %856, %v763
      %v858 = vpop.permute.xlu0 %857
      %861 = vset.pattern.permute.xlu0 0
      %862 = vperm.xlu0 %861, %v764
      %v863 = vpop.permute.xlu0 %862
      %866 = vset.pattern.permute.xlu0 0
      %867 = vperm.xlu0 %866, %v765
      %v868 = vpop.permute.xlu0 %867
      %871 = vset.pattern.permute.xlu0 0
      %872 = vperm.xlu0 %871, %v766
      %v873 = vpop.permute.xlu0 %872
      %876 = vset.pattern.permute.xlu0 0
      %877 = vperm.xlu0 %876, %v767
      %v878 = vpop.permute.xlu0 %877
      %881 = vset.pattern.permute.xlu0 0
      %882 = vperm.xlu0 %881, %v768
      %v883 = vpop.permute.xlu0 %882
      %886 = vset.pattern.permute.xlu0 0
      %887 = vperm.xlu0 %886, %v769
      %v888 = vpop.permute.xlu0 %887
      %891 = vset.pattern.permute.xlu0 0
      %892 = vperm.xlu0 %891, %v770
      %v893 = vpop.permute.xlu0 %892
      %896 = vset.pattern.permute.xlu0 0
      %897 = vperm.xlu0 %896, %v771
      %v898 = vpop.permute.xlu0 %897
      %901 = vset.pattern.permute.xlu0 0
      %902 = vperm.xlu0 %901, %v772
      %v903 = vpop.permute.xlu0 %902
      %906 = vset.pattern.permute.xlu0 0
      %907 = vperm.xlu0 %906, %v773
      %v908 = vpop.permute.xlu0 %907
      %911 = vset.pattern.permute.xlu0 0
      %912 = vperm.xlu0 %911, %v774
      %v913 = vpop.permute.xlu0 %912
      %916 = vset.pattern.permute.xlu0 0
      %917 = vperm.xlu0 %916, %v775
      %v918 = vpop.permute.xlu0 %917
      %921 = vset.pattern.permute.xlu0 0
      %922 = vperm.xlu0 %921, %v776
      %v923 = vpop.permute.xlu0 %922
      %926 = vset.pattern.permute.xlu0 0
      %927 = vperm.xlu0 %926, %v777
      %v928 = vpop.permute.xlu0 %927
      %931 = vset.pattern.permute.xlu0 0
      %932 = vperm.xlu0 %931, %v778
      %v933 = vpop.permute.xlu0 %932
      %936 = vset.pattern.permute.xlu0 0
      %937 = vperm.xlu0 %936, %v779
      %v938 = vpop.permute.xlu0 %937
      %v940 = vsub.f32 %v684, %v783
      %v941 = vsub.f32 %v685, %v783
      %v942 = vsub.f32 %v686, %v788
      %v943 = vsub.f32 %v687, %v788
      %v944 = vsub.f32 %v688, %v793
      %v945 = vsub.f32 %v689, %v793
      %v946 = vsub.f32 %v690, %v798
      %v947 = vsub.f32 %v691, %v798
      %v948 = vsub.f32 %v692, %v803
      %v949 = vsub.f32 %v693, %v803
      %v950 = vsub.f32 %v694, %v808
      %v951 = vsub.f32 %v695, %v808
      %v952 = vsub.f32 %v696, %v813
      %v953 = vsub.f32 %v697, %v813
      %v954 = vsub.f32 %v698, %v818
      %v955 = vsub.f32 %v699, %v818
      %v956 = vsub.f32 %v700, %v823
      %v957 = vsub.f32 %v701, %v823
      %v958 = vsub.f32 %v702, %v828
      %v959 = vsub.f32 %v703, %v828
      %v960 = vsub.f32 %v704, %v833
      %v961 = vsub.f32 %v705, %v833
      %v962 = vsub.f32 %v706, %v838
      %v963 = vsub.f32 %v707, %v838
      %v964 = vsub.f32 %v708, %v843
      %v965 = vsub.f32 %v709, %v843
      %v966 = vsub.f32 %v710, %v848
      %v967 = vsub.f32 %v711, %v848
      %v968 = vsub.f32 %v712, %v853
      %v969 = vsub.f32 %v713, %v853
      %v970 = vsub.f32 %v714, %v858
      %v971 = vsub.f32 %v715, %v858
      %v972 = vsub.f32 %v716, %v863
      %v973 = vsub.f32 %v717, %v863
      %v974 = vsub.f32 %v718, %v868
      %v975 = vsub.f32 %v719, %v868
      %v976 = vsub.f32 %v720, %v873
      %v977 = vsub.f32 %v721, %v873
      %v978 = vsub.f32 %v722, %v878
      %v979 = vsub.f32 %v723, %v878
      %v980 = vsub.f32 %v724, %v883
      %v981 = vsub.f32 %v725, %v883
      %v982 = vsub.f32 %v726, %v888
      %v983 = vsub.f32 %v727, %v888
      %v984 = vsub.f32 %v728, %v893
      %v985 = vsub.f32 %v729, %v893
      %v986 = vsub.f32 %v730, %v898
      %v987 = vsub.f32 %v731, %v898
      %v988 = vsub.f32 %v732, %v903
      %v989 = vsub.f32 %v733, %v903
      %v990 = vsub.f32 %v734, %v908
      %v991 = vsub.f32 %v735, %v908
      %v992 = vsub.f32 %v736, %v913
      %v993 = vsub.f32 %v737, %v913
      %v994 = vsub.f32 %v738, %v918
      %v995 = vsub.f32 %v739, %v918
      %v996 = vsub.f32 %v740, %v923
      %v997 = vsub.f32 %v741, %v923
      %v998 = vsub.f32 %v742, %v928
      %v999 = vsub.f32 %v743, %v928
      %v1000 = vsub.f32 %v744, %v933
      %v1001 = vsub.f32 %v745, %v933
      %v1002 = vsub.f32 %v746, %v938
      %v1003 = vsub.f32 %v747, %v938
      %v1004 = vld [vmem:[%s237] sm:$0x3]
      %v1006 = vlaneseq
      %v1007 = vshrl.u32 %v1006, 7
      %v1008 = vsub.s32 0, %v1007
      %v1009 = vrot.slane %v1004, %v1008
      %v1010 = vlaneseq
      %v1011 = vshrl.u32 %v1010, 7
      %v1012 = vsub.s32 1, %v1011
      %v1013 = vrot.slane %v1004, %v1012
      %v1016 = vsub.f32 %v940, %v1009
      %v1017 = vsub.f32 %v941, %v1013
      %v1018 = vsub.f32 %v942, %v1009
      %v1019 = vsub.f32 %v943, %v1013
      %v1020 = vsub.f32 %v944, %v1009
      %v1021 = vsub.f32 %v945, %v1013
      %v1022 = vsub.f32 %v946, %v1009
      %v1023 = vsub.f32 %v947, %v1013
      %v1024 = vsub.f32 %v948, %v1009
      %v1025 = vsub.f32 %v949, %v1013
      %v1026 = vsub.f32 %v950, %v1009
      %v1027 = vsub.f32 %v951, %v1013
      %v1028 = vsub.f32 %v952, %v1009
      %v1029 = vsub.f32 %v953, %v1013
      %v1030 = vsub.f32 %v954, %v1009
      %v1031 = vsub.f32 %v955, %v1013
      %v1032 = vsub.f32 %v956, %v1009
      %v1033 = vsub.f32 %v957, %v1013
      %v1034 = vsub.f32 %v958, %v1009
      %v1035 = vsub.f32 %v959, %v1013
      %v1036 = vsub.f32 %v960, %v1009
      %v1037 = vsub.f32 %v961, %v1013
      %v1038 = vsub.f32 %v962, %v1009
      %v1039 = vsub.f32 %v963, %v1013
      %v1040 = vsub.f32 %v964, %v1009
      %v1041 = vsub.f32 %v965, %v1013
      %v1042 = vsub.f32 %v966, %v1009
      %v1043 = vsub.f32 %v967, %v1013
      %v1044 = vsub.f32 %v968, %v1009
      %v1045 = vsub.f32 %v969, %v1013
      %v1046 = vsub.f32 %v970, %v1009
      %v1047 = vsub.f32 %v971, %v1013
      %v1048 = vsub.f32 %v972, %v1009
      %v1049 = vsub.f32 %v973, %v1013
      %v1050 = vsub.f32 %v974, %v1009
      %v1051 = vsub.f32 %v975, %v1013
      %v1052 = vsub.f32 %v976, %v1009
      %v1053 = vsub.f32 %v977, %v1013
      %v1054 = vsub.f32 %v978, %v1009
      %v1055 = vsub.f32 %v979, %v1013
      %v1056 = vsub.f32 %v980, %v1009
      %v1057 = vsub.f32 %v981, %v1013
      %v1058 = vsub.f32 %v982, %v1009
      %v1059 = vsub.f32 %v983, %v1013
      %v1060 = vsub.f32 %v984, %v1009
      %v1061 = vsub.f32 %v985, %v1013
      %v1062 = vsub.f32 %v986, %v1009
      %v1063 = vsub.f32 %v987, %v1013
      %v1064 = vsub.f32 %v988, %v1009
      %v1065 = vsub.f32 %v989, %v1013
      %v1066 = vsub.f32 %v990, %v1009
      %v1067 = vsub.f32 %v991, %v1013
      %v1068 = vsub.f32 %v992, %v1009
      %v1069 = vsub.f32 %v993, %v1013
      %v1070 = vsub.f32 %v994, %v1009
      %v1071 = vsub.f32 %v995, %v1013
      %v1072 = vsub.f32 %v996, %v1009
      %v1073 = vsub.f32 %v997, %v1013
      %v1074 = vsub.f32 %v998, %v1009
      %v1075 = vsub.f32 %v999, %v1013
      %v1076 = vsub.f32 %v1000, %v1009
      %v1077 = vsub.f32 %v1001, %v1013
      %v1078 = vsub.f32 %v1002, %v1009
      %v1079 = vsub.f32 %v1003, %v1013
      %1080 = vst [vmem:[%s247] sm:$0xff] %v1016
      %1081 = vst [vmem:[%s247 + $0x8] sm:$0xff] %v1017
      %1082 = vst [vmem:[%s247 + $0x10] sm:$0xff] %v1018
      %1083 = vst [vmem:[%s247 + $0x18] sm:$0xff] %v1019
      %1084 = vst [vmem:[%s247 + $0x20] sm:$0xff] %v1020
      %1085 = vst [vmem:[%s247 + $0x28] sm:$0xff] %v1021
      %1086 = vst [vmem:[%s247 + $0x30] sm:$0xff] %v1022
      %1087 = vst [vmem:[%s247 + $0x38] sm:$0xff] %v1023
      %1088 = vst [vmem:[%s247 + $0x40] sm:$0xff] %v1024
      %1089 = vst [vmem:[%s247 + $0x48] sm:$0xff] %v1025
      %1090 = vst [vmem:[%s247 + $0x50] sm:$0xff] %v1026
      %1091 = vst [vmem:[%s247 + $0x58] sm:$0xff] %v1027
      %1092 = vst [vmem:[%s247 + $0x60] sm:$0xff] %v1028
      %1093 = vst [vmem:[%s247 + $0x68] sm:$0xff] %v1029
      %1094 = vst [vmem:[%s247 + $0x70] sm:$0xff] %v1030
      %1095 = vst [vmem:[%s247 + $0x78] sm:$0xff] %v1031
      %1096 = vst [vmem:[%s247 + $0x80] sm:$0xff] %v1032
      %1097 = vst [vmem:[%s247 + $0x88] sm:$0xff] %v1033
      %1098 = vst [vmem:[%s247 + $0x90] sm:$0xff] %v1034
      %1099 = vst [vmem:[%s247 + $0x98] sm:$0xff] %v1035
      %1100 = vst [vmem:[%s247 + $0xa0] sm:$0xff] %v1036
      %1101 = vst [vmem:[%s247 + $0xa8] sm:$0xff] %v1037
      %1102 = vst [vmem:[%s247 + $0xb0] sm:$0xff] %v1038
      %1103 = vst [vmem:[%s247 + $0xb8] sm:$0xff] %v1039
      %1104 = vst [vmem:[%s247 + $0xc0] sm:$0xff] %v1040
      %1105 = vst [vmem:[%s247 + $0xc8] sm:$0xff] %v1041
      %1106 = vst [vmem:[%s247 + $0xd0] sm:$0xff] %v1042
      %1107 = vst [vmem:[%s247 + $0xd8] sm:$0xff] %v1043
      %1108 = vst [vmem:[%s247 + $0xe0] sm:$0xff] %v1044
      %1109 = vst [vmem:[%s247 + $0xe8] sm:$0xff] %v1045
      %1110 = vst [vmem:[%s247 + $0xf0] sm:$0xff] %v1046
      %1111 = vst [vmem:[%s247 + $0xf8] sm:$0xff] %v1047
      %1112 = vst [vmem:[%s247 + $0x100] sm:$0xff] %v1048
      %1113 = vst [vmem:[%s247 + $0x108] sm:$0xff] %v1049
      %1114 = vst [vmem:[%s247 + $0x110] sm:$0xff] %v1050
      %1115 = vst [vmem:[%s247 + $0x118] sm:$0xff] %v1051
      %1116 = vst [vmem:[%s247 + $0x120] sm:$0xff] %v1052
      %1117 = vst [vmem:[%s247 + $0x128] sm:$0xff] %v1053
      %1118 = vst [vmem:[%s247 + $0x130] sm:$0xff] %v1054
      %1119 = vst [vmem:[%s247 + $0x138] sm:$0xff] %v1055
      %1120 = vst [vmem:[%s247 + $0x140] sm:$0xff] %v1056
      %1121 = vst [vmem:[%s247 + $0x148] sm:$0xff] %v1057
      %1122 = vst [vmem:[%s247 + $0x150] sm:$0xff] %v1058
      %1123 = vst [vmem:[%s247 + $0x158] sm:$0xff] %v1059
      %1124 = vst [vmem:[%s247 + $0x160] sm:$0xff] %v1060
      %1125 = vst [vmem:[%s247 + $0x168] sm:$0xff] %v1061
      %1126 = vst [vmem:[%s247 + $0x170] sm:$0xff] %v1062
      %1127 = vst [vmem:[%s247 + $0x178] sm:$0xff] %v1063
      %1128 = vst [vmem:[%s247 + $0x180] sm:$0xff] %v1064
      %1129 = vst [vmem:[%s247 + $0x188] sm:$0xff] %v1065
      %1130 = vst [vmem:[%s247 + $0x190] sm:$0xff] %v1066
      %1131 = vst [vmem:[%s247 + $0x198] sm:$0xff] %v1067
      %1132 = vst [vmem:[%s247 + $0x1a0] sm:$0xff] %v1068
      %1133 = vst [vmem:[%s247 + $0x1a8] sm:$0xff] %v1069
      %1134 = vst [vmem:[%s247 + $0x1b0] sm:$0xff] %v1070
      %1135 = vst [vmem:[%s247 + $0x1b8] sm:$0xff] %v1071
      %1136 = vst [vmem:[%s247 + $0x1c0] sm:$0xff] %v1072
      %1137 = vst [vmem:[%s247 + $0x1c8] sm:$0xff] %v1073
      %1138 = vst [vmem:[%s247 + $0x1d0] sm:$0xff] %v1074
      %1139 = vst [vmem:[%s247 + $0x1d8] sm:$0xff] %v1075
      %1140 = vst [vmem:[%s247 + $0x1e0] sm:$0xff] %v1076
      %1141 = vst [vmem:[%s247 + $0x1e8] sm:$0xff] %v1077
      %1142 = vst [vmem:[%s247 + $0x1f0] sm:$0xff] %v1078
      %1143 = vst [vmem:[%s247 + $0x1f8] sm:$0xff] %v1079
      %s1144 = smul.u32 32, %s19
      %p1145 = scmp.lt.s32.totalorder %s18, 1
      %s1146 = scalar_select %p1145, %s18, 1
      %p1147 = scmp.lt.s32.totalorder %s1144, 31
      %s1148 = scalar_select %p1147, %s1144, 31
      %s1149 = smul.addr %s1148, 2
      %s1150 = smul.addr %s1146, 64
      %s1151 = sadd.s32 %s1149, %s1150
      %s1152 = smul.addr %s1151, 8
      %s1153 = scalar_lea.vmem %s3, %s1152
      // Predicated region
      $region33: #{edge_conv_forward.2} parent=31 // pred_check
        %p1154 = pneg %p126
      $region34: #{edge_conv_forward.2} parent=31 // pred_check_branch
        %1156 = sbr.rel (%p1154) target = $region36
      $region35: #{edge_conv_forward.2} parent=31 // pred_region
        %s1157 = smul.u32 32, %s19
      $region36: #{edge_conv_forward.2} parent=31 // pred_fallthru
        _
    $region32: #{edge_conv_forward.2} parent=5 // pred_fallthru
      _
    %p1158 = scmp.le.s32.totalorder 2, %s9
    // Predicated region
    $region37: #{edge_conv_forward.2} parent=5 // pred_check
      %p1159 = pneg %p1158
    $region38: #{edge_conv_forward.2} parent=5 // pred_check_branch
      %1161 = sbr.rel (%p1159) target = $region40
    $region39: #{edge_conv_forward.2} parent=5 // pred_region
      %s1162 = ssub.s32 %s9, 2
      // Predicated region
      $region41: #{edge_conv_forward.2} parent=39 // pred_check
        %p1163 = pneg %p132
      $region42: #{edge_conv_forward.2} parent=39 // pred_check_branch
        %1165 = sbr.rel (%p1163) target = $region44
      $region43: #{edge_conv_forward.2} parent=39 // pred_region
        %s1166 = smul.u32 32, %s21
        %p1167 = scmp.lt.s32.totalorder %s20, 1
        %s1168 = scalar_select %p1167, %s20, 1
        %p1169 = scmp.lt.s32.totalorder %s1166, 31
        %s1170 = scalar_select %p1169, %s1166, 31
        %s1171 = smul.addr %s1170, 2
        %s1172 = smul.addr %s1168, 64
        %s1173 = sadd.s32 %s1171, %s1172
        %s1174 = smul.addr %s1173, 8
        %s1175 = scalar_lea.vmem %s3, %s1174
      $region44: #{edge_conv_forward.2} parent=39 // pred_fallthru
        _
    $region40: #{edge_conv_forward.2} parent=5 // pred_fallthru
      _
  $region6: #{edge_conv_forward.2} parent=0 // loop_footer
    %s13 = sadd.s32 1, %s9
  $region7: #{edge_conv_forward.2} parent=0 // loop_footer_branch
    %8 = sbr.rel target = $region3
  $region8: #{edge_conv_forward.2} parent=0 // loop_exit
    _

// kernel: edge_conv_forward.3
$region0: #{edge_conv_forward.3}
  #allocation0 [shape = 'u32[]', space=smem, size = 0x4, offset = 0x4, fixed_abs, tag = 'smem constant byte address 0x4 - core index']
  #allocation1 [shape = 'u32[144,128]{1,0:T(1,128)}', space=vmem, size = 0x12000, scoped, tag = 'internal scratch']
  %s0 = inlined_call_operand.vmem [shape: bf16[2,3,256], index: 0, kind: input, shape index: {}]
  %s1 = inlined_call_operand.vmem [shape: bf16[2,1,3,2048], index: 1, kind: input, shape index: {}]
  %s2 = inlined_call_operand.vmem [shape: bf16[64,3], index: 2, kind: input, shape index: {}]
  %s3 = inlined_call_operand.vmem [shape: bf16[64,3], index: 3, kind: input, shape index: {}]
  %s4 = inlined_call_operand.vmem [shape: f32[64,1], index: 4, kind: input, shape index: {}]
  %s5 = inlined_call_operand.vmem [shape: bf16[64,64], index: 5, kind: input, shape index: {}]
  %s6 = inlined_call_operand.vmem [shape: f32[64,1], index: 6, kind: input, shape index: {}]
  %s7 = inlined_call_operand.hbm [shape: f32[2,64,256], index: 7, kind: output, shape index: {}]
  %s8 = sld [smem:[#allocation0]]
  $region61: #{edge_conv_forward.3} parent=0
    _
  %s10 = ssub.s32 1, %s8
  %s11 = scalar_select 0, %s10, %s8
  $region1: #{edge_conv_forward.3} parent=0
    #allocation2 [shape = 'u8[131072]{0}', space=vmem, size = 0x20000, scoped, tag = 'output window, operand 0']
    #allocation3 [shape = 's32[2]{0}', space=sflag, size = 0x8, scoped, tag = 'scoped memory for edge_conv_forward.3']
    %12 = vsyncpa [#allocation3], 0
    %s13 = scalar_lea.sflag [#allocation3], 1
    %14 = vsyncpa %s13, 0
    loop: start=0, step=1, limit=4
    $region2: #{edge_conv_forward.3} parent=1 // loop_pre_header
      _
    $region3: #{edge_conv_forward.3} parent=1 // loop_header
      %s16 = sphi 0, %s20
      %p17 = scmp.ge.s32.totalorder %s16, 4
      %s23 = sphi 0, %s35
      %s24 = sphi 0, %s31
      %s25 = sphi 0, %s23
      %s26 = sphi 0, %s24
      %s27 = sphi 0, %s25
      %s28 = sphi 0, %s26
      %s40 = sphi 0, %s42
      %s43 = sphi 0, %s40
      %s44 = sphi 0, %s43
      %s60 = sphi 0, %s44
      %s68 = sphi 0, %s70
      %s71 = sphi 0, %s68
      %s72 = sphi 0, %s71
      %s88 = sphi 0, %s72
      %s92 = sphi 0, %s92
      %s94 = sphi 0, %s92
      %s95 = sphi 0, %s94
      %s109 = sphi 0, %s95
      %s113 = sphi 0, %s113
      %s115 = sphi 0, %s113
      %s116 = sphi 0, %s115
      %s130 = sphi 0, %s116
      %s134 = sphi 0, %s134
      %s136 = sphi 0, %s134
      %s137 = sphi 0, %s136
      %s151 = sphi 0, %s137
      %s155 = sphi 0, %s155
      %s157 = sphi 0, %s155
      %s158 = sphi 0, %s157
      %s172 = sphi 0, %s158
      %s176 = sphi 0, %s176
      %s178 = sphi 0, %s176
      %s179 = sphi 0, %s178
      %s193 = sphi 0, %s179
      %s201 = sphi 0, %s203
      %s204 = sphi 0, %s201
      %s205 = sphi 0, %s204
      %s221 = sphi 0, %s205
    $region4: #{edge_conv_forward.3} parent=1 // loop_header_branch
      %19 = sbr.rel (%p17) target = $region8
    $region5: #{edge_conv_forward.3} parent=1 // loop_body
      %s21 = ssub.s32 %s16, 1
      %s22 = ssub.s32 %s16, 2
      %s29 = sadd.s32 1, %s24
      %p30 = scmp.ge.s32.totalorder %s29, 1
      %s31 = scalar_select %p30, 0, %s29
      %s32 = sadd.s32 1, %s23
      %s33 = scalar_select %p30, %s32, %s23
      %p34 = scmp.ge.s32.totalorder %s33, 2
      %s35 = scalar_select %p34, 0, %s33
      %s36 = ssub.s32 %s23, %s35
      %s37 = ssub.s32 %s24, %s31
      %s38 = sor.u32 %s36, %s37
      %p39 = scmp.eq.s32.totalorder %s38, 0
      %s41 = sadd.s32 %s40, 1
      %s42 = scalar_select %p39, %s40, %s41
      %p45 = pneg %p39
      %p46 = scmp.eq.s32.totalorder %s16, 1
      %p47 = por %p45, %p46
      %p48 = scmp.ne.s32.totalorder %s40, %s43
      %p49 = scmp.eq.s32.totalorder %s16, 0
      %p50 = por %p48, %p49
      %p51 = scmp.ne.s32.totalorder %s40, %s43
      %p52 = scmp.eq.s32.totalorder %s21, 1
      %p53 = por %p51, %p52
      %p54 = scmp.ne.s32.totalorder %s43, %s44
      %p55 = scmp.eq.s32.totalorder %s21, 0
      %p56 = por %p54, %p55
      %p57 = scmp.ne.s32.totalorder %s43, %s44
      %p58 = scmp.eq.s32.totalorder %s22, 1
      %p59 = por %p57, %p58
      %p61 = scmp.ne.s32.totalorder %s44, %s60
      %p62 = scmp.eq.s32.totalorder %s22, 0
      %p63 = por %p61, %p62
      %s64 = ssub.s32 %s23, %s35
      %s65 = ssub.s32 %s24, %s31
      %s66 = sor.u32 %s64, %s65
      %p67 = scmp.eq.s32.totalorder %s66, 0
      %s69 = sadd.s32 %s68, 1
      %s70 = scalar_select %p67, %s68, %s69
      %p73 = pneg %p67
      %p74 = scmp.eq.s32.totalorder %s16, 1
      %p75 = por %p73, %p74
      %p76 = scmp.ne.s32.totalorder %s68, %s71
      %p77 = scmp.eq.s32.totalorder %s16, 0
      %p78 = por %p76, %p77
      %p79 = scmp.ne.s32.totalorder %s68, %s71
      %p80 = scmp.eq.s32.totalorder %s21, 1
      %p81 = por %p79, %p80
      %p82 = scmp.ne.s32.totalorder %s71, %s72
      %p83 = scmp.eq.s32.totalorder %s21, 0
      %p84 = por %p82, %p83
      %p85 = scmp.ne.s32.totalorder %s71, %s72
      %p86 = scmp.eq.s32.totalorder %s22, 1
      %p87 = por %p85, %p86
      %p89 = scmp.ne.s32.totalorder %s72, %s88
      %p90 = scmp.eq.s32.totalorder %s22, 0
      %p91 = por %p89, %p90
      %s93 = sadd.s32 %s92, 1
      %p96 = scmp.eq.s32.totalorder %s16, 1
      %p97 = scmp.ne.s32.totalorder %s92, %s94
      %p98 = scmp.eq.s32.totalorder %s16, 0
      %p99 = por %p97, %p98
      %p100 = scmp.ne.s32.totalorder %s92, %s94
      %p101 = scmp.eq.s32.totalorder %s21, 1
      %p102 = por %p100, %p101
      %p103 = scmp.ne.s32.totalorder %s94, %s95
      %p104 = scmp.eq.s32.totalorder %s21, 0
      %p105 = por %p103, %p104
      %p106 = scmp.ne.s32.totalorder %s94, %s95
      %p107 = scmp.eq.s32.totalorder %s22, 1
      %p108 = por %p106, %p107
      %p110 = scmp.ne.s32.totalorder %s95, %s109
      %p111 = scmp.eq.s32.totalorder %s22, 0
      %p112 = por %p110, %p111
      %s114 = sadd.s32 %s113, 1
      %p117 = scmp.eq.s32.totalorder %s16, 1
      %p118 = scmp.ne.s32.totalorder %s113, %s115
      %p119 = scmp.eq.s32.totalorder %s16, 0
      %p120 = por %p118, %p119
      %p121 = scmp.ne.s32.totalorder %s113, %s115
      %p122 = scmp.eq.s32.totalorder %s21, 1
      %p123 = por %p121, %p122
      %p124 = scmp.ne.s32.totalorder %s115, %s116
      %p125 = scmp.eq.s32.totalorder %s21, 0
      %p126 = por %p124, %p125
      %p127 = scmp.ne.s32.totalorder %s115, %s116
      %p128 = scmp.eq.s32.totalorder %s22, 1
      %p129 = por %p127, %p128
      %p131 = scmp.ne.s32.totalorder %s116, %s130
      %p132 = scmp.eq.s32.totalorder %s22, 0
      %p133 = por %p131, %p132
      %s135 = sadd.s32 %s134, 1
      %p138 = scmp.eq.s32.totalorder %s16, 1
      %p139 = scmp.ne.s32.totalorder %s134, %s136
      %p140 = scmp.eq.s32.totalorder %s16, 0
      %p141 = por %p139, %p140
      %p142 = scmp.ne.s32.totalorder %s134, %s136
      %p143 = scmp.eq.s32.totalorder %s21, 1
      %p144 = por %p142, %p143
      %p145 = scmp.ne.s32.totalorder %s136, %s137
      %p146 = scmp.eq.s32.totalorder %s21, 0
      %p147 = por %p145, %p146
      %p148 = scmp.ne.s32.totalorder %s136, %s137
      %p149 = scmp.eq.s32.totalorder %s22, 1
      %p150 = por %p148, %p149
      %p152 = scmp.ne.s32.totalorder %s137, %s151
      %p153 = scmp.eq.s32.totalorder %s22, 0
      %p154 = por %p152, %p153
      %s156 = sadd.s32 %s155, 1
      %p159 = scmp.eq.s32.totalorder %s16, 1
      %p160 = scmp.ne.s32.totalorder %s155, %s157
      %p161 = scmp.eq.s32.totalorder %s16, 0
      %p162 = por %p160, %p161
      %p163 = scmp.ne.s32.totalorder %s155, %s157
      %p164 = scmp.eq.s32.totalorder %s21, 1
      %p165 = por %p163, %p164
      %p166 = scmp.ne.s32.totalorder %s157, %s158
      %p167 = scmp.eq.s32.totalorder %s21, 0
      %p168 = por %p166, %p167
      %p169 = scmp.ne.s32.totalorder %s157, %s158
      %p170 = scmp.eq.s32.totalorder %s22, 1
      %p171 = por %p169, %p170
      %p173 = scmp.ne.s32.totalorder %s158, %s172
      %p174 = scmp.eq.s32.totalorder %s22, 0
      %p175 = por %p173, %p174
      %s177 = sadd.s32 %s176, 1
      %p180 = scmp.eq.s32.totalorder %s16, 1
      %p181 = scmp.ne.s32.totalorder %s176, %s178
      %p182 = scmp.eq.s32.totalorder %s16, 0
      %p183 = por %p181, %p182
      %p184 = scmp.ne.s32.totalorder %s176, %s178
      %p185 = scmp.eq.s32.totalorder %s21, 1
      %p186 = por %p184, %p185
      %p187 = scmp.ne.s32.totalorder %s178, %s179
      %p188 = scmp.eq.s32.totalorder %s21, 0
      %p189 = por %p187, %p188
      %p190 = scmp.ne.s32.totalorder %s178, %s179
      %p191 = scmp.eq.s32.totalorder %s22, 1
      %p192 = por %p190, %p191
      %p194 = scmp.ne.s32.totalorder %s179, %s193
      %p195 = scmp.eq.s32.totalorder %s22, 0
      %p196 = por %p194, %p195
      %s197 = ssub.s32 %s23, %s35
      %s198 = ssub.s32 %s24, %s31
      %s199 = sor.u32 %s197, %s198
      %p200 = scmp.eq.s32.totalorder %s199, 0
      %s202 = sadd.s32 %s201, 1
      %s203 = scalar_select %p200, %s201, %s202
      %p206 = pneg %p200
      %p207 = scmp.eq.s32.totalorder %s16, 1
      %p208 = por %p206, %p207
      %p209 = scmp.ne.s32.totalorder %s201, %s204
      %p210 = scmp.eq.s32.totalorder %s16, 0
      %p211 = por %p209, %p210
      %p212 = scmp.ne.s32.totalorder %s201, %s204
      %p213 = scmp.eq.s32.totalorder %s21, 1
      %p214 = por %p212, %p213
      %p215 = scmp.ne.s32.totalorder %s204, %s205
      %p216 = scmp.eq.s32.totalorder %s21, 0
      %p217 = por %p215, %p216
      %p218 = scmp.ne.s32.totalorder %s204, %s205
      %p219 = scmp.eq.s32.totalorder %s22, 1
      %p220 = por %p218, %p219
      %p222 = scmp.ne.s32.totalorder %s205, %s221
      %p223 = scmp.eq.s32.totalorder %s22, 0
      %p224 = por %p222, %p223
      %p225 = scmp.le.s32.totalorder 1, %s16
      %p226 = scmp.lt.s32.totalorder %s16, 3
      %p227 = pnand %p225, %p226
      %p228 = pneg %p227
      // Predicated region
      $region9: #{edge_conv_forward.3} parent=5 // pred_check
        _
      $region10: #{edge_conv_forward.3} parent=5 // pred_check_branch
        %230 = sbr.rel (%p227) target = $region12
      $region11: #{edge_conv_forward.3} parent=5 // pred_region
        %s231 = ssub.s32 %s16, 1
        // Predicated region
        $region13: #{edge_conv_forward.3} parent=11 // pred_check
          %p232 = pneg %p105
        $region14: #{edge_conv_forward.3} parent=11 // pred_check_branch
          %234 = sbr.rel (%p232) target = $region16
        $region15: #{edge_conv_forward.3} parent=11 // pred_region
          _
        $region16: #{edge_conv_forward.3} parent=11 // pred_fallthru
          _
        // Predicated region
        $region17: #{edge_conv_forward.3} parent=11 // pred_check
          %p235 = pneg %p126
        $region18: #{edge_conv_forward.3} parent=11 // pred_check_branch
          %237 = sbr.rel (%p235) target = $region20
        $region19: #{edge_conv_forward.3} parent=11 // pred_region
          _
        $region20: #{edge_conv_forward.3} parent=11 // pred_fallthru
          _
        // Predicated region
        $region21: #{edge_conv_forward.3} parent=11 // pred_check
          %p238 = pneg %p147
        $region22: #{edge_conv_forward.3} parent=11 // pred_check_branch
          %240 = sbr.rel (%p238) target = $region24
        $region23: #{edge_conv_forward.3} parent=11 // pred_region
          _
        $region24: #{edge_conv_forward.3} parent=11 // pred_fallthru
          _
        // Predicated region
        $region25: #{edge_conv_forward.3} parent=11 // pred_check
          %p241 = pneg %p168
        $region26: #{edge_conv_forward.3} parent=11 // pred_check_branch
          %243 = sbr.rel (%p241) target = $region28
        $region27: #{edge_conv_forward.3} parent=11 // pred_region
          _
        $region28: #{edge_conv_forward.3} parent=11 // pred_fallthru
          _
        // Predicated region
        $region29: #{edge_conv_forward.3} parent=11 // pred_check
          %p244 = pneg %p189
        $region30: #{edge_conv_forward.3} parent=11 // pred_check_branch
          %246 = sbr.rel (%p244) target = $region32
        $region31: #{edge_conv_forward.3} parent=11 // pred_region
          _
        $region32: #{edge_conv_forward.3} parent=11 // pred_fallthru
          _
      $region12: #{edge_conv_forward.3} parent=5 // pred_fallthru
        _
      %p247 = scmp.lt.s32.totalorder %s16, 2
      // Predicated region
      $region33: #{edge_conv_forward.3} parent=5 // pred_check
        %p248 = pneg %p247
      $region34: #{edge_conv_forward.3} parent=5 // pred_check_branch
        %250 = sbr.rel (%p248) target = $region36
      $region35: #{edge_conv_forward.3} parent=5 // pred_region
        // Predicated region
        $region37: #{edge_conv_forward.3} parent=35 // pred_check
          %p251 = pneg %p50
        $region38: #{edge_conv_forward.3} parent=35 // pred_check_branch
          %253 = sbr.rel (%p251) target = $region40
        $region39: #{edge_conv_forward.3} parent=35 // pred_region
          %s254 = smul.u32 2, %s24
          %p255 = scmp.lt.s32.totalorder %s23, 1
          %s256 = scalar_select %p255, %s23, 1
          %p257 = scmp.lt.s32.totalorder %s254, 1
          %s258 = scalar_select %p257, %s254, 1
          %s259 = smul.addr %s256, 2
          %s260 = sadd.s32 %s258, %s259
          %s261 = smul.addr %s260, 2
          %s262 = scalar_lea.vmem %s0, %s261
          %s263 = smul.u32 2, %s24
        $region40: #{edge_conv_forward.3} parent=35 // pred_fallthru
          _
        // Predicated region
        $region41: #{edge_conv_forward.3} parent=35 // pred_check
          %p264 = pneg %p78
        $region42: #{edge_conv_forward.3} parent=35 // pred_check_branch
          %266 = sbr.rel (%p264) target = $region44
        $region43: #{edge_conv_forward.3} parent=35 // pred_region
          %p267 = scmp.lt.s32.totalorder %s23, 1
          %s268 = scalar_select %p267, %s23, 1
          %p269 = scmp.lt.s32.totalorder %s24, 0
          %s270 = scalar_select %p269, %s24, 0
          %s271 = smul.addr %s270, 16
          %s272 = smul.addr %s268, 16
          %s273 = sadd.s32 %s271, %s272
          %s274 = smul.addr %s273, 2
          %s275 = scalar_lea.vmem %s1, %s274
        $region44: #{edge_conv_forward.3} parent=35 // pred_fallthru
          _
      $region36: #{edge_conv_forward.3} parent=5 // pred_fallthru
        _
      %p276 = scmp.le.s32.totalorder 1, %s16
      %p277 = scmp.lt.s32.totalorder %s16, 3
      %p278 = pnand %p276, %p277
      %p279 = pneg %p278
      // Predicated region
      $region45: #{edge_conv_forward.3} parent=5 // pred_check
        _
      $region46: #{edge_conv_forward.3} parent=5 // pred_check_branch
        %281 = sbr.rel (%p278) target = $region48
      $region47: #{edge_conv_forward.3} parent=5 // pred_region
        %s282 = ssub.s32 %s16, 1
        %s283 = smul.u32 2, %s26
        %p284 = scmp.lt.s32.totalorder %s25, 1
        %s285 = scalar_select %p284, %s25, 1
        %p286 = scmp.lt.s32.totalorder %s283, 1
        %s287 = scalar_select %p286, %s283, 1
        %s288 = smul.addr %s285, 2
        %s289 = sadd.s32 %s287, %s288
        %s290 = smul.addr %s289, 2
        %s291 = scalar_lea.vmem %s0, %s290
        %p292 = pneg %p56
        %p293 = pneg %p53
        %p294 = scmp.lt.s32.totalorder %s25, 1
        %s295 = scalar_select %p294, %s25, 1
        %p296 = scmp.lt.s32.totalorder %s26, 0
        %s297 = scalar_select %p296, %s26, 0
        %s298 = smul.addr %s297, 16
        %s299 = smul.addr %s295, 16
        %s300 = sadd.s32 %s298, %s299
        %s301 = smul.addr %s300, 2
        %s302 = scalar_lea.vmem %s1, %s301
        %p303 = pneg %p84
        %p304 = pneg %p81
        %p305 = pneg %p105
        %p306 = pneg %p102
        %p307 = pneg %p126
        %p308 = pneg %p123
        %p309 = pneg %p147
        %p310 = pneg %p144
        %p311 = pneg %p168
        %p312 = pneg %p165
        %p313 = pneg %p189
        %p314 = pneg %p186
        %p315 = pneg %p217
        %p316 = pneg %p214
        %s317 = sand.u32 %s204, 1
        %s318 = scalar_lea.sflag [#allocation3], %s317
        %s319 = sand.u32 %s204, 1
        %s320 = smul.addr %s319, 128
        %s321 = scalar_lea.vmem [#allocation2], %s320
        %s322 = smul.u32 2, %s26
        %p323 = scmp.lt.s32.totalorder %s25, 1
        %s324 = scalar_select %p323, %s25, 1
        %p325 = scmp.lt.s32.totalorder %s322, 1
        %s326 = scalar_select %p325, %s322, 1
        %s327 = smul.addr %s324, 2
        %s328 = sadd.s32 %s326, %s327
        %s329 = smul.addr %s328, 2
        %s330 = scalar_lea.vmem %s0, %s329
        %s331 = smul.u32 2, %s26
        %p332 = scmp.lt.s32.totalorder %s25, 1
        %s333 = scalar_select %p332, %s25, 1
        %p334 = scmp.lt.s32.totalorder %s26, 0
        %s335 = scalar_select %p334, %s26, 0
        %s336 = smul.addr %s335, 16
        %s337 = smul.addr %s333, 16
        %s338 = sadd.s32 %s336, %s337
        %s339 = smul.addr %s338, 2
        %s340 = scalar_lea.vmem %s1, %s339
        %s341 = smul.u32 2, %s26
        %v343 = vld [vmem:[%s330] sm:$0xf]
        %v344 = vld [vmem:[%s340] sm:$0xff]
        %v345 = vld [vmem:[%s340 + $0x8] sm:$0xff]
        %v346 = vld [vmem:[%s340 + $0x10] sm:$0xff]
        %v347 = vld [vmem:[%s340 + $0x18] sm:$0xff]
        %v348 = vld [vmem:[%s2] sm:$0xf]
        %v349 = vld [vmem:[%s2 + $0x4] sm:$0xf]
        %v350 = vld [vmem:[%s2 + $0x8] sm:$0xf]
        %v351 = vld [vmem:[%s2 + $0xc] sm:$0xf]
        %v352 = vld [vmem:[%s2 + $0x10] sm:$0xf]
        %v353 = vld [vmem:[%s2 + $0x14] sm:$0xf]
        %v354 = vld [vmem:[%s2 + $0x18] sm:$0xf]
        %v355 = vld [vmem:[%s2 + $0x1c] sm:$0xf]
        %v356 = vld [vmem:[%s4] sm:$0xff]
        %v357 = vld [vmem:[%s4 + $0x8] sm:$0xff]
        %v358 = vld [vmem:[%s4 + $0x10] sm:$0xff]
        %v359 = vld [vmem:[%s4 + $0x18] sm:$0xff]
        %v360 = vld [vmem:[%s4 + $0x20] sm:$0xff]
        %v361 = vld [vmem:[%s4 + $0x28] sm:$0xff]
        %v362 = vld [vmem:[%s4 + $0x30] sm:$0xff]
        %v363 = vld [vmem:[%s4 + $0x38] sm:$0xff]
        %365 = vset.pattern.permute.xlu0 0
        %366 = vperm.xlu0 %365, %v356
        %v367 = vpop.permute.xlu0 %366
        %370 = vset.pattern.permute.xlu0 0
        %371 = vperm.xlu0 %370, %v357
        %v372 = vpop.permute.xlu0 %371
        %375 = vset.pattern.permute.xlu0 0
        %376 = vperm.xlu0 %375, %v358
        %v377 = vpop.permute.xlu0 %376
        %380 = vset.pattern.permute.xlu0 0
        %381 = vperm.xlu0 %380, %v359
        %v382 = vpop.permute.xlu0 %381
        %385 = vset.pattern.permute.xlu0 0
        %386 = vperm.xlu0 %385, %v360
        %v387 = vpop.permute.xlu0 %386
        %390 = vset.pattern.permute.xlu0 0
        %391 = vperm.xlu0 %390, %v361
        %v392 = vpop.permute.xlu0 %391
        %395 = vset.pattern.permute.xlu0 0
        %396 = vperm.xlu0 %395, %v362
        %v397 = vpop.permute.xlu0 %396
        %400 = vset.pattern.permute.xlu0 0
        %401 = vperm.xlu0 %400, %v363
        %v402 = vpop.permute.xlu0 %401
        %v412 = vunpack.c.l.b16 %v348
        %v413 = vunpack.c.l.b16 %v349
        %v414 = vunpack.c.l.b16 %v350
        %v415 = vunpack.c.l.b16 %v351
        %v416 = vunpack.c.l.b16 %v352
        %v417 = vunpack.c.l.b16 %v353
        %v418 = vunpack.c.l.b16 %v354
        %v419 = vunpack.c.l.b16 %v355
        %v420 = vpack.c.b16 %v413, %v412
        %v421 = vpack.c.b16 %v415, %v414
        %v422 = vpack.c.b16 %v417, %v416
        %v423 = vpack.c.b16 %v419, %v418
        %v426 = vunpack.c.l.s4 1983009808
        %v427 = vunpack.c.0.s8 %v426
        %v428 = vlaneseq
        %v429 = vshrl.u32 %v428, 7
        %v430 = vsub.s32 %v427, %v429
        %v431 = vrot.slane %v343, %v430
        %v432 = vcombine.high %v431, %v431
        %vm433 = vcmask 23552
        %v435 = vsel %vm433, %v420, 0
        %v438 = vsel %vm433, %v421, 0
        %v441 = vsel %vm433, %v422, 0
        %v444 = vsel %vm433, %v423, 0
        %vm446 = vcmask 1040384
        %vm447 = vcmask 1041408
        %v448 = vsel %vm446, 4294967295, 65535
        %v449 = vsel %vm447, %v448, 0
        %v451 = vand.u32 %v431, %v449
        %v454 = vand.u32 %v432, %v449
        %456 = vmatprep.subr.bf16.mxu0 %v454
        %457 = vmatpush1.bf16.msra.mxu0 %v451
        %458 = vmatprep.subr.bf16.mxu0 0
        %459 = vmatpush1.bf16.msra.mxu0 0
        %460 = vmatprep.subr.bf16.mxu0 0
        %461 = vmatpush1.bf16.msra.mxu0 0
        %462 = vmatprep.subr.bf16.mxu0 0
        %463 = vmatpush1.bf16.msra.mxu0 0
        %464 = vmatprep.subr.bf16.mxu0 0
        %465 = vmatpush1.bf16.msra.mxu0 0
        %466 = vmatprep.subr.bf16.mxu0 0
        %467 = vmatpush1.bf16.msra.mxu0 0
        %468 = vmatprep.subr.bf16.mxu0 0
        %469 = vmatpush1.bf16.msra.mxu0 0
        %470 = vmatprep.subr.bf16.mxu0 0
        %471 = vmatpush1.bf16.msra.mxu0 0
        %472 = vmatprep.subr.bf16.mxu0 0
        %473 = vmatpush1.bf16.msra.mxu0 0
        %474 = vmatprep.subr.bf16.mxu0 0
        %475 = vmatpush1.bf16.msra.mxu0 0
        %476 = vmatprep.subr.bf16.mxu0 0
        %477 = vmatpush1.bf16.msra.mxu0 0
        %478 = vmatprep.subr.bf16.mxu0 0
        %479 = vmatpush1.bf16.msra.mxu0 0
        %480 = vmatprep.subr.bf16.mxu0 0
        %481 = vmatpush1.bf16.msra.mxu0 0
        %482 = vmatprep.subr.bf16.mxu0 0
        %483 = vmatpush1.bf16.msra.mxu0 0
        %484 = vmatprep.subr.bf16.mxu0 0
        %485 = vmatpush1.bf16.msra.mxu0 0
        %486 = vmatprep.subr.bf16.mxu0 0
        %487 = vmatpush1.bf16.msra.mxu0 0
        %488 = vmatprep.mubr.bf16.mxu0 0
        %489 = vmatmul.mubr.bf16.gmra.mrb[0].mxu0 %v435
        %v490 = vpop.f32.mrb[0].mxu0
        %v491 = vadd.f32 %v367, %v490
        %v492 = vpop.f32.mrb[0].mxu0
        %v493 = vadd.f32 %v367, %v492
        %v494 = vpop.f32.mrb[0].mxu0
        %v495 = vadd.f32 %v372, %v494
        %v496 = vpop.f32.mrb[0].mxu0
        %v497 = vadd.f32 %v372, %v496
        %498 = vmatprep.mubr.bf16.mxu0 0
        %499 = vmatmul.mubr.bf16.gmra.mrb[0].mxu0 %v438
        %v500 = vpop.f32.mrb[0].mxu0
        %v501 = vadd.f32 %v377, %v500
        %v502 = vpop.f32.mrb[0].mxu0
        %v503 = vadd.f32 %v377, %v502
        %v504 = vpop.f32.mrb[0].mxu0
        %v505 = vadd.f32 %v382, %v504
        %v506 = vpop.f32.mrb[0].mxu0
        %v507 = vadd.f32 %v382, %v506
        %508 = vmatprep.mubr.bf16.mxu0 0
        %509 = vmatmul.mubr.bf16.gmra.mrb[0].mxu0 %v441
        %v510 = vpop.f32.mrb[0].mxu0
        %v511 = vadd.f32 %v387, %v510
        %v512 = vpop.f32.mrb[0].mxu0
        %v513 = vadd.f32 %v387, %v512
        %v514 = vpop.f32.mrb[0].mxu0
        %v515 = vadd.f32 %v392, %v514
        %v516 = vpop.f32.mrb[0].mxu0
        %v517 = vadd.f32 %v392, %v516
        %518 = vmatprep.mubr.bf16.mxu0 0
        %519 = vmatmul.mubr.bf16.gmra.mrb[0].mxu0 %v444
        %v520 = vpop.f32.mrb[0].mxu0
        %v521 = vadd.f32 %v397, %v520
        %v522 = vpop.f32.mrb[0].mxu0
        %v523 = vadd.f32 %v397, %v522
        %v524 = vpop.f32.mrb[0].mxu0
        %v525 = vadd.f32 %v402, %v524
        %v526 = vpop.f32.mrb[0].mxu0
        %v527 = vadd.f32 %v402, %v526
        %528 = vdwg.mxu0
        %v529 = vld [vmem:[%s3] sm:$0xf]
        %v530 = vld [vmem:[%s3 + $0x4] sm:$0xf]
        %v531 = vld [vmem:[%s3 + $0x8] sm:$0xf]
        %v532 = vld [vmem:[%s3 + $0xc] sm:$0xf]
        %v533 = vld [vmem:[%s3 + $0x10] sm:$0xf]
        %v534 = vld [vmem:[%s3 + $0x14] sm:$0xf]
        %v535 = vld [vmem:[%s3 + $0x18] sm:$0xf]
        %v536 = vld [vmem:[%s3 + $0x1c] sm:$0xf]
        %v545 = vunpack.c.l.b16 %v529
        %v546 = vunpack.c.l.b16 %v530
        %v547 = vunpack.c.l.b16 %v531
        %v548 = vunpack.c.l.b16 %v532
        %v549 = vunpack.c.l.b16 %v533
        %v550 = vunpack.c.l.b16 %v534
        %v551 = vunpack.c.l.b16 %v535
        %v552 = vunpack.c.l.b16 %v536
        %v553 = vpack.c.b16 %v546, %v545
        %v554 = vpack.c.b16 %v548, %v547
        %v555 = vpack.c.b16 %v550, %v549
        %v556 = vpack.c.b16 %v552, %v551
        %v561 = vcombine.high %v344, %v344
        %v563 = vunpack.c.l.s4 1983009808
        %v564 = vunpack.c.0.s8 %v563
        %v565 = vlaneseq
        %v566 = vshrl.u32 %v565, 7
        %v567 = vsub.s32 %v564, %v566
        %v568 = vrot.slane %v344, %v567
        %v570 = vunpack.c.l.s4 1983009808
        %v571 = vunpack.c.0.s8 %v570
        %v572 = vlaneseq
        %v573 = vshrl.u32 %v572, 7
        %v574 = vsub.s32 %v571, %v573
        %v575 = vrot.slane %v561, %v574
        %v576 = vcombine.high %v568, %v568
        %v577 = vcombine.high %v575, %v575
        %v578 = vcombine.high %v345, %v345
        %v580 = vunpack.c.l.s4 1983009808
        %v581 = vunpack.c.0.s8 %v580
        %v582 = vlaneseq
        %v583 = vshrl.u32 %v582, 7
        %v584 = vsub.s32 %v581, %v583
        %v585 = vrot.slane %v345, %v584
        %v587 = vunpack.c.l.s4 1983009808
        %v588 = vunpack.c.0.s8 %v587
        %v589 = vlaneseq
        %v590 = vshrl.u32 %v589, 7
        %v591 = vsub.s32 %v588, %v590
        %v592 = vrot.slane %v578, %v591
        %v593 = vcombine.high %v585, %v585
        %v594 = vcombine.high %v592, %v592
        %v595 = vcombine.high %v346, %v346
        %v597 = vunpack.c.l.s4 1983009808
        %v598 = vunpack.c.0.s8 %v597
        %v599 = vlaneseq
        %v600 = vshrl.u32 %v599, 7
        %v601 = vsub.s32 %v598, %v600
        %v602 = vrot.slane %v346, %v601
        %v604 = vunpack.c.l.s4 1983009808
        %v605 = vunpack.c.0.s8 %v604
        %v606 = vlaneseq
        %v607 = vshrl.u32 %v606, 7
        %v608 = vsub.s32 %v605, %v607
        %v609 = vrot.slane %v595, %v608
        %v610 = vcombine.high %v602, %v602
        %v611 = vcombine.high %v609, %v609
        %v612 = vcombine.high %v347, %v347
        %v614 = vunpack.c.l.s4 1983009808
        %v615 = vunpack.c.0.s8 %v614
        %v616 = vlaneseq
        %v617 = vshrl.u32 %v616, 7
        %v618 = vsub.s32 %v615, %v617
        %v619 = vrot.slane %v347, %v618
        %v621 = vunpack.c.l.s4 1983009808
        %v622 = vunpack.c.0.s8 %v621
        %v623 = vlaneseq
        %v624 = vshrl.u32 %v623, 7
        %v625 = vsub.s32 %v622, %v624
        %v626 = vrot.slane %v612, %v625
        %v627 = vcombine.high %v619, %v619
        %v628 = vcombine.high %v626, %v626
        %v630 = vsel %vm433, %v553, 0
        %v633 = vsel %vm433, %v554, 0
        %v636 = vsel %vm433, %v555, 0
        %v639 = vsel %vm433, %v556, 0
        %v642 = vand.u32 %v568, %v449
        %v645 = vand.u32 %v576, %v449
        %v648 = vand.u32 %v575, %v449
        %v651 = vand.u32 %v577, %v449
        %v654 = vand.u32 %v585, %v449
        %v657 = vand.u32 %v593, %v449
        %v660 = vand.u32 %v592, %v449
        %v663 = vand.u32 %v594, %v449
        %v666 = vand.u32 %v602, %v449
        %v669 = vand.u32 %v610, %v449
        %v672 = vand.u32 %v609, %v449
        %v675 = vand.u32 %v611, %v449
        %v678 = vand.u32 %v619, %v449
        %v681 = vand.u32 %v627, %v449
        %v684 = vand.u32 %v626, %v449
        %v687 = vand.u32 %v628, %v449
        %689 = vmatprep.subr.bf16.mxu0 %v645
        %690 = vmatpush1.bf16.msra.mxu0 %v642
        %691 = vmatprep.subr.bf16.mxu0 0
        %692 = vmatpush1.bf16.msra.mxu0 0
        %693 = vmatprep.subr.bf16.mxu0 0
        %694 = vmatpush1.bf16.msra.mxu0 0
        %695 = vmatprep.subr.bf16.mxu0 0
        %696 = vmatpush1.bf16.msra.mxu0 0
        %697 = vmatprep.subr.bf16.mxu0 0
        %698 = vmatpush1.bf16.msra.mxu0 0
        %699 = vmatprep.subr.bf16.mxu0 0
        %700 = vmatpush1.bf16.msra.mxu0 0
        %701 = vmatprep.subr.bf16.mxu0 0
        %702 = vmatpush1.bf16.msra.mxu0 0
        %703 = vmatprep.subr.bf16.mxu0 0
        %704 = vmatpush1.bf16.msra.mxu0 0
        %705 = vmatprep.subr.bf16.mxu0 0
        %706 = vmatpush1.bf16.msra.mxu0 0
        %707 = vmatprep.subr.bf16.mxu0 0
        %708 = vmatpush1.bf16.msra.mxu0 0
        %709 = vmatprep.subr.bf16.mxu0 0
        %710 = vmatpush1.bf16.msra.mxu0 0
        %711 = vmatprep.subr.bf16.mxu0 0
        %712 = vmatpush1.bf16.msra.mxu0 0
        %713 = vmatprep.subr.bf16.mxu0 0
        %714 = vmatpush1.bf16.msra.mxu0 0
        %715 = vmatprep.subr.bf16.mxu0 0
        %716 = vmatpush1.bf16.msra.mxu0 0
        %717 = vmatprep.subr.bf16.mxu0 0
        %718 = vmatpush1.bf16.msra.mxu0 0
        %719 = vmatprep.subr.bf16.mxu0 0
        %720 = vmatpush1.bf16.msra.mxu0 0
        %721 = vmatprep.mubr.bf16.mxu0 0
        %722 = vmatmul.mubr.bf16.gmra.mrb[0].mxu0 %v630
        %v723 = vpop.f32.mrb[0].mxu0
        %v724 = vadd.f32 %v491, %v723
        %v725 = vpop.f32.mrb[0].mxu0
        %v726 = vadd.f32 %v493, %v725
        %v727 = vpop.f32.mrb[0].mxu0
        %v728 = vadd.f32 %v495, %v727
        %v729 = vpop.f32.mrb[0].mxu0
        %v730 = vadd.f32 %v497, %v729
        %731 = vmatprep.mubr.bf16.mxu0 0
        %732 = vmatmul.mubr.bf16.gmra.mrb[0].mxu0 %v633
        %v733 = vpop.f32.mrb[0].mxu0
        %v734 = vadd.f32 %v501, %v733
        %v735 = vpop.f32.mrb[0].mxu0
        %v736 = vadd.f32 %v503, %v735
        %v737 = vpop.f32.mrb[0].mxu0
        %v738 = vadd.f32 %v505, %v737
        %v739 = vpop.f32.mrb[0].mxu0
        %v740 = vadd.f32 %v507, %v739
        %741 = vmatprep.mubr.bf16.mxu0 0
        %742 = vmatmul.mubr.bf16.gmra.mrb[0].mxu0 %v636
        %v743 = vpop.f32.mrb[0].mxu0
        %v744 = vadd.f32 %v511, %v743
        %v745 = vpop.f32.mrb[0].mxu0
        %v746 = vadd.f32 %v513, %v745
        %v747 = vpop.f32.mrb[0].mxu0
        %v748 = vadd.f32 %v515, %v747
        %v749 = vpop.f32.mrb[0].mxu0
        %v750 = vadd.f32 %v517, %v749
        %751 = vmatprep.mubr.bf16.mxu0 0
        %752 = vmatmul.mubr.bf16.gmra.mrb[0].mxu0 %v639
        %v753 = vpop.f32.mrb[0].mxu0
        %v754 = vadd.f32 %v521, %v753
        %v755 = vpop.f32.mrb[0].mxu0
        %v756 = vadd.f32 %v523, %v755
        %v757 = vpop.f32.mrb[0].mxu0
        %v758 = vadd.f32 %v525, %v757
        %v759 = vpop.f32.mrb[0].mxu0
        %v760 = vadd.f32 %v527, %v759
        %761 = vdwg.mxu0
        %762 = vmatprep.subr.bf16.mxu0 %v651
        %763 = vmatpush1.bf16.msra.mxu0 %v648
        %764 = vmatprep.subr.bf16.mxu0 0
        %765 = vmatpush1.bf16.msra.mxu0 0
        %766 = vmatprep.subr.bf16.mxu0 0
        %767 = vmatpush1.bf16.msra.mxu0 0
        %768 = vmatprep.subr.bf16.mxu0 0
        %769 = vmatpush1.bf16.msra.mxu0 0
        %770 = vmatprep.subr.bf16.mxu0 0
        %771 = vmatpush1.bf16.msra.mxu0 0
        %772 = vmatprep.subr.bf16.mxu0 0
        %773 = vmatpush1.bf16.msra.mxu0 0
        %774 = vmatprep.subr.bf16.mxu0 0
        %775 = vmatpush1.bf16.msra.mxu0 0
        %776 = vmatprep.subr.bf16.mxu0 0
        %777 = vmatpush1.bf16.msra.mxu0 0
        %778 = vmatprep.subr.bf16.mxu0 0
        %779 = vmatpush1.bf16.msra.mxu0 0
        %780 = vmatprep.subr.bf16.mxu0 0
        %781 = vmatpush1.bf16.msra.mxu0 0
        %782 = vmatprep.subr.bf16.mxu0 0
        %783 = vmatpush1.bf16.msra.mxu0 0
        %784 = vmatprep.subr.bf16.mxu0 0
        %785 = vmatpush1.bf16.msra.mxu0 0
        %786 = vmatprep.subr.bf16.mxu0 0
        %787 = vmatpush1.bf16.msra.mxu0 0
        %788 = vmatprep.subr.bf16.mxu0 0
        %789 = vmatpush1.bf16.msra.mxu0 0
        %790 = vmatprep.subr.bf16.mxu0 0
        %791 = vmatpush1.bf16.msra.mxu0 0
        %792 = vmatprep.subr.bf16.mxu0 0
        %793 = vmatpush1.bf16.msra.mxu0 0
        %794 = vmatprep.mubr.bf16.mxu0 0
        %795 = vmatmul.mubr.bf16.gmra.mrb[0].mxu0 %v630
        %v796 = vpop.f32.mrb[0].mxu0
        %v797 = vadd.f32 %v491, %v796
        %v798 = vpop.f32.mrb[0].mxu0
        %v799 = vadd.f32 %v493, %v798
        %v800 = vpop.f32.mrb[0].mxu0
        %v801 = vadd.f32 %v495, %v800
        %v802 = vpop.f32.mrb[0].mxu0
        %v803 = vadd.f32 %v497, %v802
        %804 = vmatprep.mubr.bf16.mxu0 0
        %805 = vmatmul.mubr.bf16.gmra.mrb[0].mxu0 %v633
        %v806 = vpop.f32.mrb[0].mxu0
        %v807 = vadd.f32 %v501, %v806
        %v808 = vpop.f32.mrb[0].mxu0
        %v809 = vadd.f32 %v503, %v808
        %v810 = vpop.f32.mrb[0].mxu0
        %v811 = vadd.f32 %v505, %v810
        %v812 = vpop.f32.mrb[0].mxu0
        %v813 = vadd.f32 %v507, %v812
        %814 = vmatprep.mubr.bf16.mxu0 0
        %815 = vmatmul.mubr.bf16.gmra.mrb[0].mxu0 %v636
        %v816 = vpop.f32.mrb[0].mxu0
        %v817 = vadd.f32 %v511, %v816
        %v818 = vpop.f32.mrb[0].mxu0
        %v819 = vadd.f32 %v513, %v818
        %v820 = vpop.f32.mrb[0].mxu0
        %v821 = vadd.f32 %v515, %v820
        %v822 = vpop.f32.mrb[0].mxu0
        %v823 = vadd.f32 %v517, %v822
        %824 = vmatprep.mubr.bf16.mxu0 0
        %825 = vmatmul.mubr.bf16.gmra.mrb[0].mxu0 %v639
        %v826 = vpop.f32.mrb[0].mxu0
        %v827 = vadd.f32 %v521, %v826
        %v828 = vpop.f32.mrb[0].mxu0
        %v829 = vadd.f32 %v523, %v828
        %v830 = vpop.f32.mrb[0].mxu0
        %v831 = vadd.f32 %v525, %v830
        %v832 = vpop.f32.mrb[0].mxu0
        %v833 = vadd.f32 %v527, %v832
        %834 = vdwg.mxu0
        %835 = vmatprep.subr.bf16.mxu0 %v657
        %836 = vmatpush1.bf16.msra.mxu0 %v654
        %837 = vmatprep.subr.bf16.mxu0 0
        %838 = vmatpush1.bf16.msra.mxu0 0
        %839 = vmatprep.subr.bf16.mxu0 0
        %840 = vmatpush1.bf16.msra.mxu0 0
        %841 = vmatprep.subr.bf16.mxu0 0
        %842 = vmatpush1.bf16.msra.mxu0 0
        %843 = vmatprep.subr.bf16.mxu0 0
        %844 = vmatpush1.bf16.msra.mxu0 0
        %845 = vmatprep.subr.bf16.mxu0 0
        %846 = vmatpush1.bf16.msra.mxu0 0
        %847 = vmatprep.subr.bf16.mxu0 0
        %848 = vmatpush1.bf16.msra.mxu0 0
        %849 = vmatprep.subr.bf16.mxu0 0
        %850 = vmatpush1.bf16.msra.mxu0 0
        %851 = vmatprep.subr.bf16.mxu0 0
        %852 = vmatpush1.bf16.msra.mxu0 0
        %853 = vmatprep.subr.bf16.mxu0 0
        %854 = vmatpush1.bf16.msra.mxu0 0
        %855 = vmatprep.subr.bf16.mxu0 0
        %856 = vmatpush1.bf16.msra.mxu0 0
        %857 = vmatprep.subr.bf16.mxu0 0
        %858 = vmatpush1.bf16.msra.mxu0 0
        %859 = vmatprep.subr.bf16.mxu0 0
        %860 = vmatpush1.bf16.msra.mxu0 0
        %861 = vmatprep.subr.bf16.mxu0 0
        %862 = vmatpush1.bf16.msra.mxu0 0
        %863 = vmatprep.subr.bf16.mxu0 0
        %864 = vmatpush1.bf16.msra.mxu0 0
        %865 = vmatprep.subr.bf16.mxu0 0
        %866 = vmatpush1.bf16.msra.mxu0 0
        %867 = vmatprep.mubr.bf16.mxu0 0
        %868 = vmatmul.mubr.bf16.gmra.mrb[0].mxu0 %v630
        %v869 = vpop.f32.mrb[0].mxu0
        %v870 = vadd.f32 %v491, %v869
        %v871 = vpop.f32.mrb[0].mxu0
        %v872 = vadd.f32 %v493, %v871
        %v873 = vpop.f32.mrb[0].mxu0
        %v874 = vadd.f32 %v495, %v873
        %v875 = vpop.f32.mrb[0].mxu0
        %v876 = vadd.f32 %v497, %v875
        %877 = vmatprep.mubr.bf16.mxu0 0
        %878 = vmatmul.mubr.bf16.gmra.mrb[0].mxu0 %v633
        %v879 = vpop.f32.mrb[0].mxu0
        %v880 = vadd.f32 %v501, %v879
        %v881 = vpop.f32.mrb[0].mxu0
        %v882 = vadd.f32 %v503, %v881
        %v883 = vpop.f32.mrb[0].mxu0
        %v884 = vadd.f32 %v505, %v883
        %v885 = vpop.f32.mrb[0].mxu0
        %v886 = vadd.f32 %v507, %v885
        %887 = vmatprep.mubr.bf16.mxu0 0
        %888 = vmatmul.mubr.bf16.gmra.mrb[0].mxu0 %v636
        %v889 = vpop.f32.mrb[0].mxu0
        %v890 = vadd.f32 %v511, %v889
        %v891 = vpop.f32.mrb[0].mxu0
        %v892 = vadd.f32 %v513, %v891
        %v893 = vpop.f32.mrb[0].mxu0
        %v894 = vadd.f32 %v515, %v893
        %v895 = vpop.f32.mrb[0].mxu0
        %v896 = vadd.f32 %v517, %v895
        %897 = vmatprep.mubr.bf16.mxu0 0
        %898 = vmatmul.mubr.bf16.gmra.mrb[0].mxu0 %v639
        %v899 = vpop.f32.mrb[0].mxu0
        %v900 = vadd.f32 %v521, %v899
        %v901 = vpop.f32.mrb[0].mxu0
        %v902 = vadd.f32 %v523, %v901
        %v903 = vpop.f32.mrb[0].mxu0
        %v904 = vadd.f32 %v525, %v903
        %v905 = vpop.f32.mrb[0].mxu0
        %v906 = vadd.f32 %v527, %v905
        %907 = vdwg.mxu0
        %908 = vmatprep.subr.bf16.mxu0 %v663
        %909 = vmatpush1.bf16.msra.mxu0 %v660
        %910 = vmatprep.subr.bf16.mxu0 0
        %911 = vmatpush1.bf16.msra.mxu0 0
        %912 = vmatprep.subr.bf16.mxu0 0
        %913 = vmatpush1.bf16.msra.mxu0 0
        %914 = vmatprep.subr.bf16.mxu0 0
        %915 = vmatpush1.bf16.msra.mxu0 0
        %916 = vmatprep.subr.bf16.mxu0 0
        %917 = vmatpush1.bf16.msra.mxu0 0
        %918 = vmatprep.subr.bf16.mxu0 0
        %919 = vmatpush1.bf16.msra.mxu0 0
        %920 = vmatprep.subr.bf16.mxu0 0
        %921 = vmatpush1.bf16.msra.mxu0 0
        %922 = vmatprep.subr.bf16.mxu0 0
        %923 = vmatpush1.bf16.msra.mxu0 0
        %924 = vmatprep.subr.bf16.mxu0 0
        %925 = vmatpush1.bf16.msra.mxu0 0
        %926 = vmatprep.subr.bf16.mxu0 0
        %927 = vmatpush1.bf16.msra.mxu0 0
        %928 = vmatprep.subr.bf16.mxu0 0
        %929 = vmatpush1.bf16.msra.mxu0 0
        %930 = vmatprep.subr.bf16.mxu0 0
        %931 = vmatpush1.bf16.msra.mxu0 0
        %932 = vmatprep.subr.bf16.mxu0 0
        %933 = vmatpush1.bf16.msra.mxu0 0
        %934 = vmatprep.subr.bf16.mxu0 0
        %935 = vmatpush1.bf16.msra.mxu0 0
        %936 = vmatprep.subr.bf16.mxu0 0
        %937 = vmatpush1.bf16.msra.mxu0 0
        %938 = vmatprep.subr.bf16.mxu0 0
        %939 = vmatpush1.bf16.msra.mxu0 0
        %940 = vmatprep.mubr.bf16.mxu0 0
        %941 = vmatmul.mubr.bf16.gmra.mrb[0].mxu0 %v630
        %v942 = vpop.f32.mrb[0].mxu0
        %v943 = vadd.f32 %v491, %v942
        %v944 = vpop.f32.mrb[0].mxu0
        %v945 = vadd.f32 %v493, %v944
        %v946 = vpop.f32.mrb[0].mxu0
        %v947 = vadd.f32 %v495, %v946
        %v948 = vpop.f32.mrb[0].mxu0
        %v949 = vadd.f32 %v497, %v948
        %950 = vmatprep.mubr.bf16.mxu0 0
        %951 = vmatmul.mubr.bf16.gmra.mrb[0].mxu0 %v633
        %v952 = vpop.f32.mrb[0].mxu0
        %v953 = vadd.f32 %v501, %v952
        %v954 = vpop.f32.mrb[0].mxu0
        %v955 = vadd.f32 %v503, %v954
        %v956 = vpop.f32.mrb[0].mxu0
        %v957 = vadd.f32 %v505, %v956
        %v958 = vpop.f32.mrb[0].mxu0
        %v959 = vadd.f32 %v507, %v958
        %960 = vmatprep.mubr.bf16.mxu0 0
        %961 = vmatmul.mubr.bf16.gmra.mrb[0].mxu0 %v636
        %v962 = vpop.f32.mrb[0].mxu0
        %v963 = vadd.f32 %v511, %v962
        %v964 = vpop.f32.mrb[0].mxu0
        %v965 = vadd.f32 %v513, %v964
        %v966 = vpop.f32.mrb[0].mxu0
        %v967 = vadd.f32 %v515, %v966
        %v968 = vpop.f32.mrb[0].mxu0
        %v969 = vadd.f32 %v517, %v968
        %970 = vmatprep.mubr.bf16.mxu0 0
        %971 = vmatmul.mubr.bf16.gmra.mrb[0].mxu0 %v639
        %v972 = vpop.f32.mrb[0].mxu0
        %v973 = vadd.f32 %v521, %v972
        %v974 = vpop.f32.mrb[0].mxu0
        %v975 = vadd.f32 %v523, %v974
        %v976 = vpop.f32.mrb[0].mxu0
        %v977 = vadd.f32 %v525, %v976
        %v978 = vpop.f32.mrb[0].mxu0
        %v979 = vadd.f32 %v527, %v978
        %980 = vdwg.mxu0
        %981 = vmatprep.subr.bf16.mxu0 %v669
        %982 = vmatpush1.bf16.msra.mxu0 %v666
        %983 = vmatprep.subr.bf16.mxu0 0
        %984 = vmatpush1.bf16.msra.mxu0 0
        %985 = vmatprep.subr.bf16.mxu0 0
        %986 = vmatpush1.bf16.msra.mxu0 0
        %987 = vmatprep.subr.bf16.mxu0 0
        %988 = vmatpush1.bf16.msra.mxu0 0
        %989 = vmatprep.subr.bf16.mxu0 0
        %990 = vmatpush1.bf16.msra.mxu0 0
        %991 = vmatprep.subr.bf16.mxu0 0
        %992 = vmatpush1.bf16.msra.mxu0 0
        %993 = vmatprep.subr.bf16.mxu0 0
        %994 = vmatpush1.bf16.msra.mxu0 0
        %995 = vmatprep.subr.bf16.mxu0 0
        %996 = vmatpush1.bf16.msra.mxu0 0
        %997 = vmatprep.subr.bf16.mxu0 0
        %998 = vmatpush1.bf16.msra.mxu0 0
        %999 = vmatprep.subr.bf16.mxu0 0
        %1000 = vmatpush1.bf16.msra.mxu0 0
        %1001 = vmatprep.subr.bf16.mxu0 0
        %1002 = vmatpush1.bf16.msra.mxu0 0
        %1003 = vmatprep.subr.bf16.mxu0 0
        %1004 = vmatpush1.bf16.msra.mxu0 0
        %1005 = vmatprep.subr.bf16.mxu0 0
        %1006 = vmatpush1.bf16.msra.mxu0 0
        %1007 = vmatprep.subr.bf16.mxu0 0
        %1008 = vmatpush1.bf16.msra.mxu0 0
        %1009 = vmatprep.subr.bf16.mxu0 0
        %1010 = vmatpush1.bf16.msra.mxu0 0
        %1011 = vmatprep.subr.bf16.mxu0 0
        %1012 = vmatpush1.bf16.msra.mxu0 0
        %1013 = vmatprep.mubr.bf16.mxu0 0
        %1014 = vmatmul.mubr.bf16.gmra.mrb[0].mxu0 %v630
        %v1015 = vpop.f32.mrb[0].mxu0
        %v1016 = vadd.f32 %v491, %v1015
        %v1017 = vpop.f32.mrb[0].mxu0
        %v1018 = vadd.f32 %v493, %v1017
        %v1019 = vpop.f32.mrb[0].mxu0
        %v1020 = vadd.f32 %v495, %v1019
        %v1021 = vpop.f32.mrb[0].mxu0
        %v1022 = vadd.f32 %v497, %v1021
        %1023 = vmatprep.mubr.bf16.mxu0 0
        %1024 = vmatmul.mubr.bf16.gmra.mrb[0].mxu0 %v633
        %v1025 = vpop.f32.mrb[0].mxu0
        %v1026 = vadd.f32 %v501, %v1025
        %v1027 = vpop.f32.mrb[0].mxu0
        %v1028 = vadd.f32 %v503, %v1027
        %v1029 = vpop.f32.mrb[0].mxu0
        %v1030 = vadd.f32 %v505, %v1029
        %v1031 = vpop.f32.mrb[0].mxu0
        %v1032 = vadd.f32 %v507, %v1031
        %1033 = vmatprep.mubr.bf16.mxu0 0
        %1034 = vmatmul.mubr.bf16.gmra.mrb[0].mxu0 %v636
        %v1035 = vpop.f32.mrb[0].mxu0
        %v1036 = vadd.f32 %v511, %v1035
        %v1037 = vpop.f32.mrb[0].mxu0
        %v1038 = vadd.f32 %v513, %v1037
        %v1039 = vpop.f32.mrb[0].mxu0
        %v1040 = vadd.f32 %v515, %v1039
        %v1041 = vpop.f32.mrb[0].mxu0
        %v1042 = vadd.f32 %v517, %v1041
        %1043 = vmatprep.mubr.bf16.mxu0 0
        %1044 = vmatmul.mubr.bf16.gmra.mrb[0].mxu0 %v639
        %v1045 = vpop.f32.mrb[0].mxu0
        %v1046 = vadd.f32 %v521, %v1045
        %v1047 = vpop.f32.mrb[0].mxu0
        %v1048 = vadd.f32 %v523, %v1047
        %v1049 = vpop.f32.mrb[0].mxu0
        %v1050 = vadd.f32 %v525, %v1049
        %v1051 = vpop.f32.mrb[0].mxu0
        %v1052 = vadd.f32 %v527, %v1051
        %1053 = vdwg.mxu0
        %1054 = vmatprep.subr.bf16.mxu0 %v675
        %1055 = vmatpush1.bf16.msra.mxu0 %v672
        %1056 = vmatprep.subr.bf16.mxu0 0
        %1057 = vmatpush1.bf16.msra.mxu0 0
        %1058 = vmatprep.subr.bf16.mxu0 0
        %1059 = vmatpush1.bf16.msra.mxu0 0
        %1060 = vmatprep.subr.bf16.mxu0 0
        %1061 = vmatpush1.bf16.msra.mxu0 0
        %1062 = vmatprep.subr.bf16.mxu0 0
        %1063 = vmatpush1.bf16.msra.mxu0 0
        %1064 = vmatprep.subr.bf16.mxu0 0
        %1065 = vmatpush1.bf16.msra.mxu0 0
        %1066 = vmatprep.subr.bf16.mxu0 0
        %1067 = vmatpush1.bf16.msra.mxu0 0
        %1068 = vmatprep.subr.bf16.mxu0 0
        %1069 = vmatpush1.bf16.msra.mxu0 0
        %1070 = vmatprep.subr.bf16.mxu0 0
        %1071 = vmatpush1.bf16.msra.mxu0 0
        %1072 = vmatprep.subr.bf16.mxu0 0
        %1073 = vmatpush1.bf16.msra.mxu0 0
        %1074 = vmatprep.subr.bf16.mxu0 0
        %1075 = vmatpush1.bf16.msra.mxu0 0
        %1076 = vmatprep.subr.bf16.mxu0 0
        %1077 = vmatpush1.bf16.msra.mxu0 0
        %1078 = vmatprep.subr.bf16.mxu0 0
        %1079 = vmatpush1.bf16.msra.mxu0 0
        %1080 = vmatprep.subr.bf16.mxu0 0
        %1081 = vmatpush1.bf16.msra.mxu0 0
        %1082 = vmatprep.subr.bf16.mxu0 0
        %1083 = vmatpush1.bf16.msra.mxu0 0
        %1084 = vmatprep.subr.bf16.mxu0 0
        %1085 = vmatpush1.bf16.msra.mxu0 0
        %1086 = vmatprep.mubr.bf16.mxu0 0
        %1087 = vmatmul.mubr.bf16.gmra.mrb[0].mxu0 %v630
        %v1088 = vpop.f32.mrb[0].mxu0
        %v1089 = vadd.f32 %v491, %v1088
        %v1090 = vpop.f32.mrb[0].mxu0
        %v1091 = vadd.f32 %v493, %v1090
        %v1092 = vpop.f32.mrb[0].mxu0
        %v1093 = vadd.f32 %v495, %v1092
        %v1094 = vpop.f32.mrb[0].mxu0
        %v1095 = vadd.f32 %v497, %v1094
        %1096 = vmatprep.mubr.bf16.mxu0 0
        %1097 = vmatmul.mubr.bf16.gmra.mrb[0].mxu0 %v633
        %v1098 = vpop.f32.mrb[0].mxu0
        %v1099 = vadd.f32 %v501, %v1098
        %v1100 = vpop.f32.mrb[0].mxu0
        %v1101 = vadd.f32 %v503, %v1100
        %v1102 = vpop.f32.mrb[0].mxu0
        %v1103 = vadd.f32 %v505, %v1102
        %v1104 = vpop.f32.mrb[0].mxu0
        %v1105 = vadd.f32 %v507, %v1104
        %1106 = vmatprep.mubr.bf16.mxu0 0
        %1107 = vmatmul.mubr.bf16.gmra.mrb[0].mxu0 %v636
        %v1108 = vpop.f32.mrb[0].mxu0
        %v1109 = vadd.f32 %v511, %v1108
        %v1110 = vpop.f32.mrb[0].mxu0
        %v1111 = vadd.f32 %v513, %v1110
        %v1112 = vpop.f32.mrb[0].mxu0
        %v1113 = vadd.f32 %v515, %v1112
        %v1114 = vpop.f32.mrb[0].mxu0
        %v1115 = vadd.f32 %v517, %v1114
        %1116 = vmatprep.mubr.bf16.mxu0 0
        %1117 = vmatmul.mubr.bf16.gmra.mrb[0].mxu0 %v639
        %v1118 = vpop.f32.mrb[0].mxu0
        %v1119 = vadd.f32 %v521, %v1118
        %v1120 = vpop.f32.mrb[0].mxu0
        %v1121 = vadd.f32 %v523, %v1120
        %v1122 = vpop.f32.mrb[0].mxu0
        %v1123 = vadd.f32 %v525, %v1122
        %v1124 = vpop.f32.mrb[0].mxu0
        %v1125 = vadd.f32 %v527, %v1124
        %1126 = vdwg.mxu0
        %1127 = vmatprep.subr.bf16.mxu0 %v681
        %1128 = vmatpush1.bf16.msra.mxu0 %v678
        %1129 = vmatprep.subr.bf16.mxu0 0
        %1130 = vmatpush1.bf16.msra.mxu0 0
        %1131 = vmatprep.subr.bf16.mxu0 0
        %1132 = vmatpush1.bf16.msra.mxu0 0
        %1133 = vmatprep.subr.bf16.mxu0 0
        %1134 = vmatpush1.bf16.msra.mxu0 0
        %1135 = vmatprep.subr.bf16.mxu0 0
        %1136 = vmatpush1.bf16.msra.mxu0 0
        %1137 = vmatprep.subr.bf16.mxu0 0
        %1138 = vmatpush1.bf16.msra.mxu0 0
        %1139 = vmatprep.subr.bf16.mxu0 0
        %1140 = vmatpush1.bf16.msra.mxu0 0
        %1141 = vmatprep.subr.bf16.mxu0 0
        %1142 = vmatpush1.bf16.msra.mxu0 0
        %1143 = vmatprep.subr.bf16.mxu0 0
        %1144 = vmatpush1.bf16.msra.mxu0 0
        %1145 = vmatprep.subr.bf16.mxu0 0
        %1146 = vmatpush1.bf16.msra.mxu0 0
        %1147 = vmatprep.subr.bf16.mxu0 0
        %1148 = vmatpush1.bf16.msra.mxu0 0
        %1149 = vmatprep.subr.bf16.mxu0 0
        %1150 = vmatpush1.bf16.msra.mxu0 0
        %1151 = vmatprep.subr.bf16.mxu0 0
        %1152 = vmatpush1.bf16.msra.mxu0 0
        %1153 = vmatprep.subr.bf16.mxu0 0
        %1154 = vmatpush1.bf16.msra.mxu0 0
        %1155 = vmatprep.subr.bf16.mxu0 0
        %1156 = vmatpush1.bf16.msra.mxu0 0
        %1157 = vmatprep.subr.bf16.mxu0 0
        %1158 = vmatpush1.bf16.msra.mxu0 0
        %1159 = vmatprep.mubr.bf16.mxu0 0
        %1160 = vmatmul.mubr.bf16.gmra.mrb[0].mxu0 %v630
        %v1161 = vpop.f32.mrb[0].mxu0
        %v1162 = vadd.f32 %v491, %v1161
        %v1163 = vpop.f32.mrb[0].mxu0
        %v1164 = vadd.f32 %v493, %v1163
        %v1165 = vpop.f32.mrb[0].mxu0
        %v1166 = vadd.f32 %v495, %v1165
        %v1167 = vpop.f32.mrb[0].mxu0
        %v1168 = vadd.f32 %v497, %v1167
        %1169 = vmatprep.mubr.bf16.mxu0 0
        %1170 = vmatmul.mubr.bf16.gmra.mrb[0].mxu0 %v633
        %v1171 = vpop.f32.mrb[0].mxu0
        %v1172 = vadd.f32 %v501, %v1171
        %v1173 = vpop.f32.mrb[0].mxu0
        %v1174 = vadd.f32 %v503, %v1173
        %v1175 = vpop.f32.mrb[0].mxu0
        %v1176 = vadd.f32 %v505, %v1175
        %v1177 = vpop.f32.mrb[0].mxu0
        %v1178 = vadd.f32 %v507, %v1177
        %1179 = vmatprep.mubr.bf16.mxu0 0
        %1180 = vmatmul.mubr.bf16.gmra.mrb[0].mxu0 %v636
        %v1181 = vpop.f32.mrb[0].mxu0
        %v1182 = vadd.f32 %v511, %v1181
        %v1183 = vpop.f32.mrb[0].mxu0
        %v1184 = vadd.f32 %v513, %v1183
        %v1185 = vpop.f32.mrb[0].mxu0
        %v1186 = vadd.f32 %v515, %v1185
        %v1187 = vpop.f32.mrb[0].mxu0
        %v1188 = vadd.f32 %v517, %v1187
        %1189 = vmatprep.mubr.bf16.mxu0 0
        %1190 = vmatmul.mubr.bf16.gmra.mrb[0].mxu0 %v639
        %v1191 = vpop.f32.mrb[0].mxu0
        %v1192 = vadd.f32 %v521, %v1191
        %v1193 = vpop.f32.mrb[0].mxu0
        %v1194 = vadd.f32 %v523, %v1193
        %v1195 = vpop.f32.mrb[0].mxu0
        %v1196 = vadd.f32 %v525, %v1195
        %v1197 = vpop.f32.mrb[0].mxu0
        %v1198 = vadd.f32 %v527, %v1197
        %1199 = vdwg.mxu0
        %1200 = vmatprep.subr.bf16.mxu0 %v687
        %1201 = vmatpush1.bf16.msra.mxu0 %v684
        %1202 = vmatprep.subr.bf16.mxu0 0
        %1203 = vmatpush1.bf16.msra.mxu0 0
        %1204 = vmatprep.subr.bf16.mxu0 0
        %1205 = vmatpush1.bf16.msra.mxu0 0
        %1206 = vmatprep.subr.bf16.mxu0 0
        %1207 = vmatpush1.bf16.msra.mxu0 0
        %1208 = vmatprep.subr.bf16.mxu0 0
        %1209 = vmatpush1.bf16.msra.mxu0 0
        %1210 = vmatprep.subr.bf16.mxu0 0
        %1211 = vmatpush1.bf16.msra.mxu0 0
        %1212 = vmatprep.subr.bf16.mxu0 0
        %1213 = vmatpush1.bf16.msra.mxu0 0
        %1214 = vmatprep.subr.bf16.mxu0 0
        %1215 = vmatpush1.bf16.msra.mxu0 0
        %1216 = vmatprep.subr.bf16.mxu0 0
        %1217 = vmatpush1.bf16.msra.mxu0 0
        %1218 = vmatprep.subr.bf16.mxu0 0
        %1219 = vmatpush1.bf16.msra.mxu0 0
        %1220 = vmatprep.subr.bf16.mxu0 0
        %1221 = vmatpush1.bf16.msra.mxu0 0
        %1222 = vmatprep.subr.bf16.mxu0 0
        %1223 = vmatpush1.bf16.msra.mxu0 0
        %1224 = vmatprep.subr.bf16.mxu0 0
        %1225 = vmatpush1.bf16.msra.mxu0 0
        %1226 = vmatprep.subr.bf16.mxu0 0
        %1227 = vmatpush1.bf16.msra.mxu0 0
        %1228 = vmatprep.subr.bf16.mxu0 0
        %1229 = vmatpush1.bf16.msra.mxu0 0
        %1230 = vmatprep.subr.bf16.mxu0 0
        %1231 = vmatpush1.bf16.msra.mxu0 0
        %1232 = vmatprep.mubr.bf16.mxu0 0
        %1233 = vmatmul.mubr.bf16.gmra.mrb[0].mxu0 %v630
        %v1234 = vpop.f32.mrb[0].mxu0
        %v1235 = vadd.f32 %v491, %v1234
        %v1236 = vpop.f32.mrb[0].mxu0
        %v1237 = vadd.f32 %v493, %v1236
        %v1238 = vpop.f32.mrb[0].mxu0
        %v1239 = vadd.f32 %v495, %v1238
        %v1240 = vpop.f32.mrb[0].mxu0
        %v1241 = vadd.f32 %v497, %v1240
        %1242 = vmatprep.mubr.bf16.mxu0 0
        %1243 = vmatmul.mubr.bf16.gmra.mrb[0].mxu0 %v633
        %v1244 = vpop.f32.mrb[0].mxu0
        %v1245 = vadd.f32 %v501, %v1244
        %v1246 = vpop.f32.mrb[0].mxu0
        %v1247 = vadd.f32 %v503, %v1246
        %v1248 = vpop.f32.mrb[0].mxu0
        %v1249 = vadd.f32 %v505, %v1248
        %v1250 = vpop.f32.mrb[0].mxu0
        %v1251 = vadd.f32 %v507, %v1250
        %1252 = vmatprep.mubr.bf16.mxu0 0
        %1253 = vmatmul.mubr.bf16.gmra.mrb[0].mxu0 %v636
        %v1254 = vpop.f32.mrb[0].mxu0
        %v1255 = vadd.f32 %v511, %v1254
        %v1256 = vpop.f32.mrb[0].mxu0
        %v1257 = vadd.f32 %v513, %v1256
        %v1258 = vpop.f32.mrb[0].mxu0
        %v1259 = vadd.f32 %v515, %v1258
        %v1260 = vpop.f32.mrb[0].mxu0
        %v1261 = vadd.f32 %v517, %v1260
        %1262 = vmatprep.mubr.bf16.mxu0 0
        %1263 = vmatmul.mubr.bf16.gmra.mrb[0].mxu0 %v639
        %v1264 = vpop.f32.mrb[0].mxu0
        %v1265 = vadd.f32 %v521, %v1264
        %v1266 = vpop.f32.mrb[0].mxu0
        %v1267 = vadd.f32 %v523, %v1266
        %v1268 = vpop.f32.mrb[0].mxu0
        %v1269 = vadd.f32 %v525, %v1268
        %v1270 = vpop.f32.mrb[0].mxu0
        %v1271 = vadd.f32 %v527, %v1270
        %1272 = vdwg.mxu0
        %vm1273 = vcmp.ge.f32.partialorder %v724, 0.0
        %vm1274 = vcmp.ge.f32.partialorder %v726, 0.0
        %vm1275 = vcmp.ge.f32.partialorder %v797, 0.0
        %vm1276 = vcmp.ge.f32.partialorder %v799, 0.0
        %vm1277 = vcmp.ge.f32.partialorder %v870, 0.0
        %vm1278 = vcmp.ge.f32.partialorder %v872, 0.0
        %vm1279 = vcmp.ge.f32.partialorder %v943, 0.0
        %vm1280 = vcmp.ge.f32.partialorder %v945, 0.0
        %vm1281 = vcmp.ge.f32.partialorder %v1016, 0.0
        %vm1282 = vcmp.ge.f32.partialorder %v1018, 0.0
        %vm1283 = vcmp.ge.f32.partialorder %v1089, 0.0
        %vm1284 = vcmp.ge.f32.partialorder %v1091, 0.0
        %vm1285 = vcmp.ge.f32.partialorder %v1162, 0.0
        %vm1286 = vcmp.ge.f32.partialorder %v1164, 0.0
        %vm1287 = vcmp.ge.f32.partialorder %v1235, 0.0
        %vm1288 = vcmp.ge.f32.partialorder %v1237, 0.0
        %vm1289 = vcmp.ge.f32.partialorder %v728, 0.0
        %vm1290 = vcmp.ge.f32.partialorder %v730, 0.0
        %vm1291 = vcmp.ge.f32.partialorder %v801, 0.0
        %vm1292 = vcmp.ge.f32.partialorder %v803, 0.0
        %vm1293 = vcmp.ge.f32.partialorder %v874, 0.0
        %vm1294 = vcmp.ge.f32.partialorder %v876, 0.0
        %vm1295 = vcmp.ge.f32.partialorder %v947, 0.0
        %vm1296 = vcmp.ge.f32.partialorder %v949, 0.0
        %vm1297 = vcmp.ge.f32.partialorder %v1020, 0.0
        %vm1298 = vcmp.ge.f32.partialorder %v1022, 0.0
        %vm1299 = vcmp.ge.f32.partialorder %v1093, 0.0
        %vm1300 = vcmp.ge.f32.partialorder %v1095, 0.0
        %vm1301 = vcmp.ge.f32.partialorder %v1166, 0.0
        %vm1302 = vcmp.ge.f32.partialorder %v1168, 0.0
        %vm1303 = vcmp.ge.f32.partialorder %v1239, 0.0
        %vm1304 = vcmp.ge.f32.partialorder %v1241, 0.0
        %vm1305 = vcmp.ge.f32.partialorder %v734, 0.0
        %vm1306 = vcmp.ge.f32.partialorder %v736, 0.0
        %vm1307 = vcmp.ge.f32.partialorder %v807, 0.0
        %vm1308 = vcmp.ge.f32.partialorder %v809, 0.0
        %vm1309 = vcmp.ge.f32.partialorder %v880, 0.0
        %vm1310 = vcmp.ge.f32.partialorder %v882, 0.0
        %vm1311 = vcmp.ge.f32.partialorder %v953, 0.0
        %vm1312 = vcmp.ge.f32.partialorder %v955, 0.0
        %vm1313 = vcmp.ge.f32.partialorder %v1026, 0.0
        %vm1314 = vcmp.ge.f32.partialorder %v1028, 0.0
        %vm1315 = vcmp.ge.f32.partialorder %v1099, 0.0
        %vm1316 = vcmp.ge.f32.partialorder %v1101, 0.0
        %vm1317 = vcmp.ge.f32.partialorder %v1172, 0.0
        %vm1318 = vcmp.ge.f32.partialorder %v1174, 0.0
        %vm1319 = vcmp.ge.f32.partialorder %v1245, 0.0
        %vm1320 = vcmp.ge.f32.partialorder %v1247, 0.0
        %vm1321 = vcmp.ge.f32.partialorder %v738, 0.0
        %vm1322 = vcmp.ge.f32.partialorder %v740, 0.0
        %vm1323 = vcmp.ge.f32.partialorder %v811, 0.0
        %vm1324 = vcmp.ge.f32.partialorder %v813, 0.0
        %vm1325 = vcmp.ge.f32.partialorder %v884, 0.0
        %vm1326 = vcmp.ge.f32.partialorder %v886, 0.0
        %vm1327 = vcmp.ge.f32.partialorder %v957, 0.0
        %vm1328 = vcmp.ge.f32.partialorder %v959, 0.0
        %vm1329 = vcmp.ge.f32.partialorder %v1030, 0.0
        %vm1330 = vcmp.ge.f32.partialorder %v1032, 0.0
        %vm1331 = vcmp.ge.f32.partialorder %v1103, 0.0
        %vm1332 = vcmp.ge.f32.partialorder %v1105, 0.0
        %vm1333 = vcmp.ge.f32.partialorder %v1176, 0.0
        %vm1334 = vcmp.ge.f32.partialorder %v1178, 0.0
        %vm1335 = vcmp.ge.f32.partialorder %v1249, 0.0
        %vm1336 = vcmp.ge.f32.partialorder %v1251, 0.0
        %vm1337 = vcmp.ge.f32.partialorder %v744, 0.0
        %vm1338 = vcmp.ge.f32.partialorder %v746, 0.0
        %vm1339 = vcmp.ge.f32.partialorder %v817, 0.0
        %vm1340 = vcmp.ge.f32.partialorder %v819, 0.0
        %vm1341 = vcmp.ge.f32.partialorder %v890, 0.0
        %vm1342 = vcmp.ge.f32.partialorder %v892, 0.0
        %vm1343 = vcmp.ge.f32.partialorder %v963, 0.0
        %vm1344 = vcmp.ge.f32.partialorder %v965, 0.0
        %vm1345 = vcmp.ge.f32.partialorder %v1036, 0.0
        %vm1346 = vcmp.ge.f32.partialorder %v1038, 0.0
        %vm1347 = vcmp.ge.f32.partialorder %v1109, 0.0
        %vm1348 = vcmp.ge.f32.partialorder %v1111, 0.0
        %vm1349 = vcmp.ge.f32.partialorder %v1182, 0.0
        %vm1350 = vcmp.ge.f32.partialorder %v1184, 0.0
        %vm1351 = vcmp.ge.f32.partialorder %v1255, 0.0
        %vm1352 = vcmp.ge.f32.partialorder %v1257, 0.0
        %vm1353 = vcmp.ge.f32.partialorder %v748, 0.0
        %vm1354 = vcmp.ge.f32.partialorder %v750, 0.0
        %vm1355 = vcmp.ge.f32.partialorder %v821, 0.0
        %vm1356 = vcmp.ge.f32.partialorder %v823, 0.0
        %vm1357 = vcmp.ge.f32.partialorder %v894, 0.0
        %vm1358 = vcmp.ge.f32.partialorder %v896, 0.0
        %vm1359 = vcmp.ge.f32.partialorder %v967, 0.0
        %vm1360 = vcmp.ge.f32.partialorder %v969, 0.0
        %vm1361 = vcmp.ge.f32.partialorder %v1040, 0.0
        %vm1362 = vcmp.ge.f32.partialorder %v1042, 0.0
        %vm1363 = vcmp.ge.f32.partialorder %v1113, 0.0
        %vm1364 = vcmp.ge.f32.partialorder %v1115, 0.0
        %vm1365 = vcmp.ge.f32.partialorder %v1186, 0.0
        %vm1366 = vcmp.ge.f32.partialorder %v1188, 0.0
        %vm1367 = vcmp.ge.f32.partialorder %v1259, 0.0
        %vm1368 = vcmp.ge.f32.partialorder %v1261, 0.0
        %vm1369 = vcmp.ge.f32.partialorder %v754, 0.0
        %vm1370 = vcmp.ge.f32.partialorder %v756, 0.0
        %vm1371 = vcmp.ge.f32.partialorder %v827, 0.0
        %vm1372 = vcmp.ge.f32.partialorder %v829, 0.0
        %vm1373 = vcmp.ge.f32.partialorder %v900, 0.0
        %vm1374 = vcmp.ge.f32.partialorder %v902, 0.0
        %vm1375 = vcmp.ge.f32.partialorder %v973, 0.0
        %vm1376 = vcmp.ge.f32.partialorder %v975, 0.0
        %vm1377 = vcmp.ge.f32.partialorder %v1046, 0.0
        %vm1378 = vcmp.ge.f32.partialorder %v1048, 0.0
        %vm1379 = vcmp.ge.f32.partialorder %v1119, 0.0
        %vm1380 = vcmp.ge.f32.partialorder %v1121, 0.0
        %vm1381 = vcmp.ge.f32.partialorder %v1192, 0.0
        %vm1382 = vcmp.ge.f32.partialorder %v1194, 0.0
        %vm1383 = vcmp.ge.f32.partialorder %v1265, 0.0
        %vm1384 = vcmp.ge.f32.partialorder %v1267, 0.0
        %vm1385 = vcmp.ge.f32.partialorder %v758, 0.0
        %vm1386 = vcmp.ge.f32.partialorder %v760, 0.0
        %vm1387 = vcmp.ge.f32.partialorder %v831, 0.0
        %vm1388 = vcmp.ge.f32.partialorder %v833, 0.0
        %vm1389 = vcmp.ge.f32.partialorder %v904, 0.0
        %vm1390 = vcmp.ge.f32.partialorder %v906, 0.0
        %vm1391 = vcmp.ge.f32.partialorder %v977, 0.0
        %vm1392 = vcmp.ge.f32.partialorder %v979, 0.0
        %vm1393 = vcmp.ge.f32.partialorder %v1050, 0.0
        %vm1394 = vcmp.ge.f32.partialorder %v1052, 0.0
        %vm1395 = vcmp.ge.f32.partialorder %v1123, 0.0
        %vm1396 = vcmp.ge.f32.partialorder %v1125, 0.0
        %vm1397 = vcmp.ge.f32.partialorder %v1196, 0.0
        %vm1398 = vcmp.ge.f32.partialorder %v1198, 0.0
        %vm1399 = vcmp.ge.f32.partialorder %v1269, 0.0
        %vm1400 = vcmp.ge.f32.partialorder %v1271, 0.0
        %v1401 = vmul.f32 %v724, 0.2
        %v1402 = vmul.f32 %v726, 0.2
        %v1403 = vmul.f32 %v797, 0.2
        %v1404 = vmul.f32 %v799, 0.2
        %v1405 = vmul.f32 %v870, 0.2
        %v1406 = vmul.f32 %v872, 0.2
        %v1407 = vmul.f32 %v943, 0.2
        %v1408 = vmul.f32 %v945, 0.2
        %v1409 = vmul.f32 %v1016, 0.2
        %v1410 = vmul.f32 %v1018, 0.2
        %v1411 = vmul.f32 %v1089, 0.2
        %v1412 = vmul.f32 %v1091, 0.2
        %v1413 = vmul.f32 %v1162, 0.2
        %v1414 = vmul.f32 %v1164, 0.2
        %v1415 = vmul.f32 %v1235, 0.2
        %v1416 = vmul.f32 %v1237, 0.2
        %v1417 = vmul.f32 %v728, 0.2
        %v1418 = vmul.f32 %v730, 0.2
        %v1419 = vmul.f32 %v801, 0.2
        %v1420 = vmul.f32 %v803, 0.2
        %v1421 = vmul.f32 %v874, 0.2
        %v1422 = vmul.f32 %v876, 0.2
        %v1423 = vmul.f32 %v947, 0.2
        %v1424 = vmul.f32 %v949, 0.2
        %v1425 = vmul.f32 %v1020, 0.2
        %v1426 = vmul.f32 %v1022, 0.2
        %v1427 = vmul.f32 %v1093, 0.2
        %v1428 = vmul.f32 %v1095, 0.2
        %v1429 = vmul.f32 %v1166, 0.2
        %v1430 = vmul.f32 %v1168, 0.2
        %v1431 = vmul.f32 %v1239, 0.2
        %v1432 = vmul.f32 %v1241, 0.2
        %v1433 = vmul.f32 %v734, 0.2
        %v1434 = vmul.f32 %v736, 0.2
        %v1435 = vmul.f32 %v807, 0.2
        %v1436 = vmul.f32 %v809, 0.2
        %v1437 = vmul.f32 %v880, 0.2
        %v1438 = vmul.f32 %v882, 0.2
        %v1439 = vmul.f32 %v953, 0.2
        %v1440 = vmul.f32 %v955, 0.2
        %v1441 = vmul.f32 %v1026, 0.2
        %v1442 = vmul.f32 %v1028, 0.2
        %v1443 = vmul.f32 %v1099, 0.2
        %v1444 = vmul.f32 %v1101, 0.2
        %v1445 = vmul.f32 %v1172, 0.2
        %v1446 = vmul.f32 %v1174, 0.2
        %v1447 = vmul.f32 %v1245, 0.2
        %v1448 = vmul.f32 %v1247, 0.2
        %v1449 = vmul.f32 %v738, 0.2
        %v1450 = vmul.f32 %v740, 0.2
        %v1451 = vmul.f32 %v811, 0.2
        %v1452 = vmul.f32 %v813, 0.2
        %v1453 = vmul.f32 %v884, 0.2
        %v1454 = vmul.f32 %v886, 0.2
        %v1455 = vmul.f32 %v957, 0.2
        %v1456 = vmul.f32 %v959, 0.2
        %v1457 = vmul.f32 %v1030, 0.2
        %v1458 = vmul.f32 %v1032, 0.2
        %v1459 = vmul.f32 %v1103, 0.2
        %v1460 = vmul.f32 %v1105, 0.2
        %v1461 = vmul.f32 %v1176, 0.2
        %v1462 = vmul.f32 %v1178, 0.2
        %v1463 = vmul.f32 %v1249, 0.2
        %v1464 = vmul.f32 %v1251, 0.2
        %v1465 = vmul.f32 %v744, 0.2
        %v1466 = vmul.f32 %v746, 0.2
        %v1467 = vmul.f32 %v817, 0.2
        %v1468 = vmul.f32 %v819, 0.2
        %v1469 = vmul.f32 %v890, 0.2
        %v1470 = vmul.f32 %v892, 0.2
        %v1471 = vmul.f32 %v963, 0.2
        %v1472 = vmul.f32 %v965, 0.2
        %v1473 = vmul.f32 %v1036, 0.2
        %v1474 = vmul.f32 %v1038, 0.2
        %v1475 = vmul.f32 %v1109, 0.2
        %v1476 = vmul.f32 %v1111, 0.2
        %v1477 = vmul.f32 %v1182, 0.2
        %v1478 = vmul.f32 %v1184, 0.2
        %v1479 = vmul.f32 %v1255, 0.2
        %v1480 = vmul.f32 %v1257, 0.2
        %v1481 = vmul.f32 %v748, 0.2
        %v1482 = vmul.f32 %v750, 0.2
        %v1483 = vmul.f32 %v821, 0.2
        %v1484 = vmul.f32 %v823, 0.2
        %v1485 = vmul.f32 %v894, 0.2
        %v1486 = vmul.f32 %v896, 0.2
        %v1487 = vmul.f32 %v967, 0.2
        %v1488 = vmul.f32 %v969, 0.2
        %v1489 = vmul.f32 %v1040, 0.2
        %v1490 = vmul.f32 %v1042, 0.2
        %v1491 = vmul.f32 %v1113, 0.2
        %v1492 = vmul.f32 %v1115, 0.2
        %v1493 = vmul.f32 %v1186, 0.2
        %v1494 = vmul.f32 %v1188, 0.2
        %v1495 = vmul.f32 %v1259, 0.2
        %v1496 = vmul.f32 %v1261, 0.2
        %v1497 = vmul.f32 %v754, 0.2
        %v1498 = vmul.f32 %v756, 0.2
        %v1499 = vmul.f32 %v827, 0.2
        %v1500 = vmul.f32 %v829, 0.2
        %v1501 = vmul.f32 %v900, 0.2
        %v1502 = vmul.f32 %v902, 0.2
        %v1503 = vmul.f32 %v973, 0.2
        %v1504 = vmul.f32 %v975, 0.2
        %v1505 = vmul.f32 %v1046, 0.2
        %v1506 = vmul.f32 %v1048, 0.2
        %v1507 = vmul.f32 %v1119, 0.2
        %v1508 = vmul.f32 %v1121, 0.2
        %v1509 = vmul.f32 %v1192, 0.2
        %v1510 = vmul.f32 %v1194, 0.2
        %v1511 = vmul.f32 %v1265, 0.2
        %v1512 = vmul.f32 %v1267, 0.2
        %v1513 = vmul.f32 %v758, 0.2
        %v1514 = vmul.f32 %v760, 0.2
        %v1515 = vmul.f32 %v831, 0.2
        %v1516 = vmul.f32 %v833, 0.2
        %v1517 = vmul.f32 %v904, 0.2
        %v1518 = vmul.f32 %v906, 0.2
        %v1519 = vmul.f32 %v977, 0.2
        %v1520 = vmul.f32 %v979, 0.2
        %v1521 = vmul.f32 %v1050, 0.2
        %v1522 = vmul.f32 %v1052, 0.2
        %v1523 = vmul.f32 %v1123, 0.2
        %v1524 = vmul.f32 %v1125, 0.2
        %v1525 = vmul.f32 %v1196, 0.2
        %v1526 = vmul.f32 %v1198, 0.2
        %v1527 = vmul.f32 %v1269, 0.2
        %v1528 = vmul.f32 %v1271, 0.2
        %v1529 = vsel %vm1273, %v724, %v1401
        %v1530 = vsel %vm1274, %v726, %v1402
        %v1531 = vsel %vm1275, %v797, %v1403
        %v1532 = vsel %vm1276, %v799, %v1404
        %v1533 = vsel %vm1277, %v870, %v1405
        %v1534 = vsel %vm1278, %v872, %v1406
        %v1535 = vsel %vm1279, %v943, %v1407
        %v1536 = vsel %vm1280, %v945, %v1408
        %v1537 = vsel %vm1281, %v1016, %v1409
        %v1538 = vsel %vm1282, %v1018, %v1410
        %v1539 = vsel %vm1283, %v1089, %v1411
        %v1540 = vsel %vm1284, %v1091, %v1412
        %v1541 = vsel %vm1285, %v1162, %v1413
        %v1542 = vsel %vm1286, %v1164, %v1414
        %v1543 = vsel %vm1287, %v1235, %v1415
        %v1544 = vsel %vm1288, %v1237, %v1416
        %v1545 = vsel %vm1289, %v728, %v1417
        %v1546 = vsel %vm1290, %v730, %v1418
        %v1547 = vsel %vm1291, %v801, %v1419
        %v1548 = vsel %vm1292, %v803, %v1420
        %v1549 = vsel %vm1293, %v874, %v1421
        %v1550 = vsel %vm1294, %v876, %v1422
        %v1551 = vsel %vm1295, %v947, %v1423
        %v1552 = vsel %vm1296, %v949, %v1424
        %v1553 = vsel %vm1297, %v1020, %v1425
        %v1554 = vsel %vm1298, %v1022, %v1426
        %v1555 = vsel %vm1299, %v1093, %v1427
        %v1556 = vsel %vm1300, %v1095, %v1428
        %v1557 = vsel %vm1301, %v1166, %v1429
        %v1558 = vsel %vm1302, %v1168, %v1430
        %v1559 = vsel %vm1303, %v1239, %v1431
        %v1560 = vsel %vm1304, %v1241, %v1432
        %v1561 = vsel %vm1305, %v734, %v1433
        %v1562 = vsel %vm1306, %v736, %v1434
        %v1563 = vsel %vm1307, %v807, %v1435
        %v1564 = vsel %vm1308, %v809, %v1436
        %v1565 = vsel %vm1309, %v880, %v1437
        %v1566 = vsel %vm1310, %v882, %v1438
        %v1567 = vsel %vm1311, %v953, %v1439
        %v1568 = vsel %vm1312, %v955, %v1440
        %v1569 = vsel %vm1313, %v1026, %v1441
        %v1570 = vsel %vm1314, %v1028, %v1442
        %v1571 = vsel %vm1315, %v1099, %v1443
        %v1572 = vsel %vm1316, %v1101, %v1444
        %v1573 = vsel %vm1317, %v1172, %v1445
        %v1574 = vsel %vm1318, %v1174, %v1446
        %v1575 = vsel %vm1319, %v1245, %v1447
        %v1576 = vsel %vm1320, %v1247, %v1448
        %v1577 = vsel %vm1321, %v738, %v1449
        %v1578 = vsel %vm1322, %v740, %v1450
        %v1579 = vsel %vm1323, %v811, %v1451
        %v1580 = vsel %vm1324, %v813, %v1452
        %v1581 = vsel %vm1325, %v884, %v1453
        %v1582 = vsel %vm1326, %v886, %v1454
        %v1583 = vsel %vm1327, %v957, %v1455
        %v1584 = vsel %vm1328, %v959, %v1456
        %v1585 = vsel %vm1329, %v1030, %v1457
        %v1586 = vsel %vm1330, %v1032, %v1458
        %v1587 = vsel %vm1331, %v1103, %v1459
        %v1588 = vsel %vm1332, %v1105, %v1460
        %v1589 = vsel %vm1333, %v1176, %v1461
        %v1590 = vsel %vm1334, %v1178, %v1462
        %v1591 = vsel %vm1335, %v1249, %v1463
        %v1592 = vsel %vm1336, %v1251, %v1464
        %v1593 = vsel %vm1337, %v744, %v1465
        %v1594 = vsel %vm1338, %v746, %v1466
        %v1595 = vsel %vm1339, %v817, %v1467
        %v1596 = vsel %vm1340, %v819, %v1468
        %v1597 = vsel %vm1341, %v890, %v1469
        %v1598 = vsel %vm1342, %v892, %v1470
        %v1599 = vsel %vm1343, %v963, %v1471
        %v1600 = vsel %vm1344, %v965, %v1472
        %v1601 = vsel %vm1345, %v1036, %v1473
        %v1602 = vsel %vm1346, %v1038, %v1474
        %v1603 = vsel %vm1347, %v1109, %v1475
        %v1604 = vsel %vm1348, %v1111, %v1476
        %v1605 = vsel %vm1349, %v1182, %v1477
        %v1606 = vsel %vm1350, %v1184, %v1478
        %v1607 = vsel %vm1351, %v1255, %v1479
        %v1608 = vsel %vm1352, %v1257, %v1480
        %v1609 = vsel %vm1353, %v748, %v1481
        %v1610 = vsel %vm1354, %v750, %v1482
        %v1611 = vsel %vm1355, %v821, %v1483
        %v1612 = vsel %vm1356, %v823, %v1484
        %v1613 = vsel %vm1357, %v894, %v1485
        %v1614 = vsel %vm1358, %v896, %v1486
        %v1615 = vsel %vm1359, %v967, %v1487
        %v1616 = vsel %vm1360, %v969, %v1488
        %v1617 = vsel %vm1361, %v1040, %v1489
        %v1618 = vsel %vm1362, %v1042, %v1490
        %v1619 = vsel %vm1363, %v1113, %v1491
        %v1620 = vsel %vm1364, %v1115, %v1492
        %v1621 = vsel %vm1365, %v1186, %v1493
        %v1622 = vsel %vm1366, %v1188, %v1494
        %v1623 = vsel %vm1367, %v1259, %v1495
        %v1624 = vsel %vm1368, %v1261, %v1496
        %v1625 = vsel %vm1369, %v754, %v1497
        %v1626 = vsel %vm1370, %v756, %v1498
        %v1627 = vsel %vm1371, %v827, %v1499
        %v1628 = vsel %vm1372, %v829, %v1500
        %v1629 = vsel %vm1373, %v900, %v1501
        %v1630 = vsel %vm1374, %v902, %v1502
        %v1631 = vsel %vm1375, %v973, %v1503
        %v1632 = vsel %vm1376, %v975, %v1504
        %v1633 = vsel %vm1377, %v1046, %v1505
        %v1634 = vsel %vm1378, %v1048, %v1506
        %v1635 = vsel %vm1379, %v1119, %v1507
        %v1636 = vsel %vm1380, %v1121, %v1508
        %v1637 = vsel %vm1381, %v1192, %v1509
        %v1638 = vsel %vm1382, %v1194, %v1510
        %v1639 = vsel %vm1383, %v1265, %v1511
        %v1640 = vsel %vm1384, %v1267, %v1512
        %v1641 = vsel %vm1385, %v758, %v1513
        %v1642 = vsel %vm1386, %v760, %v1514
        %v1643 = vsel %vm1387, %v831, %v1515
        %v1644 = vsel %vm1388, %v833, %v1516
        %v1645 = vsel %vm1389, %v904, %v1517
        %v1646 = vsel %vm1390, %v906, %v1518
        %v1647 = vsel %vm1391, %v977, %v1519
        %v1648 = vsel %vm1392, %v979, %v1520
        %v1649 = vsel %vm1393, %v1050, %v1521
        %v1650 = vsel %vm1394, %v1052, %v1522
        %v1651 = vsel %vm1395, %v1123, %v1523
        %v1652 = vsel %vm1396, %v1125, %v1524
        %v1653 = vsel %vm1397, %v1196, %v1525
        %v1654 = vsel %vm1398, %v1198, %v1526
        %v1655 = vsel %vm1399, %v1269, %v1527
        %v1656 = vsel %vm1400, %v1271, %v1528
        %v1657 = vld [vmem:[%s5] sm:$0xf]
        %v1658 = vld [vmem:[%s5 + $0x4] sm:$0xf]
        %v1659 = vld [vmem:[%s5 + $0x8] sm:$0xf]
        %v1660 = vld [vmem:[%s5 + $0xc] sm:$0xf]
        %v1661 = vld [vmem:[%s5 + $0x10] sm:$0xf]
        %v1662 = vld [vmem:[%s5 + $0x14] sm:$0xf]
        %v1663 = vld [vmem:[%s5 + $0x18] sm:$0xf]
        %v1664 = vld [vmem:[%s5 + $0x1c] sm:$0xf]
        %v1665 = vpack.c.bf16 %v1545, %v1529
        %v1666 = vpack.c.bf16 %v1546, %v1530
        %v1667 = vpack.c.bf16 %v1547, %v1531
        %v1668 = vpack.c.bf16 %v1548, %v1532
        %v1669 = vpack.c.bf16 %v1549, %v1533
        %v1670 = vpack.c.bf16 %v1550, %v1534
        %v1671 = vpack.c.bf16 %v1551, %v1535
        %v1672 = vpack.c.bf16 %v1552, %v1536
        %v1673 = vpack.c.bf16 %v1553, %v1537
        %v1674 = vpack.c.bf16 %v1554, %v1538
        %v1675 = vpack.c.bf16 %v1555, %v1539
        %v1676 = vpack.c.bf16 %v1556, %v1540
        %v1677 = vpack.c.bf16 %v1557, %v1541
        %v1678 = vpack.c.bf16 %v1558, %v1542
        %v1679 = vpack.c.bf16 %v1559, %v1543
        %v1680 = vpack.c.bf16 %v1560, %v1544
        %v1681 = vpack.c.bf16 %v1577, %v1561
        %v1682 = vpack.c.bf16 %v1578, %v1562
        %v1683 = vpack.c.bf16 %v1579, %v1563
        %v1684 = vpack.c.bf16 %v1580, %v1564
        %v1685 = vpack.c.bf16 %v1581, %v1565
        %v1686 = vpack.c.bf16 %v1582, %v1566
        %v1687 = vpack.c.bf16 %v1583, %v1567
        %v1688 = vpack.c.bf16 %v1584, %v1568
        %v1689 = vpack.c.bf16 %v1585, %v1569
        %v1690 = vpack.c.bf16 %v1586, %v1570
        %v1691 = vpack.c.bf16 %v1587, %v1571
        %v1692 = vpack.c.bf16 %v1588, %v1572
        %v1693 = vpack.c.bf16 %v1589, %v1573
        %v1694 = vpack.c.bf16 %v1590, %v1574
        %v1695 = vpack.c.bf16 %v1591, %v1575
        %v1696 = vpack.c.bf16 %v1592, %v1576
        %v1697 = vpack.c.bf16 %v1609, %v1593
        %v1698 = vpack.c.bf16 %v1610, %v1594
        %v1699 = vpack.c.bf16 %v1611, %v1595
        %v1700 = vpack.c.bf16 %v1612, %v1596
        %v1701 = vpack.c.bf16 %v1613, %v1597
        %v1702 = vpack.c.bf16 %v1614, %v1598
        %v1703 = vpack.c.bf16 %v1615, %v1599
        %v1704 = vpack.c.bf16 %v1616, %v1600
        %v1705 = vpack.c.bf16 %v1617, %v1601
        %v1706 = vpack.c.bf16 %v1618, %v1602
        %v1707 = vpack.c.bf16 %v1619, %v1603
        %v1708 = vpack.c.bf16 %v1620, %v1604
        %v1709 = vpack.c.bf16 %v1621, %v1605
        %v1710 = vpack.c.bf16 %v1622, %v1606
        %v1711 = vpack.c.bf16 %v1623, %v1607
        %v1712 = vpack.c.bf16 %v1624, %v1608
        %v1713 = vpack.c.bf16 %v1641, %v1625
        %v1714 = vpack.c.bf16 %v1642, %v1626
        %v1715 = vpack.c.bf16 %v1643, %v1627
        %v1716 = vpack.c.bf16 %v1644, %v1628
        %v1717 = vpack.c.bf16 %v1645, %v1629
        %v1718 = vpack.c.bf16 %v1646, %v1630
        %v1719 = vpack.c.bf16 %v1647, %v1631
        %v1720 = vpack.c.bf16 %v1648, %v1632
        %v1721 = vpack.c.bf16 %v1649, %v1633
        %v1722 = vpack.c.bf16 %v1650, %v1634
        %v1723 = vpack.c.bf16 %v1651, %v1635
        %v1724 = vpack.c.bf16 %v1652, %v1636
        %v1725 = vpack.c.bf16 %v1653, %v1637
        %v1726 = vpack.c.bf16 %v1654, %v1638
        %v1727 = vpack.c.bf16 %v1655, %v1639
        %v1728 = vpack.c.bf16 %v1656, %v1640
        %v1729 = vld [vmem:[%s6] sm:$0xff]
        %v1730 = vld [vmem:[%s6 + $0x8] sm:$0xff]
        %v1731 = vld [vmem:[%s6 + $0x10] sm:$0xff]
        %v1732 = vld [vmem:[%s6 + $0x18] sm:$0xff]
        %v1733 = vld [vmem:[%s6 + $0x20] sm:$0xff]
        %v1734 = vld [vmem:[%s6 + $0x28] sm:$0xff]
        %v1735 = vld [vmem:[%s6 + $0x30] sm:$0xff]
        %v1736 = vld [vmem:[%s6 + $0x38] sm:$0xff]
        %1738 = vset.pattern.permute.xlu0 0
        %1739 = vperm.xlu0 %1738, %v1729
        %v1740 = vpop.permute.xlu0 %1739
        %1743 = vset.pattern.permute.xlu0 0
        %1744 = vperm.xlu0 %1743, %v1730
        %v1745 = vpop.permute.xlu0 %1744
        %1748 = vset.pattern.permute.xlu0 0
        %1749 = vperm.xlu0 %1748, %v1731
        %v1750 = vpop.permute.xlu0 %1749
        %1753 = vset.pattern.permute.xlu0 0
        %1754 = vperm.xlu0 %1753, %v1732
        %v1755 = vpop.permute.xlu0 %1754
        %1758 = vset.pattern.permute.xlu0 0
        %1759 = vperm.xlu0 %1758, %v1733
        %v1760 = vpop.permute.xlu0 %1759
        %1763 = vset.pattern.permute.xlu0 0
        %1764 = vperm.xlu0 %1763, %v1734
        %v1765 = vpop.permute.xlu0 %1764
        %1768 = vset.pattern.permute.xlu0 0
        %1769 = vperm.xlu0 %1768, %v1735
        %v1770 = vpop.permute.xlu0 %1769
        %1773 = vset.pattern.permute.xlu0 0
        %1774 = vperm.xlu0 %1773, %v1736
        %v1775 = vpop.permute.xlu0 %1774
        %v1785 = vunpack.c.l.b16 %v1657
        %v1786 = vunpack.c.l.b16 %v1658
        %v1787 = vunpack.c.l.b16 %v1659
        %v1788 = vunpack.c.l.b16 %v1660
        %v1789 = vunpack.c.l.b16 %v1661
        %v1790 = vunpack.c.l.b16 %v1662
        %v1791 = vunpack.c.l.b16 %v1663
        %v1792 = vunpack.c.l.b16 %v1664
        %v1793 = vpack.c.b16 %v1786, %v1785
        %v1794 = vpack.c.b16 %v1788, %v1787
        %v1795 = vpack.c.b16 %v1790, %v1789
        %v1796 = vpack.c.b16 %v1792, %v1791
        %vm1797 = vcmask 523264
        %v1799 = vsel %vm1797, %v1793, 0
        %v1802 = vsel %vm1797, %v1794, 0
        %v1805 = vsel %vm1797, %v1795, 0
        %v1808 = vsel %vm1797, %v1796, 0
        %1810 = vmatprep.subr.bf16.mxu0 %v1666
        %1811 = vmatpush1.bf16.msra.mxu0 %v1665
        %1812 = vmatprep.subr.bf16.mxu0 %v1682
        %1813 = vmatpush1.bf16.msra.mxu0 %v1681
        %1814 = vmatprep.subr.bf16.mxu0 %v1698
        %1815 = vmatpush1.bf16.msra.mxu0 %v1697
        %1816 = vmatprep.subr.bf16.mxu0 %v1714
        %1817 = vmatpush1.bf16.msra.mxu0 %v1713
        %1818 = vmatprep.subr.bf16.mxu0 0
        %1819 = vmatpush1.bf16.msra.mxu0 0
        %1820 = vmatprep.subr.bf16.mxu0 0
        %1821 = vmatpush1.bf16.msra.mxu0 0
        %1822 = vmatprep.subr.bf16.mxu0 0
        %1823 = vmatpush1.bf16.msra.mxu0 0
        %1824 = vmatprep.subr.bf16.mxu0 0
        %1825 = vmatpush1.bf16.msra.mxu0 0
        %1826 = vmatprep.subr.bf16.mxu0 0
        %1827 = vmatpush1.bf16.msra.mxu0 0
        %1828 = vmatprep.subr.bf16.mxu0 0
        %1829 = vmatpush1.bf16.msra.mxu0 0
        %1830 = vmatprep.subr.bf16.mxu0 0
        %1831 = vmatpush1.bf16.msra.mxu0 0
        %1832 = vmatprep.subr.bf16.mxu0 0
        %1833 = vmatpush1.bf16.msra.mxu0 0
        %1834 = vmatprep.subr.bf16.mxu0 0
        %1835 = vmatpush1.bf16.msra.mxu0 0
        %1836 = vmatprep.subr.bf16.mxu0 0
        %1837 = vmatpush1.bf16.msra.mxu0 0
        %1838 = vmatprep.subr.bf16.mxu0 0
        %1839 = vmatpush1.bf16.msra.mxu0 0
        %1840 = vmatprep.subr.bf16.mxu0 0
        %1841 = vmatpush1.bf16.msra.mxu0 0
        %1842 = vmatprep.mubr.bf16.mxu0 0
        %1843 = vmatmul.mubr.bf16.gmra.mrb[0].mxu0 %v1799
        %v1844 = vpop.f32.mrb[0].mxu0
        %v1845 = vadd.f32 %v1740, %v1844
        %v1846 = vpop.f32.mrb[0].mxu0
        %v1847 = vadd.f32 %v1740, %v1846
        %v1848 = vpop.f32.mrb[0].mxu0
        %v1849 = vadd.f32 %v1745, %v1848
        %v1850 = vpop.f32.mrb[0].mxu0
        %v1851 = vadd.f32 %v1745, %v1850
        %1852 = vmatprep.mubr.bf16.mxu0 0
        %1853 = vmatmul.mubr.bf16.gmra.mrb[0].mxu0 %v1802
        %v1854 = vpop.f32.mrb[0].mxu0
        %v1855 = vadd.f32 %v1750, %v1854
        %v1856 = vpop.f32.mrb[0].mxu0
        %v1857 = vadd.f32 %v1750, %v1856
        %v1858 = vpop.f32.mrb[0].mxu0
        %v1859 = vadd.f32 %v1755, %v1858
        %v1860 = vpop.f32.mrb[0].mxu0
        %v1861 = vadd.f32 %v1755, %v1860
        %1862 = vmatprep.mubr.bf16.mxu0 0
        %1863 = vmatmul.mubr.bf16.gmra.mrb[0].mxu0 %v1805
        %v1864 = vpop.f32.mrb[0].mxu0
        %v1865 = vadd.f32 %v1760, %v1864
        %v1866 = vpop.f32.mrb[0].mxu0
        %v1867 = vadd.f32 %v1760, %v1866
        %v1868 = vpop.f32.mrb[0].mxu0
        %v1869 = vadd.f32 %v1765, %v1868
        %v1870 = vpop.f32.mrb[0].mxu0
        %v1871 = vadd.f32 %v1765, %v1870
        %1872 = vmatprep.mubr.bf16.mxu0 0
        %1873 = vmatmul.mubr.bf16.gmra.mrb[0].mxu0 %v1808
        %v1874 = vpop.f32.mrb[0].mxu0
        %v1875 = vadd.f32 %v1770, %v1874
        %v1876 = vpop.f32.mrb[0].mxu0
        %v1877 = vadd.f32 %v1770, %v1876
        %v1878 = vpop.f32.mrb[0].mxu0
        %v1879 = vadd.f32 %v1775, %v1878
        %v1880 = vpop.f32.mrb[0].mxu0
        %v1881 = vadd.f32 %v1775, %v1880
        %1882 = vdwg.mxu0
        %1883 = vmatprep.subr.bf16.mxu0 %v1668
        %1884 = vmatpush1.bf16.msra.mxu0 %v1667
        %1885 = vmatprep.subr.bf16.mxu0 %v1684
        %1886 = vmatpush1.bf16.msra.mxu0 %v1683
        %1887 = vmatprep.subr.bf16.mxu0 %v1700
        %1888 = vmatpush1.bf16.msra.mxu0 %v1699
        %1889 = vmatprep.subr.bf16.mxu0 %v1716
        %1890 = vmatpush1.bf16.msra.mxu0 %v1715
        %1891 = vmatprep.subr.bf16.mxu0 0
        %1892 = vmatpush1.bf16.msra.mxu0 0
        %1893 = vmatprep.subr.bf16.mxu0 0
        %1894 = vmatpush1.bf16.msra.mxu0 0
        %1895 = vmatprep.subr.bf16.mxu0 0
        %1896 = vmatpush1.bf16.msra.mxu0 0
        %1897 = vmatprep.subr.bf16.mxu0 0
        %1898 = vmatpush1.bf16.msra.mxu0 0
        %1899 = vmatprep.subr.bf16.mxu0 0
        %1900 = vmatpush1.bf16.msra.mxu0 0
        %1901 = vmatprep.subr.bf16.mxu0 0
        %1902 = vmatpush1.bf16.msra.mxu0 0
        %1903 = vmatprep.subr.bf16.mxu0 0
        %1904 = vmatpush1.bf16.msra.mxu0 0
        %1905 = vmatprep.subr.bf16.mxu0 0
        %1906 = vmatpush1.bf16.msra.mxu0 0
        %1907 = vmatprep.subr.bf16.mxu0 0
        %1908 = vmatpush1.bf16.msra.mxu0 0
        %1909 = vmatprep.subr.bf16.mxu0 0
        %1910 = vmatpush1.bf16.msra.mxu0 0
        %1911 = vmatprep.subr.bf16.mxu0 0
        %1912 = vmatpush1.bf16.msra.mxu0 0
        %1913 = vmatprep.subr.bf16.mxu0 0
        %1914 = vmatpush1.bf16.msra.mxu0 0
        %1915 = vmatprep.mubr.bf16.mxu0 0
        %1916 = vmatmul.mubr.bf16.gmra.mrb[0].mxu0 %v1799
        %v1917 = vpop.f32.mrb[0].mxu0
        %v1918 = vadd.f32 %v1740, %v1917
        %v1919 = vpop.f32.mrb[0].mxu0
        %v1920 = vadd.f32 %v1740, %v1919
        %v1921 = vpop.f32.mrb[0].mxu0
        %v1922 = vadd.f32 %v1745, %v1921
        %v1923 = vpop.f32.mrb[0].mxu0
        %v1924 = vadd.f32 %v1745, %v1923
        %1925 = vmatprep.mubr.bf16.mxu0 0
        %1926 = vmatmul.mubr.bf16.gmra.mrb[0].mxu0 %v1802
        %v1927 = vpop.f32.mrb[0].mxu0
        %v1928 = vadd.f32 %v1750, %v1927
        %v1929 = vpop.f32.mrb[0].mxu0
        %v1930 = vadd.f32 %v1750, %v1929
        %v1931 = vpop.f32.mrb[0].mxu0
        %v1932 = vadd.f32 %v1755, %v1931
        %v1933 = vpop.f32.mrb[0].mxu0
        %v1934 = vadd.f32 %v1755, %v1933
        %1935 = vmatprep.mubr.bf16.mxu0 0
        %1936 = vmatmul.mubr.bf16.gmra.mrb[0].mxu0 %v1805
        %v1937 = vpop.f32.mrb[0].mxu0
        %v1938 = vadd.f32 %v1760, %v1937
        %v1939 = vpop.f32.mrb[0].mxu0
        %v1940 = vadd.f32 %v1760, %v1939
        %v1941 = vpop.f32.mrb[0].mxu0
        %v1942 = vadd.f32 %v1765, %v1941
        %v1943 = vpop.f32.mrb[0].mxu0
        %v1944 = vadd.f32 %v1765, %v1943
        %1945 = vmatprep.mubr.bf16.mxu0 0
        %1946 = vmatmul.mubr.bf16.gmra.mrb[0].mxu0 %v1808
        %v1947 = vpop.f32.mrb[0].mxu0
        %v1948 = vadd.f32 %v1770, %v1947
        %v1949 = vpop.f32.mrb[0].mxu0
        %v1950 = vadd.f32 %v1770, %v1949
        %v1951 = vpop.f32.mrb[0].mxu0
        %v1952 = vadd.f32 %v1775, %v1951
        %v1953 = vpop.f32.mrb[0].mxu0
        %v1954 = vadd.f32 %v1775, %v1953
        %1955 = vdwg.mxu0
        %1956 = vmatprep.subr.bf16.mxu0 %v1670
        %1957 = vmatpush1.bf16.msra.mxu0 %v1669
        %1958 = vmatprep.subr.bf16.mxu0 %v1686
        %1959 = vmatpush1.bf16.msra.mxu0 %v1685
        %1960 = vmatprep.subr.bf16.mxu0 %v1702
        %1961 = vmatpush1.bf16.msra.mxu0 %v1701
        %1962 = vmatprep.subr.bf16.mxu0 %v1718
        %1963 = vmatpush1.bf16.msra.mxu0 %v1717
        %1964 = vmatprep.subr.bf16.mxu0 0
        %1965 = vmatpush1.bf16.msra.mxu0 0
        %1966 = vmatprep.subr.bf16.mxu0 0
        %1967 = vmatpush1.bf16.msra.mxu0 0
        %1968 = vmatprep.subr.bf16.mxu0 0
        %1969 = vmatpush1.bf16.msra.mxu0 0
        %1970 = vmatprep.subr.bf16.mxu0 0
        %1971 = vmatpush1.bf16.msra.mxu0 0
        %1972 = vmatprep.subr.bf16.mxu0 0
        %1973 = vmatpush1.bf16.msra.mxu0 0
        %1974 = vmatprep.subr.bf16.mxu0 0
        %1975 = vmatpush1.bf16.msra.mxu0 0
        %1976 = vmatprep.subr.bf16.mxu0 0
        %1977 = vmatpush1.bf16.msra.mxu0 0
        %1978 = vmatprep.subr.bf16.mxu0 0
        %1979 = vmatpush1.bf16.msra.mxu0 0
        %1980 = vmatprep.subr.bf16.mxu0 0
        %1981 = vmatpush1.bf16.msra.mxu0 0
        %1982 = vmatprep.subr.bf16.mxu0 0
        %1983 = vmatpush1.bf16.msra.mxu0 0
        %1984 = vmatprep.subr.bf16.mxu0 0
        %1985 = vmatpush1.bf16.msra.mxu0 0
        %1986 = vmatprep.subr.bf16.mxu0 0
        %1987 = vmatpush1.bf16.msra.mxu0 0
        %1988 = vmatprep.mubr.bf16.mxu0 0
        %1989 = vmatmul.mubr.bf16.gmra.mrb[0].mxu0 %v1799
        %v1990 = vpop.f32.mrb[0].mxu0
        %v1991 = vadd.f32 %v1740, %v1990
        %v1992 = vpop.f32.mrb[0].mxu0
        %v1993 = vadd.f32 %v1740, %v1992
        %v1994 = vpop.f32.mrb[0].mxu0
        %v1995 = vadd.f32 %v1745, %v1994
        %v1996 = vpop.f32.mrb[0].mxu0
        %v1997 = vadd.f32 %v1745, %v1996
        %1998 = vmatprep.mubr.bf16.mxu0 0
        %1999 = vmatmul.mubr.bf16.gmra.mrb[0].mxu0 %v1802
        %v2000 = vpop.f32.mrb[0].mxu0
        %v2001 = vadd.f32 %v1750, %v2000
        %v2002 = vpop.f32.mrb[0].mxu0
        %v2003 = vadd.f32 %v1750, %v2002
        %v2004 = vpop.f32.mrb[0].mxu0
        %v2005 = vadd.f32 %v1755, %v2004
        %v2006 = vpop.f32.mrb[0].mxu0
        %v2007 = vadd.f32 %v1755, %v2006
        %2008 = vmatprep.mubr.bf16.mxu0 0
        %2009 = vmatmul.mubr.bf16.gmra.mrb[0].mxu0 %v1805
        %v2010 = vpop.f32.mrb[0].mxu0
        %v2011 = vadd.f32 %v1760, %v2010
        %v2012 = vpop.f32.mrb[0].mxu0
        %v2013 = vadd.f32 %v1760, %v2012
        %v2014 = vpop.f32.mrb[0].mxu0
        %v2015 = vadd.f32 %v1765, %v2014
        %v2016 = vpop.f32.mrb[0].mxu0
        %v2017 = vadd.f32 %v1765, %v2016
        %2018 = vmatprep.mubr.bf16.mxu0 0
        %2019 = vmatmul.mubr.bf16.gmra.mrb[0].mxu0 %v1808
        %v2020 = vpop.f32.mrb[0].mxu0
        %v2021 = vadd.f32 %v1770, %v2020
        %v2022 = vpop.f32.mrb[0].mxu0
        %v2023 = vadd.f32 %v1770, %v2022
        %v2024 = vpop.f32.mrb[0].mxu0
        %v2025 = vadd.f32 %v1775, %v2024
        %v2026 = vpop.f32.mrb[0].mxu0
        %v2027 = vadd.f32 %v1775, %v2026
        %2028 = vdwg.mxu0
        %2029 = vmatprep.subr.bf16.mxu0 %v1672
        %2030 = vmatpush1.bf16.msra.mxu0 %v1671
        %2031 = vmatprep.subr.bf16.mxu0 %v1688
        %2032 = vmatpush1.bf16.msra.mxu0 %v1687
        %2033 = vmatprep.subr.bf16.mxu0 %v1704
        %2034 = vmatpush1.bf16.msra.mxu0 %v1703
        %2035 = vmatprep.subr.bf16.mxu0 %v1720
        %2036 = vmatpush1.bf16.msra.mxu0 %v1719
        %2037 = vmatprep.subr.bf16.mxu0 0
        %2038 = vmatpush1.bf16.msra.mxu0 0
        %2039 = vmatprep.subr.bf16.mxu0 0
        %2040 = vmatpush1.bf16.msra.mxu0 0
        %2041 = vmatprep.subr.bf16.mxu0 0
        %2042 = vmatpush1.bf16.msra.mxu0 0
        %2043 = vmatprep.subr.bf16.mxu0 0
        %2044 = vmatpush1.bf16.msra.mxu0 0
        %2045 = vmatprep.subr.bf16.mxu0 0
        %2046 = vmatpush1.bf16.msra.mxu0 0
        %2047 = vmatprep.subr.bf16.mxu0 0
        %2048 = vmatpush1.bf16.msra.mxu0 0
        %2049 = vmatprep.subr.bf16.mxu0 0
        %2050 = vmatpush1.bf16.msra.mxu0 0
        %2051 = vmatprep.subr.bf16.mxu0 0
        %2052 = vmatpush1.bf16.msra.mxu0 0
        %2053 = vmatprep.subr.bf16.mxu0 0
        %2054 = vmatpush1.bf16.msra.mxu0 0
        %2055 = vmatprep.subr.bf16.mxu0 0
        %2056 = vmatpush1.bf16.msra.mxu0 0
        %2057 = vmatprep.subr.bf16.mxu0 0
        %2058 = vmatpush1.bf16.msra.mxu0 0
        %2059 = vmatprep.subr.bf16.mxu0 0
        %2060 = vmatpush1.bf16.msra.mxu0 0
        %2061 = vmatprep.mubr.bf16.mxu0 0
        %2062 = vmatmul.mubr.bf16.gmra.mrb[0].mxu0 %v1799
        %v2063 = vpop.f32.mrb[0].mxu0
        %v2064 = vadd.f32 %v1740, %v2063
        %v2065 = vpop.f32.mrb[0].mxu0
        %v2066 = vadd.f32 %v1740, %v2065
        %v2067 = vpop.f32.mrb[0].mxu0
        %v2068 = vadd.f32 %v1745, %v2067
        %v2069 = vpop.f32.mrb[0].mxu0
        %v2070 = vadd.f32 %v1745, %v2069
        %2071 = vmatprep.mubr.bf16.mxu0 0
        %2072 = vmatmul.mubr.bf16.gmra.mrb[0].mxu0 %v1802
        %v2073 = vpop.f32.mrb[0].mxu0
        %v2074 = vadd.f32 %v1750, %v2073
        %v2075 = vpop.f32.mrb[0].mxu0
        %v2076 = vadd.f32 %v1750, %v2075
        %v2077 = vpop.f32.mrb[0].mxu0
        %v2078 = vadd.f32 %v1755, %v2077
        %v2079 = vpop.f32.mrb[0].mxu0
        %v2080 = vadd.f32 %v1755, %v2079
        %2081 = vmatprep.mubr.bf16.mxu0 0
        %2082 = vmatmul.mubr.bf16.gmra.mrb[0].mxu0 %v1805
        %v2083 = vpop.f32.mrb[0].mxu0
        %v2084 = vadd.f32 %v1760, %v2083
        %v2085 = vpop.f32.mrb[0].mxu0
        %v2086 = vadd.f32 %v1760, %v2085
        %v2087 = vpop.f32.mrb[0].mxu0
        %v2088 = vadd.f32 %v1765, %v2087
        %v2089 = vpop.f32.mrb[0].mxu0
        %v2090 = vadd.f32 %v1765, %v2089
        %2091 = vmatprep.mubr.bf16.mxu0 0
        %2092 = vmatmul.mubr.bf16.gmra.mrb[0].mxu0 %v1808
        %v2093 = vpop.f32.mrb[0].mxu0
        %v2094 = vadd.f32 %v1770, %v2093
        %v2095 = vpop.f32.mrb[0].mxu0
        %v2096 = vadd.f32 %v1770, %v2095
        %v2097 = vpop.f32.mrb[0].mxu0
        %v2098 = vadd.f32 %v1775, %v2097
        %v2099 = vpop.f32.mrb[0].mxu0
        %v2100 = vadd.f32 %v1775, %v2099
        %2101 = vdwg.mxu0
        %2102 = vmatprep.subr.bf16.mxu0 %v1674
        %2103 = vmatpush1.bf16.msra.mxu0 %v1673
        %2104 = vmatprep.subr.bf16.mxu0 %v1690
        %2105 = vmatpush1.bf16.msra.mxu0 %v1689
        %2106 = vmatprep.subr.bf16.mxu0 %v1706
        %2107 = vmatpush1.bf16.msra.mxu0 %v1705
        %2108 = vmatprep.subr.bf16.mxu0 %v1722
        %2109 = vmatpush1.bf16.msra.mxu0 %v1721
        %2110 = vmatprep.subr.bf16.mxu0 0
        %2111 = vmatpush1.bf16.msra.mxu0 0
        %2112 = vmatprep.subr.bf16.mxu0 0
        %2113 = vmatpush1.bf16.msra.mxu0 0
        %2114 = vmatprep.subr.bf16.mxu0 0
        %2115 = vmatpush1.bf16.msra.mxu0 0
        %2116 = vmatprep.subr.bf16.mxu0 0
        %2117 = vmatpush1.bf16.msra.mxu0 0
        %2118 = vmatprep.subr.bf16.mxu0 0
        %2119 = vmatpush1.bf16.msra.mxu0 0
        %2120 = vmatprep.subr.bf16.mxu0 0
        %2121 = vmatpush1.bf16.msra.mxu0 0
        %2122 = vmatprep.subr.bf16.mxu0 0
        %2123 = vmatpush1.bf16.msra.mxu0 0
        %2124 = vmatprep.subr.bf16.mxu0 0
        %2125 = vmatpush1.bf16.msra.mxu0 0
        %2126 = vmatprep.subr.bf16.mxu0 0
        %2127 = vmatpush1.bf16.msra.mxu0 0
        %2128 = vmatprep.subr.bf16.mxu0 0
        %2129 = vmatpush1.bf16.msra.mxu0 0
        %2130 = vmatprep.subr.bf16.mxu0 0
        %2131 = vmatpush1.bf16.msra.mxu0 0
        %2132 = vmatprep.subr.bf16.mxu0 0
        %2133 = vmatpush1.bf16.msra.mxu0 0
        %2134 = vmatprep.mubr.bf16.mxu0 0
        %2135 = vmatmul.mubr.bf16.gmra.mrb[0].mxu0 %v1799
        %v2136 = vpop.f32.mrb[0].mxu0
        %v2137 = vadd.f32 %v1740, %v2136
        %v2138 = vpop.f32.mrb[0].mxu0
        %v2139 = vadd.f32 %v1740, %v2138
        %v2140 = vpop.f32.mrb[0].mxu0
        %v2141 = vadd.f32 %v1745, %v2140
        %v2142 = vpop.f32.mrb[0].mxu0
        %v2143 = vadd.f32 %v1745, %v2142
        %2144 = vmatprep.mubr.bf16.mxu0 0
        %2145 = vmatmul.mubr.bf16.gmra.mrb[0].mxu0 %v1802
        %v2146 = vpop.f32.mrb[0].mxu0
        %v2147 = vadd.f32 %v1750, %v2146
        %v2148 = vpop.f32.mrb[0].mxu0
        %v2149 = vadd.f32 %v1750, %v2148
        %v2150 = vpop.f32.mrb[0].mxu0
        %v2151 = vadd.f32 %v1755, %v2150
        %v2152 = vpop.f32.mrb[0].mxu0
        %v2153 = vadd.f32 %v1755, %v2152
        %2154 = vmatprep.mubr.bf16.mxu0 0
        %2155 = vmatmul.mubr.bf16.gmra.mrb[0].mxu0 %v1805
        %v2156 = vpop.f32.mrb[0].mxu0
        %v2157 = vadd.f32 %v1760, %v2156
        %v2158 = vpop.f32.mrb[0].mxu0
        %v2159 = vadd.f32 %v1760, %v2158
        %v2160 = vpop.f32.mrb[0].mxu0
        %v2161 = vadd.f32 %v1765, %v2160
        %v2162 = vpop.f32.mrb[0].mxu0
        %v2163 = vadd.f32 %v1765, %v2162
        %2164 = vmatprep.mubr.bf16.mxu0 0
        %2165 = vmatmul.mubr.bf16.gmra.mrb[0].mxu0 %v1808
        %v2166 = vpop.f32.mrb[0].mxu0
        %v2167 = vadd.f32 %v1770, %v2166
        %v2168 = vpop.f32.mrb[0].mxu0
        %v2169 = vadd.f32 %v1770, %v2168
        %v2170 = vpop.f32.mrb[0].mxu0
        %v2171 = vadd.f32 %v1775, %v2170
        %v2172 = vpop.f32.mrb[0].mxu0
        %v2173 = vadd.f32 %v1775, %v2172
        %2174 = vdwg.mxu0
        %2175 = vmatprep.subr.bf16.mxu0 %v1676
        %2176 = vmatpush1.bf16.msra.mxu0 %v1675
        %2177 = vmatprep.subr.bf16.mxu0 %v1692
        %2178 = vmatpush1.bf16.msra.mxu0 %v1691
        %2179 = vmatprep.subr.bf16.mxu0 %v1708
        %2180 = vmatpush1.bf16.msra.mxu0 %v1707
        %2181 = vmatprep.subr.bf16.mxu0 %v1724
        %2182 = vmatpush1.bf16.msra.mxu0 %v1723
        %2183 = vmatprep.subr.bf16.mxu0 0
        %2184 = vmatpush1.bf16.msra.mxu0 0
        %2185 = vmatprep.subr.bf16.mxu0 0
        %2186 = vmatpush1.bf16.msra.mxu0 0
        %2187 = vmatprep.subr.bf16.mxu0 0
        %2188 = vmatpush1.bf16.msra.mxu0 0
        %2189 = vmatprep.subr.bf16.mxu0 0
        %2190 = vmatpush1.bf16.msra.mxu0 0
        %2191 = vmatprep.subr.bf16.mxu0 0
        %2192 = vmatpush1.bf16.msra.mxu0 0
        %2193 = vmatprep.subr.bf16.mxu0 0
        %2194 = vmatpush1.bf16.msra.mxu0 0
        %2195 = vmatprep.subr.bf16.mxu0 0
        %2196 = vmatpush1.bf16.msra.mxu0 0
        %2197 = vmatprep.subr.bf16.mxu0 0
        %2198 = vmatpush1.bf16.msra.mxu0 0
        %2199 = vmatprep.subr.bf16.mxu0 0
        %2200 = vmatpush1.bf16.msra.mxu0 0
        %2201 = vmatprep.subr.bf16.mxu0 0
        %2202 = vmatpush1.bf16.msra.mxu0 0
        %2203 = vmatprep.subr.bf16.mxu0 0
        %2204 = vmatpush1.bf16.msra.mxu0 0
        %2205 = vmatprep.subr.bf16.mxu0 0
        %2206 = vmatpush1.bf16.msra.mxu0 0
        %2207 = vmatprep.mubr.bf16.mxu0 0
        %2208 = vmatmul.mubr.bf16.gmra.mrb[0].mxu0 %v1799
        %v2209 = vpop.f32.mrb[0].mxu0
        %v2210 = vadd.f32 %v1740, %v2209
        %v2211 = vpop.f32.mrb[0].mxu0
        %v2212 = vadd.f32 %v1740, %v2211
        %v2213 = vpop.f32.mrb[0].mxu0
        %v2214 = vadd.f32 %v1745, %v2213
        %v2215 = vpop.f32.mrb[0].mxu0
        %v2216 = vadd.f32 %v1745, %v2215
        %2217 = vmatprep.mubr.bf16.mxu0 0
        %2218 = vmatmul.mubr.bf16.gmra.mrb[0].mxu0 %v1802
        %v2219 = vpop.f32.mrb[0].mxu0
        %v2220 = vadd.f32 %v1750, %v2219
        %v2221 = vpop.f32.mrb[0].mxu0
        %v2222 = vadd.f32 %v1750, %v2221
        %v2223 = vpop.f32.mrb[0].mxu0
        %v2224 = vadd.f32 %v1755, %v2223
        %v2225 = vpop.f32.mrb[0].mxu0
        %v2226 = vadd.f32 %v1755, %v2225
        %2227 = vmatprep.mubr.bf16.mxu0 0
        %2228 = vmatmul.mubr.bf16.gmra.mrb[0].mxu0 %v1805
        %v2229 = vpop.f32.mrb[0].mxu0
        %v2230 = vadd.f32 %v1760, %v2229
        %v2231 = vpop.f32.mrb[0].mxu0
        %v2232 = vadd.f32 %v1760, %v2231
        %v2233 = vpop.f32.mrb[0].mxu0
        %v2234 = vadd.f32 %v1765, %v2233
        %v2235 = vpop.f32.mrb[0].mxu0
        %v2236 = vadd.f32 %v1765, %v2235
        %2237 = vmatprep.mubr.bf16.mxu0 0
        %2238 = vmatmul.mubr.bf16.gmra.mrb[0].mxu0 %v1808
        %v2239 = vpop.f32.mrb[0].mxu0
        %v2240 = vadd.f32 %v1770, %v2239
        %v2241 = vpop.f32.mrb[0].mxu0
        %v2242 = vadd.f32 %v1770, %v2241
        %v2243 = vpop.f32.mrb[0].mxu0
        %v2244 = vadd.f32 %v1775, %v2243
        %v2245 = vpop.f32.mrb[0].mxu0
        %v2246 = vadd.f32 %v1775, %v2245
        %2247 = vdwg.mxu0
        %2248 = vmatprep.subr.bf16.mxu0 %v1678
        %2249 = vmatpush1.bf16.msra.mxu0 %v1677
        %2250 = vmatprep.subr.bf16.mxu0 %v1694
        %2251 = vmatpush1.bf16.msra.mxu0 %v1693
        %2252 = vmatprep.subr.bf16.mxu0 %v1710
        %2253 = vmatpush1.bf16.msra.mxu0 %v1709
        %2254 = vmatprep.subr.bf16.mxu0 %v1726
        %2255 = vmatpush1.bf16.msra.mxu0 %v1725
        %2256 = vmatprep.subr.bf16.mxu0 0
        %2257 = vmatpush1.bf16.msra.mxu0 0
        %2258 = vmatprep.subr.bf16.mxu0 0
        %2259 = vmatpush1.bf16.msra.mxu0 0
        %2260 = vmatprep.subr.bf16.mxu0 0
        %2261 = vmatpush1.bf16.msra.mxu0 0
        %2262 = vmatprep.subr.bf16.mxu0 0
        %2263 = vmatpush1.bf16.msra.mxu0 0
        %2264 = vmatprep.subr.bf16.mxu0 0
        %2265 = vmatpush1.bf16.msra.mxu0 0
        %2266 = vmatprep.subr.bf16.mxu0 0
        %2267 = vmatpush1.bf16.msra.mxu0 0
        %2268 = vmatprep.subr.bf16.mxu0 0
        %2269 = vmatpush1.bf16.msra.mxu0 0
        %2270 = vmatprep.subr.bf16.mxu0 0
        %2271 = vmatpush1.bf16.msra.mxu0 0
        %2272 = vmatprep.subr.bf16.mxu0 0
        %2273 = vmatpush1.bf16.msra.mxu0 0
        %2274 = vmatprep.subr.bf16.mxu0 0
        %2275 = vmatpush1.bf16.msra.mxu0 0
        %2276 = vmatprep.subr.bf16.mxu0 0
        %2277 = vmatpush1.bf16.msra.mxu0 0
        %2278 = vmatprep.subr.bf16.mxu0 0
        %2279 = vmatpush1.bf16.msra.mxu0 0
        %2280 = vmatprep.mubr.bf16.mxu0 0
        %2281 = vmatmul.mubr.bf16.gmra.mrb[0].mxu0 %v1799
        %v2282 = vpop.f32.mrb[0].mxu0
        %v2283 = vadd.f32 %v1740, %v2282
        %v2284 = vpop.f32.mrb[0].mxu0
        %v2285 = vadd.f32 %v1740, %v2284
        %v2286 = vpop.f32.mrb[0].mxu0
        %v2287 = vadd.f32 %v1745, %v2286
        %v2288 = vpop.f32.mrb[0].mxu0
        %v2289 = vadd.f32 %v1745, %v2288
        %2290 = vmatprep.mubr.bf16.mxu0 0
        %2291 = vmatmul.mubr.bf16.gmra.mrb[0].mxu0 %v1802
        %v2292 = vpop.f32.mrb[0].mxu0
        %v2293 = vadd.f32 %v1750, %v2292
        %v2294 = vpop.f32.mrb[0].mxu0
        %v2295 = vadd.f32 %v1750, %v2294
        %v2296 = vpop.f32.mrb[0].mxu0
        %v2297 = vadd.f32 %v1755, %v2296
        %v2298 = vpop.f32.mrb[0].mxu0
        %v2299 = vadd.f32 %v1755, %v2298
        %2300 = vmatprep.mubr.bf16.mxu0 0
        %2301 = vmatmul.mubr.bf16.gmra.mrb[0].mxu0 %v1805
        %v2302 = vpop.f32.mrb[0].mxu0
        %v2303 = vadd.f32 %v1760, %v2302
        %v2304 = vpop.f32.mrb[0].mxu0
        %v2305 = vadd.f32 %v1760, %v2304
        %v2306 = vpop.f32.mrb[0].mxu0
        %v2307 = vadd.f32 %v1765, %v2306
        %v2308 = vpop.f32.mrb[0].mxu0
        %v2309 = vadd.f32 %v1765, %v2308
        %2310 = vmatprep.mubr.bf16.mxu0 0
        %2311 = vmatmul.mubr.bf16.gmra.mrb[0].mxu0 %v1808
        %v2312 = vpop.f32.mrb[0].mxu0
        %v2313 = vadd.f32 %v1770, %v2312
        %v2314 = vpop.f32.mrb[0].mxu0
        %v2315 = vadd.f32 %v1770, %v2314
        %v2316 = vpop.f32.mrb[0].mxu0
        %v2317 = vadd.f32 %v1775, %v2316
        %v2318 = vpop.f32.mrb[0].mxu0
        %v2319 = vadd.f32 %v1775, %v2318
        %2320 = vdwg.mxu0
        %2321 = vmatprep.subr.bf16.mxu0 %v1680
        %2322 = vmatpush1.bf16.msra.mxu0 %v1679
        %2323 = vmatprep.subr.bf16.mxu0 %v1696
        %2324 = vmatpush1.bf16.msra.mxu0 %v1695
        %2325 = vmatprep.subr.bf16.mxu0 %v1712
        %2326 = vmatpush1.bf16.msra.mxu0 %v1711
        %2327 = vmatprep.subr.bf16.mxu0 %v1728
        %2328 = vmatpush1.bf16.msra.mxu0 %v1727
        %2329 = vmatprep.subr.bf16.mxu0 0
        %2330 = vmatpush1.bf16.msra.mxu0 0
        %2331 = vmatprep.subr.bf16.mxu0 0
        %2332 = vmatpush1.bf16.msra.mxu0 0
        %2333 = vmatprep.subr.bf16.mxu0 0
        %2334 = vmatpush1.bf16.msra.mxu0 0
        %2335 = vmatprep.subr.bf16.mxu0 0
        %2336 = vmatpush1.bf16.msra.mxu0 0
        %2337 = vmatprep.subr.bf16.mxu0 0
        %2338 = vmatpush1.bf16.msra.mxu0 0
        %2339 = vmatprep.subr.bf16.mxu0 0
        %2340 = vmatpush1.bf16.msra.mxu0 0
        %2341 = vmatprep.subr.bf16.mxu0 0
        %2342 = vmatpush1.bf16.msra.mxu0 0
        %2343 = vmatprep.subr.bf16.mxu0 0
        %2344 = vmatpush1.bf16.msra.mxu0 0
        %2345 = vmatprep.subr.bf16.mxu0 0
        %2346 = vmatpush1.bf16.msra.mxu0 0
        %2347 = vmatprep.subr.bf16.mxu0 0
        %2348 = vmatpush1.bf16.msra.mxu0 0
        %2349 = vmatprep.subr.bf16.mxu0 0
        %2350 = vmatpush1.bf16.msra.mxu0 0
        %2351 = vmatprep.subr.bf16.mxu0 0
        %2352 = vmatpush1.bf16.msra.mxu0 0
        %2353 = vmatprep.mubr.bf16.mxu0 0
        %2354 = vmatmul.mubr.bf16.gmra.mrb[0].mxu0 %v1799
        %v2355 = vpop.f32.mrb[0].mxu0
        %v2356 = vadd.f32 %v1740, %v2355
        %v2357 = vpop.f32.mrb[0].mxu0
        %v2358 = vadd.f32 %v1740, %v2357
        %v2359 = vpop.f32.mrb[0].mxu0
        %v2360 = vadd.f32 %v1745, %v2359
        %v2361 = vpop.f32.mrb[0].mxu0
        %v2362 = vadd.f32 %v1745, %v2361
        %2363 = vmatprep.mubr.bf16.mxu0 0
        %2364 = vmatmul.mubr.bf16.gmra.mrb[0].mxu0 %v1802
        %v2365 = vpop.f32.mrb[0].mxu0
        %v2366 = vadd.f32 %v1750, %v2365
        %v2367 = vpop.f32.mrb[0].mxu0
        %v2368 = vadd.f32 %v1750, %v2367
        %v2369 = vpop.f32.mrb[0].mxu0
        %v2370 = vadd.f32 %v1755, %v2369
        %v2371 = vpop.f32.mrb[0].mxu0
        %v2372 = vadd.f32 %v1755, %v2371
        %2373 = vmatprep.mubr.bf16.mxu0 0
        %2374 = vmatmul.mubr.bf16.gmra.mrb[0].mxu0 %v1805
        %v2375 = vpop.f32.mrb[0].mxu0
        %v2376 = vadd.f32 %v1760, %v2375
        %v2377 = vpop.f32.mrb[0].mxu0
        %v2378 = vadd.f32 %v1760, %v2377
        %v2379 = vpop.f32.mrb[0].mxu0
        %v2380 = vadd.f32 %v1765, %v2379
        %v2381 = vpop.f32.mrb[0].mxu0
        %v2382 = vadd.f32 %v1765, %v2381
        %2383 = vmatprep.mubr.bf16.mxu0 0
        %2384 = vmatmul.mubr.bf16.gmra.mrb[0].mxu0 %v1808
        %v2385 = vpop.f32.mrb[0].mxu0
        %v2386 = vadd.f32 %v1770, %v2385
        %v2387 = vpop.f32.mrb[0].mxu0
        %v2388 = vadd.f32 %v1770, %v2387
        %v2389 = vpop.f32.mrb[0].mxu0
        %v2390 = vadd.f32 %v1775, %v2389
        %v2391 = vpop.f32.mrb[0].mxu0
        %v2392 = vadd.f32 %v1775, %v2391
        %2393 = vdwg.mxu0
        %vm2394 = vcmp.ge.f32.partialorder %v1845, 0.0
        %vm2395 = vcmp.ge.f32.partialorder %v1847, 0.0
        %vm2396 = vcmp.ge.f32.partialorder %v1918, 0.0
        %vm2397 = vcmp.ge.f32.partialorder %v1920, 0.0
        %vm2398 = vcmp.ge.f32.partialorder %v1991, 0.0
        %vm2399 = vcmp.ge.f32.partialorder %v1993, 0.0
        %vm2400 = vcmp.ge.f32.partialorder %v2064, 0.0
        %vm2401 = vcmp.ge.f32.partialorder %v2066, 0.0
        %vm2402 = vcmp.ge.f32.partialorder %v2137, 0.0
        %vm2403 = vcmp.ge.f32.partialorder %v2139, 0.0
        %vm2404 = vcmp.ge.f32.partialorder %v2210, 0.0
        %vm2405 = vcmp.ge.f32.partialorder %v2212, 0.0
        %vm2406 = vcmp.ge.f32.partialorder %v2283, 0.0
        %vm2407 = vcmp.ge.f32.partialorder %v2285, 0.0
        %vm2408 = vcmp.ge.f32.partialorder %v2356, 0.0
        %vm2409 = vcmp.ge.f32.partialorder %v2358, 0.0
        %vm2410 = vcmp.ge.f32.partialorder %v1849, 0.0
        %vm2411 = vcmp.ge.f32.partialorder %v1851, 0.0
        %vm2412 = vcmp.ge.f32.partialorder %v1922, 0.0
        %vm2413 = vcmp.ge.f32.partialorder %v1924, 0.0
        %vm2414 = vcmp.ge.f32.partialorder %v1995, 0.0
        %vm2415 = vcmp.ge.f32.partialorder %v1997, 0.0
        %vm2416 = vcmp.ge.f32.partialorder %v2068, 0.0
        %vm2417 = vcmp.ge.f32.partialorder %v2070, 0.0
        %vm2418 = vcmp.ge.f32.partialorder %v2141, 0.0
        %vm2419 = vcmp.ge.f32.partialorder %v2143, 0.0
        %vm2420 = vcmp.ge.f32.partialorder %v2214, 0.0
        %vm2421 = vcmp.ge.f32.partialorder %v2216, 0.0
        %vm2422 = vcmp.ge.f32.partialorder %v2287, 0.0
        %vm2423 = vcmp.ge.f32.partialorder %v2289, 0.0
        %vm2424 = vcmp.ge.f32.partialorder %v2360, 0.0
        %vm2425 = vcmp.ge.f32.partialorder %v2362, 0.0
        %vm2426 = vcmp.ge.f32.partialorder %v1855, 0.0
        %vm2427 = vcmp.ge.f32.partialorder %v1857, 0.0
        %vm2428 = vcmp.ge.f32.partialorder %v1928, 0.0
        %vm2429 = vcmp.ge.f32.partialorder %v1930, 0.0
        %vm2430 = vcmp.ge.f32.partialorder %v2001, 0.0
        %vm2431 = vcmp.ge.f32.partialorder %v2003, 0.0
        %vm2432 = vcmp.ge.f32.partialorder %v2074, 0.0
        %vm2433 = vcmp.ge.f32.partialorder %v2076, 0.0
        %vm2434 = vcmp.ge.f32.partialorder %v2147, 0.0
        %vm2435 = vcmp.ge.f32.partialorder %v2149, 0.0
        %vm2436 = vcmp.ge.f32.partialorder %v2220, 0.0
        %vm2437 = vcmp.ge.f32.partialorder %v2222, 0.0
        %vm2438 = vcmp.ge.f32.partialorder %v2293, 0.0
        %vm2439 = vcmp.ge.f32.partialorder %v2295, 0.0
        %vm2440 = vcmp.ge.f32.partialorder %v2366, 0.0
        %vm2441 = vcmp.ge.f32.partialorder %v2368, 0.0
        %vm2442 = vcmp.ge.f32.partialorder %v1859, 0.0
        %vm2443 = vcmp.ge.f32.partialorder %v1861, 0.0
        %vm2444 = vcmp.ge.f32.partialorder %v1932, 0.0
        %vm2445 = vcmp.ge.f32.partialorder %v1934, 0.0
        %vm2446 = vcmp.ge.f32.partialorder %v2005, 0.0
        %vm2447 = vcmp.ge.f32.partialorder %v2007, 0.0
        %vm2448 = vcmp.ge.f32.partialorder %v2078, 0.0
        %vm2449 = vcmp.ge.f32.partialorder %v2080, 0.0
        %vm2450 = vcmp.ge.f32.partialorder %v2151, 0.0
        %vm2451 = vcmp.ge.f32.partialorder %v2153, 0.0
        %vm2452 = vcmp.ge.f32.partialorder %v2224, 0.0
        %vm2453 = vcmp.ge.f32.partialorder %v2226, 0.0
        %vm2454 = vcmp.ge.f32.partialorder %v2297, 0.0
        %vm2455 = vcmp.ge.f32.partialorder %v2299, 0.0
        %vm2456 = vcmp.ge.f32.partialorder %v2370, 0.0
        %vm2457 = vcmp.ge.f32.partialorder %v2372, 0.0
        %vm2458 = vcmp.ge.f32.partialorder %v1865, 0.0
        %vm2459 = vcmp.ge.f32.partialorder %v1867, 0.0
        %vm2460 = vcmp.ge.f32.partialorder %v1938, 0.0
        %vm2461 = vcmp.ge.f32.partialorder %v1940, 0.0
        %vm2462 = vcmp.ge.f32.partialorder %v2011, 0.0
        %vm2463 = vcmp.ge.f32.partialorder %v2013, 0.0
        %vm2464 = vcmp.ge.f32.partialorder %v2084, 0.0
        %vm2465 = vcmp.ge.f32.partialorder %v2086, 0.0
        %vm2466 = vcmp.ge.f32.partialorder %v2157, 0.0
        %vm2467 = vcmp.ge.f32.partialorder %v2159, 0.0
        %vm2468 = vcmp.ge.f32.partialorder %v2230, 0.0
        %vm2469 = vcmp.ge.f32.partialorder %v2232, 0.0
        %vm2470 = vcmp.ge.f32.partialorder %v2303, 0.0
        %vm2471 = vcmp.ge.f32.partialorder %v2305, 0.0
        %vm2472 = vcmp.ge.f32.partialorder %v2376, 0.0
        %vm2473 = vcmp.ge.f32.partialorder %v2378, 0.0
        %vm2474 = vcmp.ge.f32.partialorder %v1869, 0.0
        %vm2475 = vcmp.ge.f32.partialorder %v1871, 0.0
        %vm2476 = vcmp.ge.f32.partialorder %v1942, 0.0
        %vm2477 = vcmp.ge.f32.partialorder %v1944, 0.0
        %vm2478 = vcmp.ge.f32.partialorder %v2015, 0.0
        %vm2479 = vcmp.ge.f32.partialorder %v2017, 0.0
        %vm2480 = vcmp.ge.f32.partialorder %v2088, 0.0
        %vm2481 = vcmp.ge.f32.partialorder %v2090, 0.0
        %vm2482 = vcmp.ge.f32.partialorder %v2161, 0.0
        %vm2483 = vcmp.ge.f32.partialorder %v2163, 0.0
        %vm2484 = vcmp.ge.f32.partialorder %v2234, 0.0
        %vm2485 = vcmp.ge.f32.partialorder %v2236, 0.0
        %vm2486 = vcmp.ge.f32.partialorder %v2307, 0.0
        %vm2487 = vcmp.ge.f32.partialorder %v2309, 0.0
        %vm2488 = vcmp.ge.f32.partialorder %v2380, 0.0
        %vm2489 = vcmp.ge.f32.partialorder %v2382, 0.0
        %vm2490 = vcmp.ge.f32.partialorder %v1875, 0.0
        %vm2491 = vcmp.ge.f32.partialorder %v1877, 0.0
        %vm2492 = vcmp.ge.f32.partialorder %v1948, 0.0
        %vm2493 = vcmp.ge.f32.partialorder %v1950, 0.0
        %vm2494 = vcmp.ge.f32.partialorder %v2021, 0.0
        %vm2495 = vcmp.ge.f32.partialorder %v2023, 0.0
        %vm2496 = vcmp.ge.f32.partialorder %v2094, 0.0
        %vm2497 = vcmp.ge.f32.partialorder %v2096, 0.0
        %vm2498 = vcmp.ge.f32.partialorder %v2167, 0.0
        %vm2499 = vcmp.ge.f32.partialorder %v2169, 0.0
        %vm2500 = vcmp.ge.f32.partialorder %v2240, 0.0
        %vm2501 = vcmp.ge.f32.partialorder %v2242, 0.0
        %vm2502 = vcmp.ge.f32.partialorder %v2313, 0.0
        %vm2503 = vcmp.ge.f32.partialorder %v2315, 0.0
        %vm2504 = vcmp.ge.f32.partialorder %v2386, 0.0
        %vm2505 = vcmp.ge.f32.partialorder %v2388, 0.0
        %vm2506 = vcmp.ge.f32.partialorder %v1879, 0.0
        %vm2507 = vcmp.ge.f32.partialorder %v1881, 0.0
        %vm2508 = vcmp.ge.f32.partialorder %v1952, 0.0
        %vm2509 = vcmp.ge.f32.partialorder %v1954, 0.0
        %vm2510 = vcmp.ge.f32.partialorder %v2025, 0.0
        %vm2511 = vcmp.ge.f32.partialorder %v2027, 0.0
        %vm2512 = vcmp.ge.f32.partialorder %v2098, 0.0
        %vm2513 = vcmp.ge.f32.partialorder %v2100, 0.0
        %vm2514 = vcmp.ge.f32.partialorder %v2171, 0.0
        %vm2515 = vcmp.ge.f32.partialorder %v2173, 0.0
        %vm2516 = vcmp.ge.f32.partialorder %v2244, 0.0
        %vm2517 = vcmp.ge.f32.partialorder %v2246, 0.0
        %vm2518 = vcmp.ge.f32.partialorder %v2317, 0.0
        %vm2519 = vcmp.ge.f32.partialorder %v2319, 0.0
        %vm2520 = vcmp.ge.f32.partialorder %v2390, 0.0
        %vm2521 = vcmp.ge.f32.partialorder %v2392, 0.0
        %v2522 = vmul.f32 %v1845, 0.2
        %v2523 = vmul.f32 %v1847, 0.2
        %v2524 = vmul.f32 %v1918, 0.2
        %v2525 = vmul.f32 %v1920, 0.2
        %v2526 = vmul.f32 %v1991, 0.2
        %v2527 = vmul.f32 %v1993, 0.2
        %v2528 = vmul.f32 %v2064, 0.2
        %v2529 = vmul.f32 %v2066, 0.2
        %v2530 = vmul.f32 %v2137, 0.2
        %v2531 = vmul.f32 %v2139, 0.2
        %v2532 = vmul.f32 %v2210, 0.2
        %v2533 = vmul.f32 %v2212, 0.2
        %v2534 = vmul.f32 %v2283, 0.2
        %v2535 = vmul.f32 %v2285, 0.2
        %v2536 = vmul.f32 %v2356, 0.2
        %v2537 = vmul.f32 %v2358, 0.2
        %v2538 = vmul.f32 %v1849, 0.2
        %v2539 = vmul.f32 %v1851, 0.2
        %v2540 = vmul.f32 %v1922, 0.2
        %v2541 = vmul.f32 %v1924, 0.2
        %v2542 = vmul.f32 %v1995, 0.2
        %v2543 = vmul.f32 %v1997, 0.2
        %v2544 = vmul.f32 %v2068, 0.2
        %v2545 = vmul.f32 %v2070, 0.2
        %v2546 = vmul.f32 %v2141, 0.2
        %v2547 = vmul.f32 %v2143, 0.2
        %v2548 = vmul.f32 %v2214, 0.2
        %v2549 = vmul.f32 %v2216, 0.2
        %v2550 = vmul.f32 %v2287, 0.2
        %v2551 = vmul.f32 %v2289, 0.2
        %v2552 = vmul.f32 %v2360, 0.2
        %v2553 = vmul.f32 %v2362, 0.2
        %v2554 = vmul.f32 %v1855, 0.2
        %v2555 = vmul.f32 %v1857, 0.2
        %v2556 = vmul.f32 %v1928, 0.2
        %v2557 = vmul.f32 %v1930, 0.2
        %v2558 = vmul.f32 %v2001, 0.2
        %v2559 = vmul.f32 %v2003, 0.2
        %v2560 = vmul.f32 %v2074, 0.2
        %v2561 = vmul.f32 %v2076, 0.2
        %v2562 = vmul.f32 %v2147, 0.2
        %v2563 = vmul.f32 %v2149, 0.2
        %v2564 = vmul.f32 %v2220, 0.2
        %v2565 = vmul.f32 %v2222, 0.2
        %v2566 = vmul.f32 %v2293, 0.2
        %v2567 = vmul.f32 %v2295, 0.2
        %v2568 = vmul.f32 %v2366, 0.2
        %v2569 = vmul.f32 %v2368, 0.2
        %v2570 = vmul.f32 %v1859, 0.2
        %v2571 = vmul.f32 %v1861, 0.2
        %v2572 = vmul.f32 %v1932, 0.2
        %v2573 = vmul.f32 %v1934, 0.2
        %v2574 = vmul.f32 %v2005, 0.2
        %v2575 = vmul.f32 %v2007, 0.2
        %v2576 = vmul.f32 %v2078, 0.2
        %v2577 = vmul.f32 %v2080, 0.2
        %v2578 = vmul.f32 %v2151, 0.2
        %v2579 = vmul.f32 %v2153, 0.2
        %v2580 = vmul.f32 %v2224, 0.2
        %v2581 = vmul.f32 %v2226, 0.2
        %v2582 = vmul.f32 %v2297, 0.2
        %v2583 = vmul.f32 %v2299, 0.2
        %v2584 = vmul.f32 %v2370, 0.2
        %v2585 = vmul.f32 %v2372, 0.2
        %v2586 = vmul.f32 %v1865, 0.2
        %v2587 = vmul.f32 %v1867, 0.2
        %v2588 = vmul.f32 %v1938, 0.2
        %v2589 = vmul.f32 %v1940, 0.2
        %v2590 = vmul.f32 %v2011, 0.2
        %v2591 = vmul.f32 %v2013, 0.2
        %v2592 = vmul.f32 %v2084, 0.2
        %v2593 = vmul.f32 %v2086, 0.2
        %v2594 = vmul.f32 %v2157, 0.2
        %v2595 = vmul.f32 %v2159, 0.2
        %v2596 = vmul.f32 %v2230, 0.2
        %v2597 = vmul.f32 %v2232, 0.2
        %v2598 = vmul.f32 %v2303, 0.2
        %v2599 = vmul.f32 %v2305, 0.2
        %v2600 = vmul.f32 %v2376, 0.2
        %v2601 = vmul.f32 %v2378, 0.2
        %v2602 = vmul.f32 %v1869, 0.2
        %v2603 = vmul.f32 %v1871, 0.2
        %v2604 = vmul.f32 %v1942, 0.2
        %v2605 = vmul.f32 %v1944, 0.2
        %v2606 = vmul.f32 %v2015, 0.2
        %v2607 = vmul.f32 %v2017, 0.2
        %v2608 = vmul.f32 %v2088, 0.2
        %v2609 = vmul.f32 %v2090, 0.2
        %v2610 = vmul.f32 %v2161, 0.2
        %v2611 = vmul.f32 %v2163, 0.2
        %v2612 = vmul.f32 %v2234, 0.2
        %v2613 = vmul.f32 %v2236, 0.2
        %v2614 = vmul.f32 %v2307, 0.2
        %v2615 = vmul.f32 %v2309, 0.2
        %v2616 = vmul.f32 %v2380, 0.2
        %v2617 = vmul.f32 %v2382, 0.2
        %v2618 = vmul.f32 %v1875, 0.2
        %v2619 = vmul.f32 %v1877, 0.2
        %v2620 = vmul.f32 %v1948, 0.2
        %v2621 = vmul.f32 %v1950, 0.2
        %v2622 = vmul.f32 %v2021, 0.2
        %v2623 = vmul.f32 %v2023, 0.2
        %v2624 = vmul.f32 %v2094, 0.2
        %v2625 = vmul.f32 %v2096, 0.2
        %v2626 = vmul.f32 %v2167, 0.2
        %v2627 = vmul.f32 %v2169, 0.2
        %v2628 = vmul.f32 %v2240, 0.2
        %v2629 = vmul.f32 %v2242, 0.2
        %v2630 = vmul.f32 %v2313, 0.2
        %v2631 = vmul.f32 %v2315, 0.2
        %v2632 = vmul.f32 %v2386, 0.2
        %v2633 = vmul.f32 %v2388, 0.2
        %v2634 = vmul.f32 %v1879, 0.2
        %v2635 = vmul.f32 %v1881, 0.2
        %v2636 = vmul.f32 %v1952, 0.2
        %v2637 = vmul.f32 %v1954, 0.2
        %v2638 = vmul.f32 %v2025, 0.2
        %v2639 = vmul.f32 %v2027, 0.2
        %v2640 = vmul.f32 %v2098, 0.2
        %v2641 = vmul.f32 %v2100, 0.2
        %v2642 = vmul.f32 %v2171, 0.2
        %v2643 = vmul.f32 %v2173, 0.2
        %v2644 = vmul.f32 %v2244, 0.2
        %v2645 = vmul.f32 %v2246, 0.2
        %v2646 = vmul.f32 %v2317, 0.2
        %v2647 = vmul.f32 %v2319, 0.2
        %v2648 = vmul.f32 %v2390, 0.2
        %v2649 = vmul.f32 %v2392, 0.2
        %v2650 = vsel %vm2394, %v1845, %v2522
        %v2651 = vsel %vm2395, %v1847, %v2523
        %v2652 = vsel %vm2396, %v1918, %v2524
        %v2653 = vsel %vm2397, %v1920, %v2525
        %v2654 = vsel %vm2398, %v1991, %v2526
        %v2655 = vsel %vm2399, %v1993, %v2527
        %v2656 = vsel %vm2400, %v2064, %v2528
        %v2657 = vsel %vm2401, %v2066, %v2529
        %v2658 = vsel %vm2402, %v2137, %v2530
        %v2659 = vsel %vm2403, %v2139, %v2531
        %v2660 = vsel %vm2404, %v2210, %v2532
        %v2661 = vsel %vm2405, %v2212, %v2533
        %v2662 = vsel %vm2406, %v2283, %v2534
        %v2663 = vsel %vm2407, %v2285, %v2535
        %v2664 = vsel %vm2408, %v2356, %v2536
        %v2665 = vsel %vm2409, %v2358, %v2537
        %v2666 = vsel %vm2410, %v1849, %v2538
        %v2667 = vsel %vm2411, %v1851, %v2539
        %v2668 = vsel %vm2412, %v1922, %v2540
        %v2669 = vsel %vm2413, %v1924, %v2541
        %v2670 = vsel %vm2414, %v1995, %v2542
        %v2671 = vsel %vm2415, %v1997, %v2543
        %v2672 = vsel %vm2416, %v2068, %v2544
        %v2673 = vsel %vm2417, %v2070, %v2545
        %v2674 = vsel %vm2418, %v2141, %v2546
        %v2675 = vsel %vm2419, %v2143, %v2547
        %v2676 = vsel %vm2420, %v2214, %v2548
        %v2677 = vsel %vm2421, %v2216, %v2549
        %v2678 = vsel %vm2422, %v2287, %v2550
        %v2679 = vsel %vm2423, %v2289, %v2551
        %v2680 = vsel %vm2424, %v2360, %v2552
        %v2681 = vsel %vm2425, %v2362, %v2553
        %v2682 = vsel %vm2426, %v1855, %v2554
        %v2683 = vsel %vm2427, %v1857, %v2555
        %v2684 = vsel %vm2428, %v1928, %v2556
        %v2685 = vsel %vm2429, %v1930, %v2557
        %v2686 = vsel %vm2430, %v2001, %v2558
        %v2687 = vsel %vm2431, %v2003, %v2559
        %v2688 = vsel %vm2432, %v2074, %v2560
        %v2689 = vsel %vm2433, %v2076, %v2561
        %v2690 = vsel %vm2434, %v2147, %v2562
        %v2691 = vsel %vm2435, %v2149, %v2563
        %v2692 = vsel %vm2436, %v2220, %v2564
        %v2693 = vsel %vm2437, %v2222, %v2565
        %v2694 = vsel %vm2438, %v2293, %v2566
        %v2695 = vsel %vm2439, %v2295, %v2567
        %v2696 = vsel %vm2440, %v2366, %v2568
        %v2697 = vsel %vm2441, %v2368, %v2569
        %v2698 = vsel %vm2442, %v1859, %v2570
        %v2699 = vsel %vm2443, %v1861, %v2571
        %v2700 = vsel %vm2444, %v1932, %v2572
        %v2701 = vsel %vm2445, %v1934, %v2573
        %v2702 = vsel %vm2446, %v2005, %v2574
        %v2703 = vsel %vm2447, %v2007, %v2575
        %v2704 = vsel %vm2448, %v2078, %v2576
        %v2705 = vsel %vm2449, %v2080, %v2577
        %v2706 = vsel %vm2450, %v2151, %v2578
        %v2707 = vsel %vm2451, %v2153, %v2579
        %v2708 = vsel %vm2452, %v2224, %v2580
        %v2709 = vsel %vm2453, %v2226, %v2581
        %v2710 = vsel %vm2454, %v2297, %v2582
        %v2711 = vsel %vm2455, %v2299, %v2583
        %v2712 = vsel %vm2456, %v2370, %v2584
        %v2713 = vsel %vm2457, %v2372, %v2585
        %v2714 = vsel %vm2458, %v1865, %v2586
        %v2715 = vsel %vm2459, %v1867, %v2587
        %v2716 = vsel %vm2460, %v1938, %v2588
        %v2717 = vsel %vm2461, %v1940, %v2589
        %v2718 = vsel %vm2462, %v2011, %v2590
        %v2719 = vsel %vm2463, %v2013, %v2591
        %v2720 = vsel %vm2464, %v2084, %v2592
        %v2721 = vsel %vm2465, %v2086, %v2593
        %v2722 = vsel %vm2466, %v2157, %v2594
        %v2723 = vsel %vm2467, %v2159, %v2595
        %v2724 = vsel %vm2468, %v2230, %v2596
        %v2725 = vsel %vm2469, %v2232, %v2597
        %v2726 = vsel %vm2470, %v2303, %v2598
        %v2727 = vsel %vm2471, %v2305, %v2599
        %v2728 = vsel %vm2472, %v2376, %v2600
        %v2729 = vsel %vm2473, %v2378, %v2601
        %v2730 = vsel %vm2474, %v1869, %v2602
        %v2731 = vsel %vm2475, %v1871, %v2603
        %v2732 = vsel %vm2476, %v1942, %v2604
        %v2733 = vsel %vm2477, %v1944, %v2605
        %v2734 = vsel %vm2478, %v2015, %v2606
        %v2735 = vsel %vm2479, %v2017, %v2607
        %v2736 = vsel %vm2480, %v2088, %v2608
        %v2737 = vsel %vm2481, %v2090, %v2609
        %v2738 = vsel %vm2482, %v2161, %v2610
        %v2739 = vsel %vm2483, %v2163, %v2611
        %v2740 = vsel %vm2484, %v2234, %v2612
        %v2741 = vsel %vm2485, %v2236, %v2613
        %v2742 = vsel %vm2486, %v2307, %v2614
        %v2743 = vsel %vm2487, %v2309, %v2615
        %v2744 = vsel %vm2488, %v2380, %v2616
        %v2745 = vsel %vm2489, %v2382, %v2617
        %v2746 = vsel %vm2490, %v1875, %v2618
        %v2747 = vsel %vm2491, %v1877, %v2619
        %v2748 = vsel %vm2492, %v1948, %v2620
        %v2749 = vsel %vm2493, %v1950, %v2621
        %v2750 = vsel %vm2494, %v2021, %v2622
        %v2751 = vsel %vm2495, %v2023, %v2623
        %v2752 = vsel %vm2496, %v2094, %v2624
        %v2753 = vsel %vm2497, %v2096, %v2625
        %v2754 = vsel %vm2498, %v2167, %v2626
        %v2755 = vsel %vm2499, %v2169, %v2627
        %v2756 = vsel %vm2500, %v2240, %v2628
        %v2757 = vsel %vm2501, %v2242, %v2629
        %v2758 = vsel %vm2502, %v2313, %v2630
        %v2759 = vsel %vm2503, %v2315, %v2631
        %v2760 = vsel %vm2504, %v2386, %v2632
        %v2761 = vsel %vm2505, %v2388, %v2633
        %v2762 = vsel %vm2506, %v1879, %v2634
        %v2763 = vsel %vm2507, %v1881, %v2635
        %v2764 = vsel %vm2508, %v1952, %v2636
        %v2765 = vsel %vm2509, %v1954, %v2637
        %v2766 = vsel %vm2510, %v2025, %v2638
        %v2767 = vsel %vm2511, %v2027, %v2639
        %v2768 = vsel %vm2512, %v2098, %v2640
        %v2769 = vsel %vm2513, %v2100, %v2641
        %v2770 = vsel %vm2514, %v2171, %v2642
        %v2771 = vsel %vm2515, %v2173, %v2643
        %v2772 = vsel %vm2516, %v2244, %v2644
        %v2773 = vsel %vm2517, %v2246, %v2645
        %v2774 = vsel %vm2518, %v2317, %v2646
        %v2775 = vsel %vm2519, %v2319, %v2647
        %v2776 = vsel %vm2520, %v2390, %v2648
        %v2777 = vsel %vm2521, %v2392, %v2649
        %v2778 = vmax.f32 %v2650, %v2652
        %v2779 = vmax.f32 %v2651, %v2653
        %v2780 = vmax.f32 %v2666, %v2668
        %v2781 = vmax.f32 %v2667, %v2669
        %v2782 = vmax.f32 %v2682, %v2684
        %v2783 = vmax.f32 %v2683, %v2685
        %v2784 = vmax.f32 %v2698, %v2700
        %v2785 = vmax.f32 %v2699, %v2701
        %v2786 = vmax.f32 %v2714, %v2716
        %v2787 = vmax.f32 %v2715, %v2717
        %v2788 = vmax.f32 %v2730, %v2732
        %v2789 = vmax.f32 %v2731, %v2733
        %v2790 = vmax.f32 %v2746, %v2748
        %v2791 = vmax.f32 %v2747, %v2749
        %v2792 = vmax.f32 %v2762, %v2764
        %v2793 = vmax.f32 %v2763, %v2765
        %v2794 = vmax.f32 %v2778, %v2654
        %v2795 = vmax.f32 %v2779, %v2655
        %v2796 = vmax.f32 %v2780, %v2670
        %v2797 = vmax.f32 %v2781, %v2671
        %v2798 = vmax.f32 %v2782, %v2686
        %v2799 = vmax.f32 %v2783, %v2687
        %v2800 = vmax.f32 %v2784, %v2702
        %v2801 = vmax.f32 %v2785, %v2703
        %v2802 = vmax.f32 %v2786, %v2718
        %v2803 = vmax.f32 %v2787, %v2719
        %v2804 = vmax.f32 %v2788, %v2734
        %v2805 = vmax.f32 %v2789, %v2735
        %v2806 = vmax.f32 %v2790, %v2750
        %v2807 = vmax.f32 %v2791, %v2751
        %v2808 = vmax.f32 %v2792, %v2766
        %v2809 = vmax.f32 %v2793, %v2767
        %v2810 = vmax.f32 %v2794, %v2656
        %v2811 = vmax.f32 %v2795, %v2657
        %v2812 = vmax.f32 %v2796, %v2672
        %v2813 = vmax.f32 %v2797, %v2673
        %v2814 = vmax.f32 %v2798, %v2688
        %v2815 = vmax.f32 %v2799, %v2689
        %v2816 = vmax.f32 %v2800, %v2704
        %v2817 = vmax.f32 %v2801, %v2705
        %v2818 = vmax.f32 %v2802, %v2720
        %v2819 = vmax.f32 %v2803, %v2721
        %v2820 = vmax.f32 %v2804, %v2736
        %v2821 = vmax.f32 %v2805, %v2737
        %v2822 = vmax.f32 %v2806, %v2752
        %v2823 = vmax.f32 %v2807, %v2753
        %v2824 = vmax.f32 %v2808, %v2768
        %v2825 = vmax.f32 %v2809, %v2769
        %v2826 = vmax.f32 %v2810, %v2658
        %v2827 = vmax.f32 %v2811, %v2659
        %v2828 = vmax.f32 %v2812, %v2674
        %v2829 = vmax.f32 %v2813, %v2675
        %v2830 = vmax.f32 %v2814, %v2690
        %v2831 = vmax.f32 %v2815, %v2691
        %v2832 = vmax.f32 %v2816, %v2706
        %v2833 = vmax.f32 %v2817, %v2707
        %v2834 = vmax.f32 %v2818, %v2722
        %v2835 = vmax.f32 %v2819, %v2723
        %v2836 = vmax.f32 %v2820, %v2738
        %v2837 = vmax.f32 %v2821, %v2739
        %v2838 = vmax.f32 %v2822, %v2754
        %v2839 = vmax.f32 %v2823, %v2755
        %v2840 = vmax.f32 %v2824, %v2770
        %v2841 = vmax.f32 %v2825, %v2771
        %v2842 = vmax.f32 %v2826, %v2660
        %v2843 = vmax.f32 %v2827, %v2661
        %v2844 = vmax.f32 %v2828, %v2676
        %v2845 = vmax.f32 %v2829, %v2677
        %v2846 = vmax.f32 %v2830, %v2692
        %v2847 = vmax.f32 %v2831, %v2693
        %v2848 = vmax.f32 %v2832, %v2708
        %v2849 = vmax.f32 %v2833, %v2709
        %v2850 = vmax.f32 %v2834, %v2724
        %v2851 = vmax.f32 %v2835, %v2725
        %v2852 = vmax.f32 %v2836, %v2740
        %v2853 = vmax.f32 %v2837, %v2741
        %v2854 = vmax.f32 %v2838, %v2756
        %v2855 = vmax.f32 %v2839, %v2757
        %v2856 = vmax.f32 %v2840, %v2772
        %v2857 = vmax.f32 %v2841, %v2773
        %v2858 = vmax.f32 %v2842, %v2662
        %v2859 = vmax.f32 %v2843, %v2663
        %v2860 = vmax.f32 %v2844, %v2678
        %v2861 = vmax.f32 %v2845, %v2679
        %v2862 = vmax.f32 %v2846, %v2694
        %v2863 = vmax.f32 %v2847, %v2695
        %v2864 = vmax.f32 %v2848, %v2710
        %v2865 = vmax.f32 %v2849, %v2711
        %v2866 = vmax.f32 %v2850, %v2726
        %v2867 = vmax.f32 %v2851, %v2727
        %v2868 = vmax.f32 %v2852, %v2742
        %v2869 = vmax.f32 %v2853, %v2743
        %v2870 = vmax.f32 %v2854, %v2758
        %v2871 = vmax.f32 %v2855, %v2759
        %v2872 = vmax.f32 %v2856, %v2774
        %v2873 = vmax.f32 %v2857, %v2775
        %v2874 = vmax.f32 %v2858, %v2664
        %v2875 = vmax.f32 %v2859, %v2665
        %v2876 = vmax.f32 %v2860, %v2680
        %v2877 = vmax.f32 %v2861, %v2681
        %v2878 = vmax.f32 %v2862, %v2696
        %v2879 = vmax.f32 %v2863, %v2697
        %v2880 = vmax.f32 %v2864, %v2712
        %v2881 = vmax.f32 %v2865, %v2713
        %v2882 = vmax.f32 %v2866, %v2728
        %v2883 = vmax.f32 %v2867, %v2729
        %v2884 = vmax.f32 %v2868, %v2744
        %v2885 = vmax.f32 %v2869, %v2745
        %v2886 = vmax.f32 %v2870, %v2760
        %v2887 = vmax.f32 %v2871, %v2761
        %v2888 = vmax.f32 %v2872, %v2776
        %v2889 = vmax.f32 %v2873, %v2777
        %2890 = vst [vmem:[%s321] sm:$0xff] %v2874
        %2891 = vst [vmem:[%s321 + $0x8] sm:$0xff] %v2875
        %2892 = vst [vmem:[%s321 + $0x10] sm:$0xff] %v2876
        %2893 = vst [vmem:[%s321 + $0x18] sm:$0xff] %v2877
        %2894 = vst [vmem:[%s321 + $0x20] sm:$0xff] %v2878
        %2895 = vst [vmem:[%s321 + $0x28] sm:$0xff] %v2879
        %2896 = vst [vmem:[%s321 + $0x30] sm:$0xff] %v2880
        %2897 = vst [vmem:[%s321 + $0x38] sm:$0xff] %v2881
        %2898 = vst [vmem:[%s321 + $0x40] sm:$0xff] %v2882
        %2899 = vst [vmem:[%s321 + $0x48] sm:$0xff] %v2883
        %2900 = vst [vmem:[%s321 + $0x50] sm:$0xff] %v2884
        %2901 = vst [vmem:[%s321 + $0x58] sm:$0xff] %v2885
        %2902 = vst [vmem:[%s321 + $0x60] sm:$0xff] %v2886
        %2903 = vst [vmem:[%s321 + $0x68] sm:$0xff] %v2887
        %2904 = vst [vmem:[%s321 + $0x70] sm:$0xff] %v2888
        %2905 = vst [vmem:[%s321 + $0x78] sm:$0xff] %v2889
        %s2906 = sand.u32 %s204, 1
        %s2907 = scalar_lea.sflag [#allocation3], %s2906
        %s2908 = sand.u32 %s204, 1
        %s2909 = smul.addr %s2908, 128
        %s2910 = scalar_lea.vmem [#allocation2], %s2909
        // Predicated region
        $region49: #{edge_conv_forward.3} parent=47 // pred_check
          %p2911 = pneg %p214
        $region50: #{edge_conv_forward.3} parent=47 // pred_check_branch
          %2913 = sbr.rel (%p2911) target = $region52
        $region51: #{edge_conv_forward.3} parent=47 // pred_region
          %s2914 = smul.u32 2, %s26
          %s2916 = ssub.s32 2048, 2048
          %2917 = vsyncadd %s2907, %s2916
          %s2918 = smul.addr %s25, 16
          %s2919 = sadd.s32 %s2914, %s2918
          %s2920 = smul.addr %s2919, 128
          %s2921 = scalar_lea.hbm %s7, %s2920
          %s2922 = sshll.u32 %s2910, 4
          %s2923 = int_to_ptr.vmem [resolvable:$true] %s2922
          %2928 = dma.vmem_to_hbm [thread:$0]  %s2923, 2048, %s2921, %s2907, 256, 256, 16
        $region52: #{edge_conv_forward.3} parent=47 // pred_fallthru
          _
      $region48: #{edge_conv_forward.3} parent=5 // pred_fallthru
        _
      %p2929 = scmp.le.s32.totalorder 2, %s16
      // Predicated region
      $region53: #{edge_conv_forward.3} parent=5 // pred_check
        %p2930 = pneg %p2929
      $region54: #{edge_conv_forward.3} parent=5 // pred_check_branch
        %2932 = sbr.rel (%p2930) target = $region56
      $region55: #{edge_conv_forward.3} parent=5 // pred_region
        %s2933 = ssub.s32 %s16, 2
        // Predicated region
        $region57: #{edge_conv_forward.3} parent=55 // pred_check
          %p2934 = pneg %p220
        $region58: #{edge_conv_forward.3} parent=55 // pred_check_branch
          %2936 = sbr.rel (%p2934) target = $region60
        $region59: #{edge_conv_forward.3} parent=55 // pred_region
          %s2937 = sand.u32 %s205, 1
          %s2938 = scalar_lea.sflag [#allocation3], %s2937
          %s2939 = sand.u32 %s205, 1
          %s2940 = smul.addr %s2939, 128
          %s2941 = scalar_lea.vmem [#allocation2], %s2940
          %2942 = dma.done %s2938, 2048
        $region60: #{edge_conv_forward.3} parent=55 // pred_fallthru
          _
      $region56: #{edge_conv_forward.3} parent=5 // pred_fallthru
        _
    $region6: #{edge_conv_forward.3} parent=1 // loop_footer
      %s20 = sadd.s32 1, %s16
    $region7: #{edge_conv_forward.3} parent=1 // loop_footer_branch
      %15 = sbr.rel target = $region3
    $region8: #{edge_conv_forward.3} parent=1 // loop_exit
      _
    %2943 = vsyncpa [#allocation3], 1
    %s2944 = scalar_lea.sflag [#allocation3], 1
    %2945 = vsyncpa %s2944, 1

</llo_original>
